<compile_context>
chip_gen: v7x
topology: tpu7x:2x2x1
jax: 0.10.0
libtpu: 0.0.40
codegen_flags: <defaults>
</compile_context>

<pallas_src>
import jax
import jax.numpy as jnp
from jax.experimental import pallas as pl
from jax.experimental.pallas import tpu as pltpu

KW = 3          # conv kernel width (kernel height is 1)
EPS = 1e-5


def _residual_block_kernel(x_ref, w1_ref, w2_ref, o_ref, pad_ref):
    # x_ref : (NB, H, W, C)     f32   input block (NB batch samples)
    # w1_ref: (KW, C, 2C)       bf16  conv1 weights, tap-major
    # w2_ref: (KW, C, C)        bf16  conv2 weights, tap-major
    # o_ref : (NB, H, W, C)     f32   output block
    # pad_ref: (NB, H, W+2, C)  f32   scratch: W-halo-padded conv input (reused)
    NB, H, W, C = x_ref.shape
    HW = H * W
    M = NB * HW

    x = x_ref[...]                                        # (NB, H, W, C) f32

    # Zero the two halo columns once; both convs reuse them.
    zcol = jnp.zeros((NB, H, 1, C), pad_ref.dtype)
    pad_ref[:, :, 0:1, :] = zcol
    pad_ref[:, :, W + 1:W + 2, :] = zcol

    def conv1x3(src, w_ref):
        # src: (NB, H, W, C) f32.  Three K=C taps accumulated in f32 -- no
        # materialized im2col slab; bf16 only at the MXU operand.
        pad_ref[:, :, 1:W + 1, :] = src
        acc = None
        for k in range(KW):                               # static unroll
            tap = pad_ref[:, :, k:k + W, :].reshape(M, C).astype(jnp.bfloat16)
            d = jnp.dot(tap, w_ref[k], preferred_element_type=jnp.float32)
            acc = d if acc is None else acc + d
        return acc                                        # (M, Cout) f32

    def instance_norm(y):
        # Single-pass per-(sample, channel) stats over spatial positions;
        # biased variance, eps=1e-5, no affine; all math in f32.
        cout = y.shape[-1]
        ys = y.reshape(NB, HW, cout)
        mean = jnp.mean(ys, axis=1, keepdims=True)
        mean_sq = jnp.mean(ys * ys, axis=1, keepdims=True)
        var = jnp.maximum(mean_sq - mean * mean, 0.0)
        return ((ys - mean) * jax.lax.rsqrt(var + EPS)).reshape(M, cout)

    # conv1 -> instance-norm -> GLU (gated math in f32)
    y1 = instance_norm(conv1x3(x, w1_ref))                # (M, 2C)
    g = y1[:, :C] * jax.nn.sigmoid(y1[:, C:])             # (M, C)

    # conv2 -> instance-norm -> residual add
    y2 = instance_norm(conv1x3(g.reshape(NB, H, W, C), w2_ref))   # (M, C)
    o_ref[...] = (y2.reshape(NB, H, W, C) + x).astype(o_ref.dtype)


def _num_tensorcores():
    try:
        kind = jax.devices()[0].device_kind.lower()
    except Exception:
        return 1
    return 2 if any(t in kind for t in ("v7", "7x", "v5p", "v4")) else 1


def _physical_vmem_bytes():
    try:
        return int(pltpu.get_tpu_info().vmem_capacity_bytes)
    except Exception:
        pass
    try:
        kind = jax.devices()[0].device_kind.lower()
    except Exception:
        kind = ""
    return (64 << 20) if any(t in kind for t in ("v7", "7x")) else (128 << 20)


def _const_weight_spec(shape):
    # Weights never change across the grid -> single-buffer them to save VMEM.
    idx = lambda n: (0,) * len(shape)
    try:
        return pl.BlockSpec(shape, idx, pipeline_mode=pl.Buffered(1))
    except Exception:                       # older API: fall back to default
        return pl.BlockSpec(shape, idx)


@jax.jit
def residual_block(x_nchw, w1_oihw, w2_oihw):
    """x: (N, C, H, W); w1: (2C, C, 1, 3); w2: (C, C, 1, 3). Returns (N, C, H, W)."""
    N, C, H, W = x_nchw.shape
    C2 = w1_oihw.shape[0]                    # 2*C

    # NCHW -> NHWC (channels on the lane axis).
    # TODO(synk): at production sizes keep the surrounding model in NHWC so this
    # boundary transpose (a full HBM read+write) disappears.
    x_nhwc = jnp.transpose(x_nchw, (0, 2, 3, 1))

    # (Cout, Cin, 1, KW) -> (KW, Cin, Cout); bf16 MXU operand.
    def prep_w(w):
        return jnp.transpose(w[:, :, 0, :], (2, 1, 0)).astype(jnp.bfloat16)

    w1 = prep_w(w1_oihw)                     # (KW, C, 2C)
    w2 = prep_w(w2_oihw)                     # (KW, C, C)

    # Batch-fold: fill the 256-row MXU where possible (single-TC v5e/v6e) but
    # keep >= num_tc grid steps so multi-TC chips (v7x) get parallel work.
    num_tc = _num_tensorcores()
    nb = min(N, max(1, 256 // (H * W)))
    nb = min(nb, max(1, N // num_tc))
    while N % nb:
        nb -= 1
    grid = (N // nb,)

    # Itemized VMEM budget (per grid step) + fixed headroom, capped well below
    # the chip's physical VMEM (no 2x-on-top-of-itemized hedging).
    blk_io = nb * H * W * C * 4                       # one f32 x / out buffer
    blk_w = (w1.size + w2.size) * 2                   # bf16 weights
    scratch = nb * H * (W + 2) * C * 4                # halo-padded f32 slab
    m_rows = nb * H * W
    temps = (m_rows * C2 * 4                          # y1 (f32)
             + 2 * m_rows * C * 4                     # g, y2 (f32)
             + 2 * m_rows * C * 2)                    # bf16 tap operands
    est = 2 * 2 * blk_io + 2 * blk_w + scratch + temps
    cap = int(0.78 * _physical_vmem_bytes())
    vmem_limit = int(min(max(est + (8 << 20), 32 << 20), cap))

    out_nhwc = pl.pallas_call(
        _residual_block_kernel,
        out_shape=jax.ShapeDtypeStruct((N, H, W, C), x_nchw.dtype),
        grid_spec=pltpu.PrefetchScalarGridSpec(
            num_scalar_prefetch=0,
            grid=grid,
            in_specs=[
                pl.BlockSpec((nb, H, W, C), lambda n: (n, 0, 0, 0)),
                _const_weight_spec((KW, C, C2)),
                _const_weight_spec((KW, C, C)),
            ],
            out_specs=pl.BlockSpec((nb, H, W, C), lambda n: (n, 0, 0, 0)),
            scratch_shapes=[pltpu.VMEM((nb, H, W + 2, C), jnp.float32)],
        ),
        compiler_params=pltpu.CompilerParams(
            dimension_semantics=("parallel",),
            vmem_limit_bytes=vmem_limit),
    )(x_nhwc, w1, w2)

    # Only remaining layout glue: NHWC -> NCHW at the boundary.
    return jnp.transpose(out_nhwc, (0, 3, 1, 2))


def _reference(x_nchw, w1_oihw, w2_oihw):
    """Pure-JAX reference mirroring the PyTorch forward (bf16 conv operands,
    f32 accumulation / norm math, matching the kernel's numerics)."""
    def conv(x, w):
        return jax.lax.conv_general_dilated(
            x.astype(jnp.bfloat16), w.astype(jnp.bfloat16),
            window_strides=(1, 1), padding=((0, 0), (1, 1)),
            dimension_numbers=("NCHW", "OIHW", "NCHW"),
            preferred_element_type=jnp.float32)

    def inorm(y):
        mean = jnp.mean(y, axis=(2, 3), keepdims=True)
        var = jnp.mean(jnp.square(y - mean), axis=(2, 3), keepdims=True)
        return (y - mean) * jax.lax.rsqrt(var + EPS)

    y = inorm(conv(x_nchw, w1_oihw))
    a, b = jnp.split(y, 2, axis=1)
    g = a * jax.nn.sigmoid(b)
    y2 = inorm(conv(g, w2_oihw))
    return y2 + x_nchw


if __name__ == "__main__":
    key = jax.random.PRNGKey(0)
    k_x, k_w1, k_w2 = jax.random.split(key, 3)

    # The module fixes channels (256 -> 512 -> GLU -> 256); keep spatial small.
    N, C, H, W = 2, 256, 4, 16
    x = jax.random.normal(k_x, (N, C, H, W), dtype=jnp.float32)
    w1 = 0.05 * jax.random.normal(k_w1, (2 * C, C, 1, KW), dtype=jnp.float32)
    w2 = 0.05 * jax.random.normal(k_w2, (C, C, 1, KW), dtype=jnp.float32)

    out = residual_block(x, w1, w2)
    jax.block_until_ready(out)

    ref = _reference(x, w1, w2)
    assert out.shape == (N, C, H, W), out.shape
    max_err = float(jnp.max(jnp.abs(out - ref)))
    assert jnp.allclose(out, ref, atol=3e-3, rtol=3e-3), max_err

    print("KERNEL_OK")
</pallas_src>

<mosaic_0001>
module attributes {stable_mosaic.version = 11 : i64} {
  func.func @_residual_block_kernel(%arg0: i32, %arg1: memref<2x4x16x256xf32, #tpu.memory_space<vmem>>, %arg2: memref<3x256x512xbf16, #tpu.memory_space<vmem>>, %arg3: memref<3x256x256xbf16, #tpu.memory_space<vmem>>, %arg4: memref<2x4x16x256xf32, #tpu.memory_space<vmem>>, %arg5: memref<2x4x18x256xf32, #tpu.memory_space<vmem>>) attributes {dimension_semantics = [#tpu.dimension_semantics<parallel>], iteration_bounds = array<i64: 1>, scalar_prefetch = 0 : i64, scratch_operands = 1 : i64, tpu.core_type = #tpu.core_type<tc>, window_params = [{transform_indices = @transform_0, window_bounds = array<i64: 2, 4, 16, 256>}, {pipeline_mode = #tpu.pipeline_mode<synchronous>, transform_indices = @transform_1, window_bounds = array<i64: 3, 256, 512>}, {pipeline_mode = #tpu.pipeline_mode<synchronous>, transform_indices = @transform_2, window_bounds = array<i64: 3, 256, 256>}, {transform_indices = @transform_3, window_bounds = array<i64: 2, 4, 16, 256>}]} {
    %c0 = arith.constant 0 : index
    %c0_0 = arith.constant 0 : index
    %c0_1 = arith.constant 0 : index
    %c0_2 = arith.constant 0 : index
    %0 = vector.load %arg1[%c0, %c0_0, %c0_1, %c0_2] : memref<2x4x16x256xf32, #tpu.memory_space<vmem>>, vector<2x4x16x256xf32>
    %cst = arith.constant 0.000000e+00 : f32
    %1 = vector.broadcast %cst : f32 to vector<2x4x1x256xf32>
    %c0_3 = arith.constant 0 : index
    %c0_4 = arith.constant 0 : index
    %c0_5 = arith.constant 0 : index
    %c0_6 = arith.constant 0 : index
    %2 = vector.load %arg5[%c0_3, %c0_4, %c0_5, %c0_6] : memref<2x4x18x256xf32, #tpu.memory_space<vmem>>, vector<2x4x1x256xf32>
    tpu.vector_store %arg5[%c0_3, %c0_4, %c0_5, %c0_6], %1 {strides = array<i32>} : memref<2x4x18x256xf32, #tpu.memory_space<vmem>>, vector<2x4x1x256xf32>,
    %c0_7 = arith.constant 0 : index
    %c0_8 = arith.constant 0 : index
    %c17 = arith.constant 17 : index
    %c0_9 = arith.constant 0 : index
    %3 = vector.load %arg5[%c0_7, %c0_8, %c17, %c0_9] : memref<2x4x18x256xf32, #tpu.memory_space<vmem>>, vector<2x4x1x256xf32>
    tpu.vector_store %arg5[%c0_7, %c0_8, %c17, %c0_9], %1 {strides = array<i32>} : memref<2x4x18x256xf32, #tpu.memory_space<vmem>>, vector<2x4x1x256xf32>,
    %c0_10 = arith.constant 0 : index
    %c0_11 = arith.constant 0 : index
    %c1 = arith.constant 1 : index
    %c0_12 = arith.constant 0 : index
    %4 = vector.load %arg5[%c0_10, %c0_11, %c1, %c0_12] : memref<2x4x18x256xf32, #tpu.memory_space<vmem>>, vector<2x4x16x256xf32>
    tpu.vector_store %arg5[%c0_10, %c0_11, %c1, %c0_12], %0 {strides = array<i32>} : memref<2x4x18x256xf32, #tpu.memory_space<vmem>>, vector<2x4x16x256xf32>,
    %c0_13 = arith.constant 0 : index
    %c0_14 = arith.constant 0 : index
    %c0_15 = arith.constant 0 : index
    %c0_16 = arith.constant 0 : index
    %5 = vector.load %arg5[%c0_13, %c0_14, %c0_15, %c0_16] : memref<2x4x18x256xf32, #tpu.memory_space<vmem>>, vector<2x4x16x256xf32>
    %6 = vector.shape_cast %5 : vector<2x4x16x256xf32> to vector<128x256xf32>
    %7 = arith.truncf %6 : vector<128x256xf32> to vector<128x256xbf16>
    %c0_17 = arith.constant 0 : index
    %c0_18 = arith.constant 0 : index
    %c0_19 = arith.constant 0 : index
    %8 = vector.load %arg2[%c0_17, %c0_18, %c0_19] : memref<3x256x512xbf16, #tpu.memory_space<vmem>>, vector<1x256x512xbf16>
    %9 = vector.shape_cast %8 : vector<1x256x512xbf16> to vector<256x512xbf16>
    %cst_20 = arith.constant dense<0.000000e+00> : vector<128x512xf32>
    %10 = tpu.matmul %7, %9, %cst_20 {dimension_numbers = #tpu.dot_dimension_numbers<[1], [0], [0], [1], [0, 0, 1, 1], [], []>} : vector<128x256xbf16>, vector<256x512xbf16>, vector<128x512xf32> -> vector<128x512xf32>
    %c0_21 = arith.constant 0 : index
    %c0_22 = arith.constant 0 : index
    %c1_23 = arith.constant 1 : index
    %c0_24 = arith.constant 0 : index
    %11 = vector.load %arg5[%c0_21, %c0_22, %c1_23, %c0_24] : memref<2x4x18x256xf32, #tpu.memory_space<vmem>>, vector<2x4x16x256xf32>
    %12 = vector.shape_cast %11 : vector<2x4x16x256xf32> to vector<128x256xf32>
    %13 = arith.truncf %12 : vector<128x256xf32> to vector<128x256xbf16>
    %c1_25 = arith.constant 1 : index
    %c0_26 = arith.constant 0 : index
    %c0_27 = arith.constant 0 : index
    %14 = vector.load %arg2[%c1_25, %c0_26, %c0_27] : memref<3x256x512xbf16, #tpu.memory_space<vmem>>, vector<1x256x512xbf16>
    %15 = vector.shape_cast %14 : vector<1x256x512xbf16> to vector<256x512xbf16>
    %cst_28 = arith.constant dense<0.000000e+00> : vector<128x512xf32>
    %16 = tpu.matmul %13, %15, %cst_28 {dimension_numbers = #tpu.dot_dimension_numbers<[1], [0], [0], [1], [0, 0, 1, 1], [], []>} : vector<128x256xbf16>, vector<256x512xbf16>, vector<128x512xf32> -> vector<128x512xf32>
    %17 = arith.addf %10, %16 : vector<128x512xf32>
    %c0_29 = arith.constant 0 : index
    %c0_30 = arith.constant 0 : index
    %c2 = arith.constant 2 : index
    %c0_31 = arith.constant 0 : index
    %18 = vector.load %arg5[%c0_29, %c0_30, %c2, %c0_31] : memref<2x4x18x256xf32, #tpu.memory_space<vmem>>, vector<2x4x16x256xf32>
    %19 = vector.shape_cast %18 : vector<2x4x16x256xf32> to vector<128x256xf32>
    %20 = arith.truncf %19 : vector<128x256xf32> to vector<128x256xbf16>
    %c2_32 = arith.constant 2 : index
    %c0_33 = arith.constant 0 : index
    %c0_34 = arith.constant 0 : index
    %21 = vector.load %arg2[%c2_32, %c0_33, %c0_34] : memref<3x256x512xbf16, #tpu.memory_space<vmem>>, vector<1x256x512xbf16>
    %22 = vector.shape_cast %21 : vector<1x256x512xbf16> to vector<256x512xbf16>
    %cst_35 = arith.constant dense<0.000000e+00> : vector<128x512xf32>
    %23 = tpu.matmul %20, %22, %cst_35 {dimension_numbers = #tpu.dot_dimension_numbers<[1], [0], [0], [1], [0, 0, 1, 1], [], []>} : vector<128x256xbf16>, vector<256x512xbf16>, vector<128x512xf32> -> vector<128x512xf32>
    %24 = arith.addf %17, %23 : vector<128x512xf32>
    %25 = vector.shape_cast %24 : vector<128x512xf32> to vector<2x64x512xf32>
    %cst_36 = arith.constant dense<0.000000e+00> : vector<2x512xf32>
    %26 = vector.multi_reduction <add>, %25, %cst_36 [1] : vector<2x64x512xf32> to vector<2x512xf32>
    %27 = vector.shape_cast %26 : vector<2x512xf32> to vector<2x1x512xf32>
    %cst_37 = arith.constant 6.400000e+01 : f32
    %28 = vector.broadcast %cst_37 : f32 to vector<2x1x512xf32>
    %29 = arith.divf %27, %28 : vector<2x1x512xf32>
    %30 = arith.mulf %25, %25 : vector<2x64x512xf32>
    %cst_38 = arith.constant dense<0.000000e+00> : vector<2x512xf32>
    %31 = vector.multi_reduction <add>, %30, %cst_38 [1] : vector<2x64x512xf32> to vector<2x512xf32>
    %32 = vector.shape_cast %31 : vector<2x512xf32> to vector<2x1x512xf32>
    %cst_39 = arith.constant 6.400000e+01 : f32
    %33 = vector.broadcast %cst_39 : f32 to vector<2x1x512xf32>
    %34 = arith.divf %32, %33 : vector<2x1x512xf32>
    %35 = arith.mulf %29, %29 : vector<2x1x512xf32>
    %36 = arith.subf %34, %35 : vector<2x1x512xf32>
    %cst_40 = arith.constant 0.000000e+00 : f32
    %37 = vector.broadcast %cst_40 : f32 to vector<2x1x512xf32>
    %38 = arith.maximumf %36, %37 : vector<2x1x512xf32>
    %39 = vector.broadcast %29 : vector<2x1x512xf32> to vector<2x64x512xf32>
    %40 = arith.subf %25, %39 : vector<2x64x512xf32>
    %cst_41 = arith.constant 9.99999974E-6 : f32
    %41 = vector.broadcast %cst_41 : f32 to vector<2x1x512xf32>
    %42 = arith.addf %38, %41 : vector<2x1x512xf32>
    %43 = math.rsqrt %42 : vector<2x1x512xf32>
    %44 = vector.broadcast %43 : vector<2x1x512xf32> to vector<2x64x512xf32>
    %45 = arith.mulf %40, %44 : vector<2x64x512xf32>
    %46 = vector.shape_cast %45 : vector<2x64x512xf32> to vector<128x512xf32>
    %47 = vector.extract_strided_slice %46 {offsets = [0, 0], sizes = [128, 256], strides = [1, 1]} : vector<128x512xf32> to vector<128x256xf32>
    %48 = vector.extract_strided_slice %46 {offsets = [0, 256], sizes = [128, 256], strides = [1, 1]} : vector<128x512xf32> to vector<128x256xf32>
    %49 = arith.negf %48 : vector<128x256xf32>
    %50 = math.exp %49 : vector<128x256xf32>
    %cst_42 = arith.constant 1.000000e+00 : f32
    %51 = vector.broadcast %cst_42 : f32 to vector<128x256xf32>
    %52 = arith.addf %51, %50 : vector<128x256xf32>
    %53 = arith.divf %51, %52 : vector<128x256xf32>
    %54 = arith.mulf %47, %53 : vector<128x256xf32>
    %55 = vector.shape_cast %54 : vector<128x256xf32> to vector<2x4x16x256xf32>
    %c0_43 = arith.constant 0 : index
    %c0_44 = arith.constant 0 : index
    %c1_45 = arith.constant 1 : index
    %c0_46 = arith.constant 0 : index
    %56 = vector.load %arg5[%c0_43, %c0_44, %c1_45, %c0_46] : memref<2x4x18x256xf32, #tpu.memory_space<vmem>>, vector<2x4x16x256xf32>
    tpu.vector_store %arg5[%c0_43, %c0_44, %c1_45, %c0_46], %55 {strides = array<i32>} : memref<2x4x18x256xf32, #tpu.memory_space<vmem>>, vector<2x4x16x256xf32>,
    %c0_47 = arith.constant 0 : index
    %c0_48 = arith.constant 0 : index
    %c0_49 = arith.constant 0 : index
    %c0_50 = arith.constant 0 : index
    %57 = vector.load %arg5[%c0_47, %c0_48, %c0_49, %c0_50] : memref<2x4x18x256xf32, #tpu.memory_space<vmem>>, vector<2x4x16x256xf32>
    %58 = vector.shape_cast %57 : vector<2x4x16x256xf32> to vector<128x256xf32>
    %59 = arith.truncf %58 : vector<128x256xf32> to vector<128x256xbf16>
    %c0_51 = arith.constant 0 : index
    %c0_52 = arith.constant 0 : index
    %c0_53 = arith.constant 0 : index
    %60 = vector.load %arg3[%c0_51, %c0_52, %c0_53] : memref<3x256x256xbf16, #tpu.memory_space<vmem>>, vector<1x256x256xbf16>
    %61 = vector.shape_cast %60 : vector<1x256x256xbf16> to vector<256x256xbf16>
    %cst_54 = arith.constant dense<0.000000e+00> : vector<128x256xf32>
    %62 = tpu.matmul %59, %61, %cst_54 {dimension_numbers = #tpu.dot_dimension_numbers<[1], [0], [0], [1], [0, 0, 1, 1], [], []>} : vector<128x256xbf16>, vector<256x256xbf16>, vector<128x256xf32> -> vector<128x256xf32>
    %c0_55 = arith.constant 0 : index
    %c0_56 = arith.constant 0 : index
    %c1_57 = arith.constant 1 : index
    %c0_58 = arith.constant 0 : index
    %63 = vector.load %arg5[%c0_55, %c0_56, %c1_57, %c0_58] : memref<2x4x18x256xf32, #tpu.memory_space<vmem>>, vector<2x4x16x256xf32>
    %64 = vector.shape_cast %63 : vector<2x4x16x256xf32> to vector<128x256xf32>
    %65 = arith.truncf %64 : vector<128x256xf32> to vector<128x256xbf16>
    %c1_59 = arith.constant 1 : index
    %c0_60 = arith.constant 0 : index
    %c0_61 = arith.constant 0 : index
    %66 = vector.load %arg3[%c1_59, %c0_60, %c0_61] : memref<3x256x256xbf16, #tpu.memory_space<vmem>>, vector<1x256x256xbf16>
    %67 = vector.shape_cast %66 : vector<1x256x256xbf16> to vector<256x256xbf16>
    %cst_62 = arith.constant dense<0.000000e+00> : vector<128x256xf32>
    %68 = tpu.matmul %65, %67, %cst_62 {dimension_numbers = #tpu.dot_dimension_numbers<[1], [0], [0], [1], [0, 0, 1, 1], [], []>} : vector<128x256xbf16>, vector<256x256xbf16>, vector<128x256xf32> -> vector<128x256xf32>
    %69 = arith.addf %62, %68 : vector<128x256xf32>
    %c0_63 = arith.constant 0 : index
    %c0_64 = arith.constant 0 : index
    %c2_65 = arith.constant 2 : index
    %c0_66 = arith.constant 0 : index
    %70 = vector.load %arg5[%c0_63, %c0_64, %c2_65, %c0_66] : memref<2x4x18x256xf32, #tpu.memory_space<vmem>>, vector<2x4x16x256xf32>
    %71 = vector.shape_cast %70 : vector<2x4x16x256xf32> to vector<128x256xf32>
    %72 = arith.truncf %71 : vector<128x256xf32> to vector<128x256xbf16>
    %c2_67 = arith.constant 2 : index
    %c0_68 = arith.constant 0 : index
    %c0_69 = arith.constant 0 : index
    %73 = vector.load %arg3[%c2_67, %c0_68, %c0_69] : memref<3x256x256xbf16, #tpu.memory_space<vmem>>, vector<1x256x256xbf16>
    %74 = vector.shape_cast %73 : vector<1x256x256xbf16> to vector<256x256xbf16>
    %cst_70 = arith.constant dense<0.000000e+00> : vector<128x256xf32>
    %75 = tpu.matmul %72, %74, %cst_70 {dimension_numbers = #tpu.dot_dimension_numbers<[1], [0], [0], [1], [0, 0, 1, 1], [], []>} : vector<128x256xbf16>, vector<256x256xbf16>, vector<128x256xf32> -> vector<128x256xf32>
    %76 = arith.addf %69, %75 : vector<128x256xf32>
    %77 = vector.shape_cast %76 : vector<128x256xf32> to vector<2x64x256xf32>
    %cst_71 = arith.constant dense<0.000000e+00> : vector<2x256xf32>
    %78 = vector.multi_reduction <add>, %77, %cst_71 [1] : vector<2x64x256xf32> to vector<2x256xf32>
    %79 = vector.shape_cast %78 : vector<2x256xf32> to vector<2x1x256xf32>
    %cst_72 = arith.constant 6.400000e+01 : f32
    %80 = vector.broadcast %cst_72 : f32 to vector<2x1x256xf32>
    %81 = arith.divf %79, %80 : vector<2x1x256xf32>
    %82 = arith.mulf %77, %77 : vector<2x64x256xf32>
    %cst_73 = arith.constant dense<0.000000e+00> : vector<2x256xf32>
    %83 = vector.multi_reduction <add>, %82, %cst_73 [1] : vector<2x64x256xf32> to vector<2x256xf32>
    %84 = vector.shape_cast %83 : vector<2x256xf32> to vector<2x1x256xf32>
    %cst_74 = arith.constant 6.400000e+01 : f32
    %85 = vector.broadcast %cst_74 : f32 to vector<2x1x256xf32>
    %86 = arith.divf %84, %85 : vector<2x1x256xf32>
    %87 = arith.mulf %81, %81 : vector<2x1x256xf32>
    %88 = arith.subf %86, %87 : vector<2x1x256xf32>
    %cst_75 = arith.constant 0.000000e+00 : f32
    %89 = vector.broadcast %cst_75 : f32 to vector<2x1x256xf32>
    %90 = arith.maximumf %88, %89 : vector<2x1x256xf32>
    %91 = vector.broadcast %81 : vector<2x1x256xf32> to vector<2x64x256xf32>
    %92 = arith.subf %77, %91 : vector<2x64x256xf32>
    %cst_76 = arith.constant 9.99999974E-6 : f32
    %93 = vector.broadcast %cst_76 : f32 to vector<2x1x256xf32>
    %94 = arith.addf %90, %93 : vector<2x1x256xf32>
    %95 = math.rsqrt %94 : vector<2x1x256xf32>
    %96 = vector.broadcast %95 : vector<2x1x256xf32> to vector<2x64x256xf32>
    %97 = arith.mulf %92, %96 : vector<2x64x256xf32>
    %98 = vector.shape_cast %97 : vector<2x64x256xf32> to vector<128x256xf32>
    %99 = vector.shape_cast %98 : vector<128x256xf32> to vector<2x4x16x256xf32>
    %100 = arith.addf %99, %0 : vector<2x4x16x256xf32>
    %c0_77 = arith.constant 0 : index
    %c0_78 = arith.constant 0 : index
    %c0_79 = arith.constant 0 : index
    %c0_80 = arith.constant 0 : index
    %101 = vector.load %arg4[%c0_77, %c0_78, %c0_79, %c0_80] : memref<2x4x16x256xf32, #tpu.memory_space<vmem>>, vector<2x4x16x256xf32>
    tpu.vector_store %arg4[%c0_77, %c0_78, %c0_79, %c0_80], %100 {strides = array<i32>} : memref<2x4x16x256xf32, #tpu.memory_space<vmem>>, vector<2x4x16x256xf32>,
    return
  }
  func.func @transform_0(%arg0: i32) -> (i32, i32, i32, i32) {
    %c0_i32 = arith.constant 0 : i32
    %c0_i32_0 = arith.constant 0 : i32
    %c0_i32_1 = arith.constant 0 : i32
    %c0_i32_2 = arith.constant 0 : i32
    return %arg0, %c0_i32, %c0_i32_0, %c0_i32_1 : i32, i32, i32, i32
  }
  func.func @transform_1(%arg0: i32) -> (i32, i32, i32) {
    %c0_i32 = arith.constant 0 : i32
    %c0_i32_0 = arith.constant 0 : i32
    %c0_i32_1 = arith.constant 0 : i32
    %c0_i32_2 = arith.constant 0 : i32
    return %c0_i32, %c0_i32_0, %c0_i32_1 : i32, i32, i32
  }
  func.func @transform_2(%arg0: i32) -> (i32, i32, i32) {
    %c0_i32 = arith.constant 0 : i32
    %c0_i32_0 = arith.constant 0 : i32
    %c0_i32_1 = arith.constant 0 : i32
    %c0_i32_2 = arith.constant 0 : i32
    return %c0_i32, %c0_i32_0, %c0_i32_1 : i32, i32, i32
  }
  func.func @transform_3(%arg0: i32) -> (i32, i32, i32, i32) {
    %c0_i32 = arith.constant 0 : i32
    %c0_i32_0 = arith.constant 0 : i32
    %c0_i32_1 = arith.constant 0 : i32
    %c0_i32_2 = arith.constant 0 : i32
    return %arg0, %c0_i32, %c0_i32_0, %c0_i32_1 : i32, i32, i32, i32
  }
}

</mosaic_0001>

<llo_original>
// kernel: residual_block.1
$region0: #{residual_block.1}
  #allocation0 [shape = 'u32[]', space=smem, size = 0x4, offset = 0x4, fixed_abs, tag = 'smem constant byte address 0x4 - core index']
  #allocation1 [shape = 'u32[144,128]{1,0:T(1,128)}', space=vmem, size = 0x12000, scoped, tag = 'internal scratch']
  #allocation2 [shape = 'f32[2,4,18,256]{3,2,1,0:T(8,128)}', space=vmem, size = 0x30000, scoped, tag = 'scratch operand']
  %s0 = inlined_call_operand.vmem [shape: f32[2,4,16,256], index: 0, kind: input, shape index: {}]
  %s1 = inlined_call_operand.vmem [shape: bf16[3,256,512], index: 1, kind: input, shape index: {}]
  %s2 = inlined_call_operand.vmem [shape: bf16[3,256,256], index: 2, kind: input, shape index: {}]
  %s3 = inlined_call_operand.hbm [shape: f32[2,4,16,256], index: 3, kind: output, shape index: {}]
  %s4 = sld [smem:[#allocation0]]
  $region22: #{residual_block.1} parent=0
    _
  %s6 = ssub.s32 1, %s4
  %s7 = scalar_select 0, %s6, %s4
  $region1: #{residual_block.1} parent=0
    #allocation3 [shape = 'u8[131072]{0}', space=vmem, size = 0x20000, scoped, tag = 'output window, operand 0, single buffered']
    #allocation4 [shape = 's32[1]{0}', space=sflag, size = 0x4, scoped, tag = 'scoped memory for residual_block.1']
    %8 = vsyncpa [#allocation4], 0
    // Predicated region
    $region2: #{residual_block.1} parent=1 // pred_check
      _
    $region3: #{residual_block.1} parent=1 // pred_check_branch
      %10 = sbr.rel (0) target = $region5
    $region4: #{residual_block.1} parent=1 // pred_region
      _
    $region5: #{residual_block.1} parent=1 // pred_fallthru
      _
    // Predicated region
    $region6: #{residual_block.1} parent=1 // pred_check
      _
    $region7: #{residual_block.1} parent=1 // pred_check_branch
      %12 = sbr.rel (0) target = $region9
    $region8: #{residual_block.1} parent=1 // pred_region
      _
    $region9: #{residual_block.1} parent=1 // pred_fallthru
      _
    // Predicated region
    $region10: #{residual_block.1} parent=1 // pred_check
      _
    $region11: #{residual_block.1} parent=1 // pred_check_branch
      %14 = sbr.rel (0) target = $region13
    $region12: #{residual_block.1} parent=1 // pred_region
      _
    $region13: #{residual_block.1} parent=1 // pred_fallthru
      _
    %v15 = vld [vmem:[%s0] sm:$0xff]
    %v16 = vld [vmem:[%s0 + $0x8] sm:$0xff]
    %v17 = vld [vmem:[%s0 + $0x10] sm:$0xff]
    %v18 = vld [vmem:[%s0 + $0x18] sm:$0xff]
    %v19 = vld [vmem:[%s0 + $0x20] sm:$0xff]
    %v20 = vld [vmem:[%s0 + $0x28] sm:$0xff]
    %v21 = vld [vmem:[%s0 + $0x30] sm:$0xff]
    %v22 = vld [vmem:[%s0 + $0x38] sm:$0xff]
    %v23 = vld [vmem:[%s0 + $0x40] sm:$0xff]
    %v24 = vld [vmem:[%s0 + $0x48] sm:$0xff]
    %v25 = vld [vmem:[%s0 + $0x50] sm:$0xff]
    %v26 = vld [vmem:[%s0 + $0x58] sm:$0xff]
    %v27 = vld [vmem:[%s0 + $0x60] sm:$0xff]
    %v28 = vld [vmem:[%s0 + $0x68] sm:$0xff]
    %v29 = vld [vmem:[%s0 + $0x70] sm:$0xff]
    %v30 = vld [vmem:[%s0 + $0x78] sm:$0xff]
    %v31 = vld [vmem:[%s0 + $0x80] sm:$0xff]
    %v32 = vld [vmem:[%s0 + $0x88] sm:$0xff]
    %v33 = vld [vmem:[%s0 + $0x90] sm:$0xff]
    %v34 = vld [vmem:[%s0 + $0x98] sm:$0xff]
    %v35 = vld [vmem:[%s0 + $0xa0] sm:$0xff]
    %v36 = vld [vmem:[%s0 + $0xa8] sm:$0xff]
    %v37 = vld [vmem:[%s0 + $0xb0] sm:$0xff]
    %v38 = vld [vmem:[%s0 + $0xb8] sm:$0xff]
    %v39 = vld [vmem:[%s0 + $0xc0] sm:$0xff]
    %v40 = vld [vmem:[%s0 + $0xc8] sm:$0xff]
    %v41 = vld [vmem:[%s0 + $0xd0] sm:$0xff]
    %v42 = vld [vmem:[%s0 + $0xd8] sm:$0xff]
    %v43 = vld [vmem:[%s0 + $0xe0] sm:$0xff]
    %v44 = vld [vmem:[%s0 + $0xe8] sm:$0xff]
    %v45 = vld [vmem:[%s0 + $0xf0] sm:$0xff]
    %v46 = vld [vmem:[%s0 + $0xf8] sm:$0xff]
    %v47 = vlaneseq
    %vm48 = vcmp.ge.s32.totalorder %v47, 0
    %vm49 = vcmp.lt.s32.totalorder %v47, 256
    %vm50 = vmand %vm48, %vm49
    %51 = vst.msk [vmem:[#allocation2] ss:$8 sm:$0x3] %vm50, 0.0
    %52 = vst.msk [vmem:[#allocation2] ss:$8 sm:$0x0] %vm50, 0.0
    %s53 = scalar_lea.vmem [#allocation2], 48
    %54 = vst.msk [vmem:[%s53] ss:$8 sm:$0x3] %vm50, 0.0
    %55 = vst.msk [vmem:[%s53] ss:$8 sm:$0x0] %vm50, 0.0
    %s56 = scalar_lea.vmem [#allocation2], 96
    %57 = vst.msk [vmem:[%s56] ss:$8 sm:$0x3] %vm50, 0.0
    %58 = vst.msk [vmem:[%s56] ss:$8 sm:$0x0] %vm50, 0.0
    %s59 = scalar_lea.vmem [#allocation2], 144
    %60 = vst.msk [vmem:[%s59] ss:$8 sm:$0x3] %vm50, 0.0
    %61 = vst.msk [vmem:[%s59] ss:$8 sm:$0x0] %vm50, 0.0
    %s62 = scalar_lea.vmem [#allocation2], 192
    %63 = vst.msk [vmem:[%s62] ss:$8 sm:$0x3] %vm50, 0.0
    %64 = vst.msk [vmem:[%s62] ss:$8 sm:$0x0] %vm50, 0.0
    %s65 = scalar_lea.vmem [#allocation2], 240
    %66 = vst.msk [vmem:[%s65] ss:$8 sm:$0x3] %vm50, 0.0
    %67 = vst.msk [vmem:[%s65] ss:$8 sm:$0x0] %vm50, 0.0
    %s68 = scalar_lea.vmem [#allocation2], 288
    %69 = vst.msk [vmem:[%s68] ss:$8 sm:$0x3] %vm50, 0.0
    %70 = vst.msk [vmem:[%s68] ss:$8 sm:$0x0] %vm50, 0.0
    %s71 = scalar_lea.vmem [#allocation2], 336
    %72 = vst.msk [vmem:[%s71] ss:$8 sm:$0x3] %vm50, 0.0
    %73 = vst.msk [vmem:[%s71] ss:$8 sm:$0x0] %vm50, 0.0
    %s74 = scalar_lea.vmem [#allocation2], 33
    %75 = vst.msk [vmem:[%s74] ss:$8 sm:$0x3] %vm50, 0.0
    %76 = vst.msk [vmem:[%s74] ss:$8 sm:$0x0] %vm50, 0.0
    %s77 = scalar_lea.vmem [#allocation2], 81
    %78 = vst.msk [vmem:[%s77] ss:$8 sm:$0x3] %vm50, 0.0
    %79 = vst.msk [vmem:[%s77] ss:$8 sm:$0x0] %vm50, 0.0
    %s80 = scalar_lea.vmem [#allocation2], 129
    %81 = vst.msk [vmem:[%s80] ss:$8 sm:$0x3] %vm50, 0.0
    %82 = vst.msk [vmem:[%s80] ss:$8 sm:$0x0] %vm50, 0.0
    %s83 = scalar_lea.vmem [#allocation2], 177
    %84 = vst.msk [vmem:[%s83] ss:$8 sm:$0x3] %vm50, 0.0
    %85 = vst.msk [vmem:[%s83] ss:$8 sm:$0x0] %vm50, 0.0
    %s86 = scalar_lea.vmem [#allocation2], 225
    %87 = vst.msk [vmem:[%s86] ss:$8 sm:$0x3] %vm50, 0.0
    %88 = vst.msk [vmem:[%s86] ss:$8 sm:$0x0] %vm50, 0.0
    %s89 = scalar_lea.vmem [#allocation2], 273
    %90 = vst.msk [vmem:[%s89] ss:$8 sm:$0x3] %vm50, 0.0
    %91 = vst.msk [vmem:[%s89] ss:$8 sm:$0x0] %vm50, 0.0
    %s92 = scalar_lea.vmem [#allocation2], 321
    %93 = vst.msk [vmem:[%s92] ss:$8 sm:$0x3] %vm50, 0.0
    %94 = vst.msk [vmem:[%s92] ss:$8 sm:$0x0] %vm50, 0.0
    %s95 = scalar_lea.vmem [#allocation2], 369
    %96 = vst.msk [vmem:[%s95] ss:$8 sm:$0x3] %vm50, 0.0
    %97 = vst.msk [vmem:[%s95] ss:$8 sm:$0x0] %vm50, 0.0
    %vm130 = vcmask 1040384
    %v131 = vrot.slane %v15, 7
    %v132 = vrot.slane %v16, 7
    %v133 = vrot.slane %v17, 7
    %v134 = vsel %vm130, %v131, %v133
    %v135 = vrot.slane %v18, 7
    %v136 = vsel %vm130, %v132, %v135
    %v137 = vrot.slane %v19, 7
    %v138 = vrot.slane %v20, 7
    %v139 = vrot.slane %v21, 7
    %v140 = vsel %vm130, %v137, %v139
    %v141 = vrot.slane %v22, 7
    %v142 = vsel %vm130, %v138, %v141
    %v143 = vrot.slane %v23, 7
    %v144 = vrot.slane %v24, 7
    %v145 = vrot.slane %v25, 7
    %v146 = vsel %vm130, %v143, %v145
    %v147 = vrot.slane %v26, 7
    %v148 = vsel %vm130, %v144, %v147
    %v149 = vrot.slane %v27, 7
    %v150 = vrot.slane %v28, 7
    %v151 = vrot.slane %v29, 7
    %v152 = vsel %vm130, %v149, %v151
    %v153 = vrot.slane %v30, 7
    %v154 = vsel %vm130, %v150, %v153
    %v155 = vrot.slane %v31, 7
    %v156 = vrot.slane %v32, 7
    %v157 = vrot.slane %v33, 7
    %v158 = vsel %vm130, %v155, %v157
    %v159 = vrot.slane %v34, 7
    %v160 = vsel %vm130, %v156, %v159
    %v161 = vrot.slane %v35, 7
    %v162 = vrot.slane %v36, 7
    %v163 = vrot.slane %v37, 7
    %v164 = vsel %vm130, %v161, %v163
    %v165 = vrot.slane %v38, 7
    %v166 = vsel %vm130, %v162, %v165
    %v167 = vrot.slane %v39, 7
    %v168 = vrot.slane %v40, 7
    %v169 = vrot.slane %v41, 7
    %v170 = vsel %vm130, %v167, %v169
    %v171 = vrot.slane %v42, 7
    %v172 = vsel %vm130, %v168, %v171
    %v173 = vrot.slane %v43, 7
    %v174 = vrot.slane %v44, 7
    %v175 = vrot.slane %v45, 7
    %v176 = vsel %vm130, %v173, %v175
    %v177 = vrot.slane %v46, 7
    %v178 = vsel %vm130, %v174, %v177
    %227 = vst [vmem:[#allocation2] sm:$0xfe] %v131
    %228 = vst [vmem:[#allocation2 + $0x8] sm:$0xfe] %v132
    %229 = vst [vmem:[#allocation2 + $0x10] sm:$0xff] %v134
    %230 = vst [vmem:[#allocation2 + $0x18] sm:$0xff] %v136
    %231 = vst [vmem:[#allocation2 + $0x20] sm:$0x1] %v133
    %232 = vst [vmem:[#allocation2 + $0x28] sm:$0x1] %v135
    %233 = vst [vmem:[#allocation2 + $0x30] sm:$0xfe] %v137
    %234 = vst [vmem:[#allocation2 + $0x38] sm:$0xfe] %v138
    %235 = vst [vmem:[#allocation2 + $0x40] sm:$0xff] %v140
    %236 = vst [vmem:[#allocation2 + $0x48] sm:$0xff] %v142
    %237 = vst [vmem:[#allocation2 + $0x50] sm:$0x1] %v139
    %238 = vst [vmem:[#allocation2 + $0x58] sm:$0x1] %v141
    %239 = vst [vmem:[#allocation2 + $0x60] sm:$0xfe] %v143
    %240 = vst [vmem:[#allocation2 + $0x68] sm:$0xfe] %v144
    %241 = vst [vmem:[#allocation2 + $0x70] sm:$0xff] %v146
    %242 = vst [vmem:[#allocation2 + $0x78] sm:$0xff] %v148
    %243 = vst [vmem:[#allocation2 + $0x80] sm:$0x1] %v145
    %244 = vst [vmem:[#allocation2 + $0x88] sm:$0x1] %v147
    %245 = vst [vmem:[#allocation2 + $0x90] sm:$0xfe] %v149
    %246 = vst [vmem:[#allocation2 + $0x98] sm:$0xfe] %v150
    %247 = vst [vmem:[#allocation2 + $0xa0] sm:$0xff] %v152
    %248 = vst [vmem:[#allocation2 + $0xa8] sm:$0xff] %v154
    %249 = vst [vmem:[#allocation2 + $0xb0] sm:$0x1] %v151
    %250 = vst [vmem:[#allocation2 + $0xb8] sm:$0x1] %v153
    %251 = vst [vmem:[#allocation2 + $0xc0] sm:$0xfe] %v155
    %252 = vst [vmem:[#allocation2 + $0xc8] sm:$0xfe] %v156
    %253 = vst [vmem:[#allocation2 + $0xd0] sm:$0xff] %v158
    %254 = vst [vmem:[#allocation2 + $0xd8] sm:$0xff] %v160
    %255 = vst [vmem:[#allocation2 + $0xe0] sm:$0x1] %v157
    %256 = vst [vmem:[#allocation2 + $0xe8] sm:$0x1] %v159
    %257 = vst [vmem:[#allocation2 + $0xf0] sm:$0xfe] %v161
    %258 = vst [vmem:[#allocation2 + $0xf8] sm:$0xfe] %v162
    %259 = vst [vmem:[#allocation2 + $0x100] sm:$0xff] %v164
    %260 = vst [vmem:[#allocation2 + $0x108] sm:$0xff] %v166
    %261 = vst [vmem:[#allocation2 + $0x110] sm:$0x1] %v163
    %262 = vst [vmem:[#allocation2 + $0x118] sm:$0x1] %v165
    %263 = vst [vmem:[#allocation2 + $0x120] sm:$0xfe] %v167
    %264 = vst [vmem:[#allocation2 + $0x128] sm:$0xfe] %v168
    %265 = vst [vmem:[#allocation2 + $0x130] sm:$0xff] %v170
    %266 = vst [vmem:[#allocation2 + $0x138] sm:$0xff] %v172
    %267 = vst [vmem:[#allocation2 + $0x140] sm:$0x1] %v169
    %268 = vst [vmem:[#allocation2 + $0x148] sm:$0x1] %v171
    %269 = vst [vmem:[#allocation2 + $0x150] sm:$0xfe] %v173
    %270 = vst [vmem:[#allocation2 + $0x158] sm:$0xfe] %v174
    %271 = vst [vmem:[#allocation2 + $0x160] sm:$0xff] %v176
    %272 = vst [vmem:[#allocation2 + $0x168] sm:$0xff] %v178
    %273 = vst [vmem:[#allocation2 + $0x170] sm:$0x1] %v175
    %274 = vst [vmem:[#allocation2 + $0x178] sm:$0x1] %v177
    %v275 = vld [vmem:[#allocation2] sm:$0xff]
    %v276 = vld [vmem:[#allocation2 + $0x8] sm:$0xff]
    %v277 = vld [vmem:[#allocation2 + $0x10] sm:$0xff]
    %v278 = vld [vmem:[#allocation2 + $0x18] sm:$0xff]
    %v279 = vld [vmem:[#allocation2 + $0x30] sm:$0xff]
    %v280 = vld [vmem:[#allocation2 + $0x38] sm:$0xff]
    %v281 = vld [vmem:[#allocation2 + $0x40] sm:$0xff]
    %v282 = vld [vmem:[#allocation2 + $0x48] sm:$0xff]
    %v283 = vld [vmem:[#allocation2 + $0x60] sm:$0xff]
    %v284 = vld [vmem:[#allocation2 + $0x68] sm:$0xff]
    %v285 = vld [vmem:[#allocation2 + $0x70] sm:$0xff]
    %v286 = vld [vmem:[#allocation2 + $0x78] sm:$0xff]
    %v287 = vld [vmem:[#allocation2 + $0x90] sm:$0xff]
    %v288 = vld [vmem:[#allocation2 + $0x98] sm:$0xff]
    %v289 = vld [vmem:[#allocation2 + $0xa0] sm:$0xff]
    %v290 = vld [vmem:[#allocation2 + $0xa8] sm:$0xff]
    %v291 = vld [vmem:[#allocation2 + $0xc0] sm:$0xff]
    %v292 = vld [vmem:[#allocation2 + $0xc8] sm:$0xff]
    %v293 = vld [vmem:[#allocation2 + $0xd0] sm:$0xff]
    %v294 = vld [vmem:[#allocation2 + $0xd8] sm:$0xff]
    %v295 = vld [vmem:[#allocation2 + $0xf0] sm:$0xff]
    %v296 = vld [vmem:[#allocation2 + $0xf8] sm:$0xff]
    %v297 = vld [vmem:[#allocation2 + $0x100] sm:$0xff]
    %v298 = vld [vmem:[#allocation2 + $0x108] sm:$0xff]
    %v299 = vld [vmem:[#allocation2 + $0x120] sm:$0xff]
    %v300 = vld [vmem:[#allocation2 + $0x128] sm:$0xff]
    %v301 = vld [vmem:[#allocation2 + $0x130] sm:$0xff]
    %v302 = vld [vmem:[#allocation2 + $0x138] sm:$0xff]
    %v303 = vld [vmem:[#allocation2 + $0x150] sm:$0xff]
    %v304 = vld [vmem:[#allocation2 + $0x158] sm:$0xff]
    %v305 = vld [vmem:[#allocation2 + $0x160] sm:$0xff]
    %v306 = vld [vmem:[#allocation2 + $0x168] sm:$0xff]
    %v307 = vpack.c.bf16 %v277, %v275
    %v308 = vpack.c.bf16 %v278, %v276
    %v309 = vpack.c.bf16 %v281, %v279
    %v310 = vpack.c.bf16 %v282, %v280
    %v311 = vpack.c.bf16 %v285, %v283
    %v312 = vpack.c.bf16 %v286, %v284
    %v313 = vpack.c.bf16 %v289, %v287
    %v314 = vpack.c.bf16 %v290, %v288
    %v315 = vpack.c.bf16 %v293, %v291
    %v316 = vpack.c.bf16 %v294, %v292
    %v317 = vpack.c.bf16 %v297, %v295
    %v318 = vpack.c.bf16 %v298, %v296
    %v319 = vpack.c.bf16 %v301, %v299
    %v320 = vpack.c.bf16 %v302, %v300
    %v321 = vpack.c.bf16 %v305, %v303
    %v322 = vpack.c.bf16 %v306, %v304
    %v323 = vld [vmem:[%s1] sm:$0xff]
    %v324 = vld [vmem:[%s1 + $0x8] sm:$0xff]
    %v325 = vld [vmem:[%s1 + $0x10] sm:$0xff]
    %v326 = vld [vmem:[%s1 + $0x18] sm:$0xff]
    %v327 = vld [vmem:[%s1 + $0x20] sm:$0xff]
    %v328 = vld [vmem:[%s1 + $0x28] sm:$0xff]
    %v329 = vld [vmem:[%s1 + $0x30] sm:$0xff]
    %v330 = vld [vmem:[%s1 + $0x38] sm:$0xff]
    %v331 = vld [vmem:[%s1 + $0x40] sm:$0xff]
    %v332 = vld [vmem:[%s1 + $0x48] sm:$0xff]
    %v333 = vld [vmem:[%s1 + $0x50] sm:$0xff]
    %v334 = vld [vmem:[%s1 + $0x58] sm:$0xff]
    %v335 = vld [vmem:[%s1 + $0x60] sm:$0xff]
    %v336 = vld [vmem:[%s1 + $0x68] sm:$0xff]
    %v337 = vld [vmem:[%s1 + $0x70] sm:$0xff]
    %v338 = vld [vmem:[%s1 + $0x78] sm:$0xff]
    %v339 = vld [vmem:[%s1 + $0x80] sm:$0xff]
    %v340 = vld [vmem:[%s1 + $0x88] sm:$0xff]
    %v341 = vld [vmem:[%s1 + $0x90] sm:$0xff]
    %v342 = vld [vmem:[%s1 + $0x98] sm:$0xff]
    %v343 = vld [vmem:[%s1 + $0xa0] sm:$0xff]
    %v344 = vld [vmem:[%s1 + $0xa8] sm:$0xff]
    %v345 = vld [vmem:[%s1 + $0xb0] sm:$0xff]
    %v346 = vld [vmem:[%s1 + $0xb8] sm:$0xff]
    %v347 = vld [vmem:[%s1 + $0xc0] sm:$0xff]
    %v348 = vld [vmem:[%s1 + $0xc8] sm:$0xff]
    %v349 = vld [vmem:[%s1 + $0xd0] sm:$0xff]
    %v350 = vld [vmem:[%s1 + $0xd8] sm:$0xff]
    %v351 = vld [vmem:[%s1 + $0xe0] sm:$0xff]
    %v352 = vld [vmem:[%s1 + $0xe8] sm:$0xff]
    %v353 = vld [vmem:[%s1 + $0xf0] sm:$0xff]
    %v354 = vld [vmem:[%s1 + $0xf8] sm:$0xff]
    %v355 = vld [vmem:[%s1 + $0x100] sm:$0xff]
    %v356 = vld [vmem:[%s1 + $0x108] sm:$0xff]
    %v357 = vld [vmem:[%s1 + $0x110] sm:$0xff]
    %v358 = vld [vmem:[%s1 + $0x118] sm:$0xff]
    %v359 = vld [vmem:[%s1 + $0x120] sm:$0xff]
    %v360 = vld [vmem:[%s1 + $0x128] sm:$0xff]
    %v361 = vld [vmem:[%s1 + $0x130] sm:$0xff]
    %v362 = vld [vmem:[%s1 + $0x138] sm:$0xff]
    %v363 = vld [vmem:[%s1 + $0x140] sm:$0xff]
    %v364 = vld [vmem:[%s1 + $0x148] sm:$0xff]
    %v365 = vld [vmem:[%s1 + $0x150] sm:$0xff]
    %v366 = vld [vmem:[%s1 + $0x158] sm:$0xff]
    %v367 = vld [vmem:[%s1 + $0x160] sm:$0xff]
    %v368 = vld [vmem:[%s1 + $0x168] sm:$0xff]
    %v369 = vld [vmem:[%s1 + $0x170] sm:$0xff]
    %v370 = vld [vmem:[%s1 + $0x178] sm:$0xff]
    %v371 = vld [vmem:[%s1 + $0x180] sm:$0xff]
    %v372 = vld [vmem:[%s1 + $0x188] sm:$0xff]
    %v373 = vld [vmem:[%s1 + $0x190] sm:$0xff]
    %v374 = vld [vmem:[%s1 + $0x198] sm:$0xff]
    %v375 = vld [vmem:[%s1 + $0x1a0] sm:$0xff]
    %v376 = vld [vmem:[%s1 + $0x1a8] sm:$0xff]
    %v377 = vld [vmem:[%s1 + $0x1b0] sm:$0xff]
    %v378 = vld [vmem:[%s1 + $0x1b8] sm:$0xff]
    %v379 = vld [vmem:[%s1 + $0x1c0] sm:$0xff]
    %v380 = vld [vmem:[%s1 + $0x1c8] sm:$0xff]
    %v381 = vld [vmem:[%s1 + $0x1d0] sm:$0xff]
    %v382 = vld [vmem:[%s1 + $0x1d8] sm:$0xff]
    %v383 = vld [vmem:[%s1 + $0x1e0] sm:$0xff]
    %v384 = vld [vmem:[%s1 + $0x1e8] sm:$0xff]
    %v385 = vld [vmem:[%s1 + $0x1f0] sm:$0xff]
    %v386 = vld [vmem:[%s1 + $0x1f8] sm:$0xff]
    %v387 = vld [vmem:[#allocation2] sm:$0xfe]
    %v388 = vld [vmem:[#allocation2 + $0x8] sm:$0xfe]
    %v389 = vld [vmem:[#allocation2 + $0x20] sm:$0x1]
    %v390 = vld [vmem:[#allocation2 + $0x28] sm:$0x1]
    %v391 = vld [vmem:[#allocation2 + $0x30] sm:$0xfe]
    %v392 = vld [vmem:[#allocation2 + $0x38] sm:$0xfe]
    %v393 = vld [vmem:[#allocation2 + $0x50] sm:$0x1]
    %v394 = vld [vmem:[#allocation2 + $0x58] sm:$0x1]
    %v395 = vld [vmem:[#allocation2 + $0x60] sm:$0xfe]
    %v396 = vld [vmem:[#allocation2 + $0x68] sm:$0xfe]
    %v397 = vld [vmem:[#allocation2 + $0x80] sm:$0x1]
    %v398 = vld [vmem:[#allocation2 + $0x88] sm:$0x1]
    %v399 = vld [vmem:[#allocation2 + $0x90] sm:$0xfe]
    %v400 = vld [vmem:[#allocation2 + $0x98] sm:$0xfe]
    %v401 = vld [vmem:[#allocation2 + $0xb0] sm:$0x1]
    %v402 = vld [vmem:[#allocation2 + $0xb8] sm:$0x1]
    %v403 = vld [vmem:[#allocation2 + $0xc0] sm:$0xfe]
    %v404 = vld [vmem:[#allocation2 + $0xc8] sm:$0xfe]
    %v405 = vld [vmem:[#allocation2 + $0xe0] sm:$0x1]
    %v406 = vld [vmem:[#allocation2 + $0xe8] sm:$0x1]
    %v407 = vld [vmem:[#allocation2 + $0xf0] sm:$0xfe]
    %v408 = vld [vmem:[#allocation2 + $0xf8] sm:$0xfe]
    %v409 = vld [vmem:[#allocation2 + $0x110] sm:$0x1]
    %v410 = vld [vmem:[#allocation2 + $0x118] sm:$0x1]
    %v411 = vld [vmem:[#allocation2 + $0x120] sm:$0xfe]
    %v412 = vld [vmem:[#allocation2 + $0x128] sm:$0xfe]
    %v413 = vld [vmem:[#allocation2 + $0x140] sm:$0x1]
    %v414 = vld [vmem:[#allocation2 + $0x148] sm:$0x1]
    %v415 = vld [vmem:[#allocation2 + $0x150] sm:$0xfe]
    %v416 = vld [vmem:[#allocation2 + $0x158] sm:$0xfe]
    %v417 = vld [vmem:[#allocation2 + $0x170] sm:$0x1]
    %v418 = vld [vmem:[#allocation2 + $0x178] sm:$0x1]
    %vm467 = vcmask 1046528
    %v468 = vrot.slane %v387, 1
    %v469 = vrot.slane %v277, 1
    %v470 = vsel %vm467, %v468, %v469
    %v471 = vrot.slane %v388, 1
    %v472 = vrot.slane %v278, 1
    %v473 = vsel %vm467, %v471, %v472
    %v474 = vrot.slane %v389, 1
    %v475 = vsel %vm467, %v469, %v474
    %v476 = vrot.slane %v390, 1
    %v477 = vsel %vm467, %v472, %v476
    %v478 = vrot.slane %v391, 1
    %v479 = vrot.slane %v281, 1
    %v480 = vsel %vm467, %v478, %v479
    %v481 = vrot.slane %v392, 1
    %v482 = vrot.slane %v282, 1
    %v483 = vsel %vm467, %v481, %v482
    %v484 = vrot.slane %v393, 1
    %v485 = vsel %vm467, %v479, %v484
    %v486 = vrot.slane %v394, 1
    %v487 = vsel %vm467, %v482, %v486
    %v488 = vrot.slane %v395, 1
    %v489 = vrot.slane %v285, 1
    %v490 = vsel %vm467, %v488, %v489
    %v491 = vrot.slane %v396, 1
    %v492 = vrot.slane %v286, 1
    %v493 = vsel %vm467, %v491, %v492
    %v494 = vrot.slane %v397, 1
    %v495 = vsel %vm467, %v489, %v494
    %v496 = vrot.slane %v398, 1
    %v497 = vsel %vm467, %v492, %v496
    %v498 = vrot.slane %v399, 1
    %v499 = vrot.slane %v289, 1
    %v500 = vsel %vm467, %v498, %v499
    %v501 = vrot.slane %v400, 1
    %v502 = vrot.slane %v290, 1
    %v503 = vsel %vm467, %v501, %v502
    %v504 = vrot.slane %v401, 1
    %v505 = vsel %vm467, %v499, %v504
    %v506 = vrot.slane %v402, 1
    %v507 = vsel %vm467, %v502, %v506
    %v508 = vrot.slane %v403, 1
    %v509 = vrot.slane %v293, 1
    %v510 = vsel %vm467, %v508, %v509
    %v511 = vrot.slane %v404, 1
    %v512 = vrot.slane %v294, 1
    %v513 = vsel %vm467, %v511, %v512
    %v514 = vrot.slane %v405, 1
    %v515 = vsel %vm467, %v509, %v514
    %v516 = vrot.slane %v406, 1
    %v517 = vsel %vm467, %v512, %v516
    %v518 = vrot.slane %v407, 1
    %v519 = vrot.slane %v297, 1
    %v520 = vsel %vm467, %v518, %v519
    %v521 = vrot.slane %v408, 1
    %v522 = vrot.slane %v298, 1
    %v523 = vsel %vm467, %v521, %v522
    %v524 = vrot.slane %v409, 1
    %v525 = vsel %vm467, %v519, %v524
    %v526 = vrot.slane %v410, 1
    %v527 = vsel %vm467, %v522, %v526
    %v528 = vrot.slane %v411, 1
    %v529 = vrot.slane %v301, 1
    %v530 = vsel %vm467, %v528, %v529
    %v531 = vrot.slane %v412, 1
    %v532 = vrot.slane %v302, 1
    %v533 = vsel %vm467, %v531, %v532
    %v534 = vrot.slane %v413, 1
    %v535 = vsel %vm467, %v529, %v534
    %v536 = vrot.slane %v414, 1
    %v537 = vsel %vm467, %v532, %v536
    %v538 = vrot.slane %v415, 1
    %v539 = vrot.slane %v305, 1
    %v540 = vsel %vm467, %v538, %v539
    %v541 = vrot.slane %v416, 1
    %v542 = vrot.slane %v306, 1
    %v543 = vsel %vm467, %v541, %v542
    %v544 = vrot.slane %v417, 1
    %v545 = vsel %vm467, %v539, %v544
    %v546 = vrot.slane %v418, 1
    %v547 = vsel %vm467, %v542, %v546
    %v580 = vpack.c.bf16 %v475, %v470
    %v581 = vpack.c.bf16 %v477, %v473
    %v582 = vpack.c.bf16 %v485, %v480
    %v583 = vpack.c.bf16 %v487, %v483
    %v584 = vpack.c.bf16 %v495, %v490
    %v585 = vpack.c.bf16 %v497, %v493
    %v586 = vpack.c.bf16 %v505, %v500
    %v587 = vpack.c.bf16 %v507, %v503
    %v588 = vpack.c.bf16 %v515, %v510
    %v589 = vpack.c.bf16 %v517, %v513
    %v590 = vpack.c.bf16 %v525, %v520
    %v591 = vpack.c.bf16 %v527, %v523
    %v592 = vpack.c.bf16 %v535, %v530
    %v593 = vpack.c.bf16 %v537, %v533
    %v594 = vpack.c.bf16 %v545, %v540
    %v595 = vpack.c.bf16 %v547, %v543
    %s596 = scalar_lea.vmem %s1, 512
    %v597 = vld [vmem:[%s596] sm:$0xff]
    %v598 = vld [vmem:[%s596 + $0x8] sm:$0xff]
    %v599 = vld [vmem:[%s596 + $0x10] sm:$0xff]
    %v600 = vld [vmem:[%s596 + $0x18] sm:$0xff]
    %v601 = vld [vmem:[%s596 + $0x20] sm:$0xff]
    %v602 = vld [vmem:[%s596 + $0x28] sm:$0xff]
    %v603 = vld [vmem:[%s596 + $0x30] sm:$0xff]
    %v604 = vld [vmem:[%s596 + $0x38] sm:$0xff]
    %v605 = vld [vmem:[%s596 + $0x40] sm:$0xff]
    %v606 = vld [vmem:[%s596 + $0x48] sm:$0xff]
    %v607 = vld [vmem:[%s596 + $0x50] sm:$0xff]
    %v608 = vld [vmem:[%s596 + $0x58] sm:$0xff]
    %v609 = vld [vmem:[%s596 + $0x60] sm:$0xff]
    %v610 = vld [vmem:[%s596 + $0x68] sm:$0xff]
    %v611 = vld [vmem:[%s596 + $0x70] sm:$0xff]
    %v612 = vld [vmem:[%s596 + $0x78] sm:$0xff]
    %v613 = vld [vmem:[%s596 + $0x80] sm:$0xff]
    %v614 = vld [vmem:[%s596 + $0x88] sm:$0xff]
    %v615 = vld [vmem:[%s596 + $0x90] sm:$0xff]
    %v616 = vld [vmem:[%s596 + $0x98] sm:$0xff]
    %v617 = vld [vmem:[%s596 + $0xa0] sm:$0xff]
    %v618 = vld [vmem:[%s596 + $0xa8] sm:$0xff]
    %v619 = vld [vmem:[%s596 + $0xb0] sm:$0xff]
    %v620 = vld [vmem:[%s596 + $0xb8] sm:$0xff]
    %v621 = vld [vmem:[%s596 + $0xc0] sm:$0xff]
    %v622 = vld [vmem:[%s596 + $0xc8] sm:$0xff]
    %v623 = vld [vmem:[%s596 + $0xd0] sm:$0xff]
    %v624 = vld [vmem:[%s596 + $0xd8] sm:$0xff]
    %v625 = vld [vmem:[%s596 + $0xe0] sm:$0xff]
    %v626 = vld [vmem:[%s596 + $0xe8] sm:$0xff]
    %v627 = vld [vmem:[%s596 + $0xf0] sm:$0xff]
    %v628 = vld [vmem:[%s596 + $0xf8] sm:$0xff]
    %v629 = vld [vmem:[%s596 + $0x100] sm:$0xff]
    %v630 = vld [vmem:[%s596 + $0x108] sm:$0xff]
    %v631 = vld [vmem:[%s596 + $0x110] sm:$0xff]
    %v632 = vld [vmem:[%s596 + $0x118] sm:$0xff]
    %v633 = vld [vmem:[%s596 + $0x120] sm:$0xff]
    %v634 = vld [vmem:[%s596 + $0x128] sm:$0xff]
    %v635 = vld [vmem:[%s596 + $0x130] sm:$0xff]
    %v636 = vld [vmem:[%s596 + $0x138] sm:$0xff]
    %v637 = vld [vmem:[%s596 + $0x140] sm:$0xff]
    %v638 = vld [vmem:[%s596 + $0x148] sm:$0xff]
    %v639 = vld [vmem:[%s596 + $0x150] sm:$0xff]
    %v640 = vld [vmem:[%s596 + $0x158] sm:$0xff]
    %v641 = vld [vmem:[%s596 + $0x160] sm:$0xff]
    %v642 = vld [vmem:[%s596 + $0x168] sm:$0xff]
    %v643 = vld [vmem:[%s596 + $0x170] sm:$0xff]
    %v644 = vld [vmem:[%s596 + $0x178] sm:$0xff]
    %v645 = vld [vmem:[%s596 + $0x180] sm:$0xff]
    %v646 = vld [vmem:[%s596 + $0x188] sm:$0xff]
    %v647 = vld [vmem:[%s596 + $0x190] sm:$0xff]
    %v648 = vld [vmem:[%s596 + $0x198] sm:$0xff]
    %v649 = vld [vmem:[%s596 + $0x1a0] sm:$0xff]
    %v650 = vld [vmem:[%s596 + $0x1a8] sm:$0xff]
    %v651 = vld [vmem:[%s596 + $0x1b0] sm:$0xff]
    %v652 = vld [vmem:[%s596 + $0x1b8] sm:$0xff]
    %v653 = vld [vmem:[%s596 + $0x1c0] sm:$0xff]
    %v654 = vld [vmem:[%s596 + $0x1c8] sm:$0xff]
    %v655 = vld [vmem:[%s596 + $0x1d0] sm:$0xff]
    %v656 = vld [vmem:[%s596 + $0x1d8] sm:$0xff]
    %v657 = vld [vmem:[%s596 + $0x1e0] sm:$0xff]
    %v658 = vld [vmem:[%s596 + $0x1e8] sm:$0xff]
    %v659 = vld [vmem:[%s596 + $0x1f0] sm:$0xff]
    %v660 = vld [vmem:[%s596 + $0x1f8] sm:$0xff]
    %v725 = vunpack.c.l.b16 %v597
    %v726 = vunpack.c.h.b16 %v597
    %v727 = vunpack.c.l.b16 %v598
    %v728 = vunpack.c.h.b16 %v598
    %v729 = vunpack.c.l.b16 %v599
    %v730 = vunpack.c.h.b16 %v599
    %v731 = vunpack.c.l.b16 %v600
    %v732 = vunpack.c.h.b16 %v600
    %v733 = vunpack.c.l.b16 %v601
    %v734 = vunpack.c.h.b16 %v601
    %v735 = vunpack.c.l.b16 %v602
    %v736 = vunpack.c.h.b16 %v602
    %v737 = vunpack.c.l.b16 %v603
    %v738 = vunpack.c.h.b16 %v603
    %v739 = vunpack.c.l.b16 %v604
    %v740 = vunpack.c.h.b16 %v604
    %v741 = vunpack.c.l.b16 %v605
    %v742 = vunpack.c.h.b16 %v605
    %v743 = vunpack.c.l.b16 %v606
    %v744 = vunpack.c.h.b16 %v606
    %v745 = vunpack.c.l.b16 %v607
    %v746 = vunpack.c.h.b16 %v607
    %v747 = vunpack.c.l.b16 %v608
    %v748 = vunpack.c.h.b16 %v608
    %v749 = vunpack.c.l.b16 %v609
    %v750 = vunpack.c.h.b16 %v609
    %v751 = vunpack.c.l.b16 %v610
    %v752 = vunpack.c.h.b16 %v610
    %v753 = vunpack.c.l.b16 %v611
    %v754 = vunpack.c.h.b16 %v611
    %v755 = vunpack.c.l.b16 %v612
    %v756 = vunpack.c.h.b16 %v612
    %v757 = vunpack.c.l.b16 %v613
    %v758 = vunpack.c.h.b16 %v613
    %v759 = vunpack.c.l.b16 %v614
    %v760 = vunpack.c.h.b16 %v614
    %v761 = vunpack.c.l.b16 %v615
    %v762 = vunpack.c.h.b16 %v615
    %v763 = vunpack.c.l.b16 %v616
    %v764 = vunpack.c.h.b16 %v616
    %v765 = vunpack.c.l.b16 %v617
    %v766 = vunpack.c.h.b16 %v617
    %v767 = vunpack.c.l.b16 %v618
    %v768 = vunpack.c.h.b16 %v618
    %v769 = vunpack.c.l.b16 %v619
    %v770 = vunpack.c.h.b16 %v619
    %v771 = vunpack.c.l.b16 %v620
    %v772 = vunpack.c.h.b16 %v620
    %v773 = vunpack.c.l.b16 %v621
    %v774 = vunpack.c.h.b16 %v621
    %v775 = vunpack.c.l.b16 %v622
    %v776 = vunpack.c.h.b16 %v622
    %v777 = vunpack.c.l.b16 %v623
    %v778 = vunpack.c.h.b16 %v623
    %v779 = vunpack.c.l.b16 %v624
    %v780 = vunpack.c.h.b16 %v624
    %v781 = vunpack.c.l.b16 %v625
    %v782 = vunpack.c.h.b16 %v625
    %v783 = vunpack.c.l.b16 %v626
    %v784 = vunpack.c.h.b16 %v626
    %v785 = vunpack.c.l.b16 %v627
    %v786 = vunpack.c.h.b16 %v627
    %v787 = vunpack.c.l.b16 %v628
    %v788 = vunpack.c.h.b16 %v628
    %v789 = vunpack.c.l.b16 %v629
    %v790 = vunpack.c.h.b16 %v629
    %v791 = vunpack.c.l.b16 %v630
    %v792 = vunpack.c.h.b16 %v630
    %v793 = vunpack.c.l.b16 %v631
    %v794 = vunpack.c.h.b16 %v631
    %v795 = vunpack.c.l.b16 %v632
    %v796 = vunpack.c.h.b16 %v632
    %v797 = vunpack.c.l.b16 %v633
    %v798 = vunpack.c.h.b16 %v633
    %v799 = vunpack.c.l.b16 %v634
    %v800 = vunpack.c.h.b16 %v634
    %v801 = vunpack.c.l.b16 %v635
    %v802 = vunpack.c.h.b16 %v635
    %v803 = vunpack.c.l.b16 %v636
    %v804 = vunpack.c.h.b16 %v636
    %v805 = vunpack.c.l.b16 %v637
    %v806 = vunpack.c.h.b16 %v637
    %v807 = vunpack.c.l.b16 %v638
    %v808 = vunpack.c.h.b16 %v638
    %v809 = vunpack.c.l.b16 %v639
    %v810 = vunpack.c.h.b16 %v639
    %v811 = vunpack.c.l.b16 %v640
    %v812 = vunpack.c.h.b16 %v640
    %v813 = vunpack.c.l.b16 %v641
    %v814 = vunpack.c.h.b16 %v641
    %v815 = vunpack.c.l.b16 %v642
    %v816 = vunpack.c.h.b16 %v642
    %v817 = vunpack.c.l.b16 %v643
    %v818 = vunpack.c.h.b16 %v643
    %v819 = vunpack.c.l.b16 %v644
    %v820 = vunpack.c.h.b16 %v644
    %v821 = vunpack.c.l.b16 %v645
    %v822 = vunpack.c.h.b16 %v645
    %v823 = vunpack.c.l.b16 %v646
    %v824 = vunpack.c.h.b16 %v646
    %v825 = vunpack.c.l.b16 %v647
    %v826 = vunpack.c.h.b16 %v647
    %v827 = vunpack.c.l.b16 %v648
    %v828 = vunpack.c.h.b16 %v648
    %v829 = vunpack.c.l.b16 %v649
    %v830 = vunpack.c.h.b16 %v649
    %v831 = vunpack.c.l.b16 %v650
    %v832 = vunpack.c.h.b16 %v650
    %v833 = vunpack.c.l.b16 %v651
    %v834 = vunpack.c.h.b16 %v651
    %v835 = vunpack.c.l.b16 %v652
    %v836 = vunpack.c.h.b16 %v652
    %v837 = vunpack.c.l.b16 %v653
    %v838 = vunpack.c.h.b16 %v653
    %v839 = vunpack.c.l.b16 %v654
    %v840 = vunpack.c.h.b16 %v654
    %v841 = vunpack.c.l.b16 %v655
    %v842 = vunpack.c.h.b16 %v655
    %v843 = vunpack.c.l.b16 %v656
    %v844 = vunpack.c.h.b16 %v656
    %v845 = vunpack.c.l.b16 %v657
    %v846 = vunpack.c.h.b16 %v657
    %v847 = vunpack.c.l.b16 %v658
    %v848 = vunpack.c.h.b16 %v658
    %v849 = vunpack.c.l.b16 %v659
    %v850 = vunpack.c.h.b16 %v659
    %v851 = vunpack.c.l.b16 %v660
    %v852 = vunpack.c.h.b16 %v660
    %v853 = vpack.c.b16 %v729, %v725
    %v854 = vpack.c.b16 %v730, %v726
    %v855 = vpack.c.b16 %v731, %v727
    %v856 = vpack.c.b16 %v732, %v728
    %v857 = vpack.c.b16 %v737, %v733
    %v858 = vpack.c.b16 %v738, %v734
    %v859 = vpack.c.b16 %v739, %v735
    %v860 = vpack.c.b16 %v740, %v736
    %v861 = vpack.c.b16 %v745, %v741
    %v862 = vpack.c.b16 %v746, %v742
    %v863 = vpack.c.b16 %v747, %v743
    %v864 = vpack.c.b16 %v748, %v744
    %v865 = vpack.c.b16 %v753, %v749
    %v866 = vpack.c.b16 %v754, %v750
    %v867 = vpack.c.b16 %v755, %v751
    %v868 = vpack.c.b16 %v756, %v752
    %v869 = vpack.c.b16 %v761, %v757
    %v870 = vpack.c.b16 %v762, %v758
    %v871 = vpack.c.b16 %v763, %v759
    %v872 = vpack.c.b16 %v764, %v760
    %v873 = vpack.c.b16 %v769, %v765
    %v874 = vpack.c.b16 %v770, %v766
    %v875 = vpack.c.b16 %v771, %v767
    %v876 = vpack.c.b16 %v772, %v768
    %v877 = vpack.c.b16 %v777, %v773
    %v878 = vpack.c.b16 %v778, %v774
    %v879 = vpack.c.b16 %v779, %v775
    %v880 = vpack.c.b16 %v780, %v776
    %v881 = vpack.c.b16 %v785, %v781
    %v882 = vpack.c.b16 %v786, %v782
    %v883 = vpack.c.b16 %v787, %v783
    %v884 = vpack.c.b16 %v788, %v784
    %v885 = vpack.c.b16 %v793, %v789
    %v886 = vpack.c.b16 %v794, %v790
    %v887 = vpack.c.b16 %v795, %v791
    %v888 = vpack.c.b16 %v796, %v792
    %v889 = vpack.c.b16 %v801, %v797
    %v890 = vpack.c.b16 %v802, %v798
    %v891 = vpack.c.b16 %v803, %v799
    %v892 = vpack.c.b16 %v804, %v800
    %v893 = vpack.c.b16 %v809, %v805
    %v894 = vpack.c.b16 %v810, %v806
    %v895 = vpack.c.b16 %v811, %v807
    %v896 = vpack.c.b16 %v812, %v808
    %v897 = vpack.c.b16 %v817, %v813
    %v898 = vpack.c.b16 %v818, %v814
    %v899 = vpack.c.b16 %v819, %v815
    %v900 = vpack.c.b16 %v820, %v816
    %v901 = vpack.c.b16 %v825, %v821
    %v902 = vpack.c.b16 %v826, %v822
    %v903 = vpack.c.b16 %v827, %v823
    %v904 = vpack.c.b16 %v828, %v824
    %v905 = vpack.c.b16 %v833, %v829
    %v906 = vpack.c.b16 %v834, %v830
    %v907 = vpack.c.b16 %v835, %v831
    %v908 = vpack.c.b16 %v836, %v832
    %v909 = vpack.c.b16 %v841, %v837
    %v910 = vpack.c.b16 %v842, %v838
    %v911 = vpack.c.b16 %v843, %v839
    %v912 = vpack.c.b16 %v844, %v840
    %v913 = vpack.c.b16 %v849, %v845
    %v914 = vpack.c.b16 %v850, %v846
    %v915 = vpack.c.b16 %v851, %v847
    %v916 = vpack.c.b16 %v852, %v848
    %981 = vmatprep.subr.bf16.mxu0 %v854
    %982 = vmatpush1.bf16.msra.mxu0 %v853
    %983 = vmatprep.subr.bf16.mxu0 %v858
    %984 = vmatpush1.bf16.msra.mxu0 %v857
    %985 = vmatprep.subr.bf16.mxu0 %v862
    %986 = vmatpush1.bf16.msra.mxu0 %v861
    %987 = vmatprep.subr.bf16.mxu0 %v866
    %988 = vmatpush1.bf16.msra.mxu0 %v865
    %989 = vmatprep.subr.bf16.mxu0 %v870
    %990 = vmatpush1.bf16.msra.mxu0 %v869
    %991 = vmatprep.subr.bf16.mxu0 %v874
    %992 = vmatpush1.bf16.msra.mxu0 %v873
    %993 = vmatprep.subr.bf16.mxu0 %v878
    %994 = vmatpush1.bf16.msra.mxu0 %v877
    %995 = vmatprep.subr.bf16.mxu0 %v882
    %996 = vmatpush1.bf16.msra.mxu0 %v881
    %997 = vmatprep.subr.bf16.mxu0 %v886
    %998 = vmatpush1.bf16.msra.mxu0 %v885
    %999 = vmatprep.subr.bf16.mxu0 %v890
    %1000 = vmatpush1.bf16.msra.mxu0 %v889
    %1001 = vmatprep.subr.bf16.mxu0 %v894
    %1002 = vmatpush1.bf16.msra.mxu0 %v893
    %1003 = vmatprep.subr.bf16.mxu0 %v898
    %1004 = vmatpush1.bf16.msra.mxu0 %v897
    %1005 = vmatprep.subr.bf16.mxu0 %v902
    %1006 = vmatpush1.bf16.msra.mxu0 %v901
    %1007 = vmatprep.subr.bf16.mxu0 %v906
    %1008 = vmatpush1.bf16.msra.mxu0 %v905
    %1009 = vmatprep.subr.bf16.mxu0 %v910
    %1010 = vmatpush1.bf16.msra.mxu0 %v909
    %1011 = vmatprep.subr.bf16.mxu0 %v914
    %1012 = vmatpush1.bf16.msra.mxu0 %v913
    %1013 = vmatprep.mubr.bf16.mxu0 %v581
    %1014 = vmatmul.mubr.bf16.gmra.mrb[0].mxu0 %v580
    %v1015 = vpop.f32.mrb[0].mxu0
    %v1016 = vadd.f32 0.0, %v1015
    %v1017 = vpop.f32.mrb[0].mxu0
    %v1018 = vadd.f32 0.0, %v1017
    %v1019 = vpop.f32.mrb[0].mxu0
    %v1020 = vadd.f32 0.0, %v1019
    %v1021 = vpop.f32.mrb[0].mxu0
    %v1022 = vadd.f32 0.0, %v1021
    %1023 = vmatprep.mubr.bf16.mxu0 %v583
    %1024 = vmatmul.mubr.bf16.gmra.mrb[0].mxu0 %v582
    %v1025 = vpop.f32.mrb[0].mxu0
    %v1026 = vadd.f32 0.0, %v1025
    %v1027 = vpop.f32.mrb[0].mxu0
    %v1028 = vadd.f32 0.0, %v1027
    %v1029 = vpop.f32.mrb[0].mxu0
    %v1030 = vadd.f32 0.0, %v1029
    %v1031 = vpop.f32.mrb[0].mxu0
    %v1032 = vadd.f32 0.0, %v1031
    %1033 = vmatprep.mubr.bf16.mxu0 %v585
    %1034 = vmatmul.mubr.bf16.gmra.mrb[0].mxu0 %v584
    %v1035 = vpop.f32.mrb[0].mxu0
    %v1036 = vadd.f32 0.0, %v1035
    %v1037 = vpop.f32.mrb[0].mxu0
    %v1038 = vadd.f32 0.0, %v1037
    %v1039 = vpop.f32.mrb[0].mxu0
    %v1040 = vadd.f32 0.0, %v1039
    %v1041 = vpop.f32.mrb[0].mxu0
    %v1042 = vadd.f32 0.0, %v1041
    %1043 = vmatprep.mubr.bf16.mxu0 %v587
    %1044 = vmatmul.mubr.bf16.gmra.mrb[0].mxu0 %v586
    %v1045 = vpop.f32.mrb[0].mxu0
    %v1046 = vadd.f32 0.0, %v1045
    %v1047 = vpop.f32.mrb[0].mxu0
    %v1048 = vadd.f32 0.0, %v1047
    %v1049 = vpop.f32.mrb[0].mxu0
    %v1050 = vadd.f32 0.0, %v1049
    %v1051 = vpop.f32.mrb[0].mxu0
    %v1052 = vadd.f32 0.0, %v1051
    %1053 = vmatprep.mubr.bf16.mxu0 %v589
    %1054 = vmatmul.mubr.bf16.gmra.mrb[0].mxu0 %v588
    %v1055 = vpop.f32.mrb[0].mxu0
    %v1056 = vadd.f32 0.0, %v1055
    %v1057 = vpop.f32.mrb[0].mxu0
    %v1058 = vadd.f32 0.0, %v1057
    %v1059 = vpop.f32.mrb[0].mxu0
    %v1060 = vadd.f32 0.0, %v1059
    %v1061 = vpop.f32.mrb[0].mxu0
    %v1062 = vadd.f32 0.0, %v1061
    %1063 = vmatprep.mubr.bf16.mxu0 %v591
    %1064 = vmatmul.mubr.bf16.gmra.mrb[0].mxu0 %v590
    %v1065 = vpop.f32.mrb[0].mxu0
    %v1066 = vadd.f32 0.0, %v1065
    %v1067 = vpop.f32.mrb[0].mxu0
    %v1068 = vadd.f32 0.0, %v1067
    %v1069 = vpop.f32.mrb[0].mxu0
    %v1070 = vadd.f32 0.0, %v1069
    %v1071 = vpop.f32.mrb[0].mxu0
    %v1072 = vadd.f32 0.0, %v1071
    %1073 = vmatprep.mubr.bf16.mxu0 %v593
    %1074 = vmatmul.mubr.bf16.gmra.mrb[0].mxu0 %v592
    %v1075 = vpop.f32.mrb[0].mxu0
    %v1076 = vadd.f32 0.0, %v1075
    %v1077 = vpop.f32.mrb[0].mxu0
    %v1078 = vadd.f32 0.0, %v1077
    %v1079 = vpop.f32.mrb[0].mxu0
    %v1080 = vadd.f32 0.0, %v1079
    %v1081 = vpop.f32.mrb[0].mxu0
    %v1082 = vadd.f32 0.0, %v1081
    %1083 = vmatprep.mubr.bf16.mxu0 %v595
    %1084 = vmatmul.mubr.bf16.gmra.mrb[0].mxu0 %v594
    %v1085 = vpop.f32.mrb[0].mxu0
    %v1086 = vadd.f32 0.0, %v1085
    %v1087 = vpop.f32.mrb[0].mxu0
    %v1088 = vadd.f32 0.0, %v1087
    %v1089 = vpop.f32.mrb[0].mxu0
    %v1090 = vadd.f32 0.0, %v1089
    %v1091 = vpop.f32.mrb[0].mxu0
    %v1092 = vadd.f32 0.0, %v1091
    %1093 = vdwg.mxu0
    %1094 = vmatprep.subr.bf16.mxu0 %v856
    %1095 = vmatpush1.bf16.msra.mxu0 %v855
    %1096 = vmatprep.subr.bf16.mxu0 %v860
    %1097 = vmatpush1.bf16.msra.mxu0 %v859
    %1098 = vmatprep.subr.bf16.mxu0 %v864
    %1099 = vmatpush1.bf16.msra.mxu0 %v863
    %1100 = vmatprep.subr.bf16.mxu0 %v868
    %1101 = vmatpush1.bf16.msra.mxu0 %v867
    %1102 = vmatprep.subr.bf16.mxu0 %v872
    %1103 = vmatpush1.bf16.msra.mxu0 %v871
    %1104 = vmatprep.subr.bf16.mxu0 %v876
    %1105 = vmatpush1.bf16.msra.mxu0 %v875
    %1106 = vmatprep.subr.bf16.mxu0 %v880
    %1107 = vmatpush1.bf16.msra.mxu0 %v879
    %1108 = vmatprep.subr.bf16.mxu0 %v884
    %1109 = vmatpush1.bf16.msra.mxu0 %v883
    %1110 = vmatprep.subr.bf16.mxu0 %v888
    %1111 = vmatpush1.bf16.msra.mxu0 %v887
    %1112 = vmatprep.subr.bf16.mxu0 %v892
    %1113 = vmatpush1.bf16.msra.mxu0 %v891
    %1114 = vmatprep.subr.bf16.mxu0 %v896
    %1115 = vmatpush1.bf16.msra.mxu0 %v895
    %1116 = vmatprep.subr.bf16.mxu0 %v900
    %1117 = vmatpush1.bf16.msra.mxu0 %v899
    %1118 = vmatprep.subr.bf16.mxu0 %v904
    %1119 = vmatpush1.bf16.msra.mxu0 %v903
    %1120 = vmatprep.subr.bf16.mxu0 %v908
    %1121 = vmatpush1.bf16.msra.mxu0 %v907
    %1122 = vmatprep.subr.bf16.mxu0 %v912
    %1123 = vmatpush1.bf16.msra.mxu0 %v911
    %1124 = vmatprep.subr.bf16.mxu0 %v916
    %1125 = vmatpush1.bf16.msra.mxu0 %v915
    %1126 = vmatprep.mubr.bf16.mxu0 %v581
    %1127 = vmatmul.mubr.bf16.gmra.mrb[0].mxu0 %v580
    %v1128 = vpop.f32.mrb[0].mxu0
    %v1129 = vadd.f32 0.0, %v1128
    %v1130 = vpop.f32.mrb[0].mxu0
    %v1131 = vadd.f32 0.0, %v1130
    %v1132 = vpop.f32.mrb[0].mxu0
    %v1133 = vadd.f32 0.0, %v1132
    %v1134 = vpop.f32.mrb[0].mxu0
    %v1135 = vadd.f32 0.0, %v1134
    %1136 = vmatprep.mubr.bf16.mxu0 %v583
    %1137 = vmatmul.mubr.bf16.gmra.mrb[0].mxu0 %v582
    %v1138 = vpop.f32.mrb[0].mxu0
    %v1139 = vadd.f32 0.0, %v1138
    %v1140 = vpop.f32.mrb[0].mxu0
    %v1141 = vadd.f32 0.0, %v1140
    %v1142 = vpop.f32.mrb[0].mxu0
    %v1143 = vadd.f32 0.0, %v1142
    %v1144 = vpop.f32.mrb[0].mxu0
    %v1145 = vadd.f32 0.0, %v1144
    %1146 = vmatprep.mubr.bf16.mxu0 %v585
    %1147 = vmatmul.mubr.bf16.gmra.mrb[0].mxu0 %v584
    %v1148 = vpop.f32.mrb[0].mxu0
    %v1149 = vadd.f32 0.0, %v1148
    %v1150 = vpop.f32.mrb[0].mxu0
    %v1151 = vadd.f32 0.0, %v1150
    %v1152 = vpop.f32.mrb[0].mxu0
    %v1153 = vadd.f32 0.0, %v1152
    %v1154 = vpop.f32.mrb[0].mxu0
    %v1155 = vadd.f32 0.0, %v1154
    %1156 = vmatprep.mubr.bf16.mxu0 %v587
    %1157 = vmatmul.mubr.bf16.gmra.mrb[0].mxu0 %v586
    %v1158 = vpop.f32.mrb[0].mxu0
    %v1159 = vadd.f32 0.0, %v1158
    %v1160 = vpop.f32.mrb[0].mxu0
    %v1161 = vadd.f32 0.0, %v1160
    %v1162 = vpop.f32.mrb[0].mxu0
    %v1163 = vadd.f32 0.0, %v1162
    %v1164 = vpop.f32.mrb[0].mxu0
    %v1165 = vadd.f32 0.0, %v1164
    %1166 = vmatprep.mubr.bf16.mxu0 %v589
    %1167 = vmatmul.mubr.bf16.gmra.mrb[0].mxu0 %v588
    %v1168 = vpop.f32.mrb[0].mxu0
    %v1169 = vadd.f32 0.0, %v1168
    %v1170 = vpop.f32.mrb[0].mxu0
    %v1171 = vadd.f32 0.0, %v1170
    %v1172 = vpop.f32.mrb[0].mxu0
    %v1173 = vadd.f32 0.0, %v1172
    %v1174 = vpop.f32.mrb[0].mxu0
    %v1175 = vadd.f32 0.0, %v1174
    %1176 = vmatprep.mubr.bf16.mxu0 %v591
    %1177 = vmatmul.mubr.bf16.gmra.mrb[0].mxu0 %v590
    %v1178 = vpop.f32.mrb[0].mxu0
    %v1179 = vadd.f32 0.0, %v1178
    %v1180 = vpop.f32.mrb[0].mxu0
    %v1181 = vadd.f32 0.0, %v1180
    %v1182 = vpop.f32.mrb[0].mxu0
    %v1183 = vadd.f32 0.0, %v1182
    %v1184 = vpop.f32.mrb[0].mxu0
    %v1185 = vadd.f32 0.0, %v1184
    %1186 = vmatprep.mubr.bf16.mxu0 %v593
    %1187 = vmatmul.mubr.bf16.gmra.mrb[0].mxu0 %v592
    %v1188 = vpop.f32.mrb[0].mxu0
    %v1189 = vadd.f32 0.0, %v1188
    %v1190 = vpop.f32.mrb[0].mxu0
    %v1191 = vadd.f32 0.0, %v1190
    %v1192 = vpop.f32.mrb[0].mxu0
    %v1193 = vadd.f32 0.0, %v1192
    %v1194 = vpop.f32.mrb[0].mxu0
    %v1195 = vadd.f32 0.0, %v1194
    %1196 = vmatprep.mubr.bf16.mxu0 %v595
    %1197 = vmatmul.mubr.bf16.gmra.mrb[0].mxu0 %v594
    %v1198 = vpop.f32.mrb[0].mxu0
    %v1199 = vadd.f32 0.0, %v1198
    %v1200 = vpop.f32.mrb[0].mxu0
    %v1201 = vadd.f32 0.0, %v1200
    %v1202 = vpop.f32.mrb[0].mxu0
    %v1203 = vadd.f32 0.0, %v1202
    %v1204 = vpop.f32.mrb[0].mxu0
    %v1205 = vadd.f32 0.0, %v1204
    %1206 = vdwg.mxu0
    %v1271 = vunpack.c.l.b16 %v323
    %v1272 = vunpack.c.h.b16 %v323
    %v1273 = vunpack.c.l.b16 %v324
    %v1274 = vunpack.c.h.b16 %v324
    %v1275 = vunpack.c.l.b16 %v325
    %v1276 = vunpack.c.h.b16 %v325
    %v1277 = vunpack.c.l.b16 %v326
    %v1278 = vunpack.c.h.b16 %v326
    %v1279 = vunpack.c.l.b16 %v327
    %v1280 = vunpack.c.h.b16 %v327
    %v1281 = vunpack.c.l.b16 %v328
    %v1282 = vunpack.c.h.b16 %v328
    %v1283 = vunpack.c.l.b16 %v329
    %v1284 = vunpack.c.h.b16 %v329
    %v1285 = vunpack.c.l.b16 %v330
    %v1286 = vunpack.c.h.b16 %v330
    %v1287 = vunpack.c.l.b16 %v331
    %v1288 = vunpack.c.h.b16 %v331
    %v1289 = vunpack.c.l.b16 %v332
    %v1290 = vunpack.c.h.b16 %v332
    %v1291 = vunpack.c.l.b16 %v333
    %v1292 = vunpack.c.h.b16 %v333
    %v1293 = vunpack.c.l.b16 %v334
    %v1294 = vunpack.c.h.b16 %v334
    %v1295 = vunpack.c.l.b16 %v335
    %v1296 = vunpack.c.h.b16 %v335
    %v1297 = vunpack.c.l.b16 %v336
    %v1298 = vunpack.c.h.b16 %v336
    %v1299 = vunpack.c.l.b16 %v337
    %v1300 = vunpack.c.h.b16 %v337
    %v1301 = vunpack.c.l.b16 %v338
    %v1302 = vunpack.c.h.b16 %v338
    %v1303 = vunpack.c.l.b16 %v339
    %v1304 = vunpack.c.h.b16 %v339
    %v1305 = vunpack.c.l.b16 %v340
    %v1306 = vunpack.c.h.b16 %v340
    %v1307 = vunpack.c.l.b16 %v341
    %v1308 = vunpack.c.h.b16 %v341
    %v1309 = vunpack.c.l.b16 %v342
    %v1310 = vunpack.c.h.b16 %v342
    %v1311 = vunpack.c.l.b16 %v343
    %v1312 = vunpack.c.h.b16 %v343
    %v1313 = vunpack.c.l.b16 %v344
    %v1314 = vunpack.c.h.b16 %v344
    %v1315 = vunpack.c.l.b16 %v345
    %v1316 = vunpack.c.h.b16 %v345
    %v1317 = vunpack.c.l.b16 %v346
    %v1318 = vunpack.c.h.b16 %v346
    %v1319 = vunpack.c.l.b16 %v347
    %v1320 = vunpack.c.h.b16 %v347
    %v1321 = vunpack.c.l.b16 %v348
    %v1322 = vunpack.c.h.b16 %v348
    %v1323 = vunpack.c.l.b16 %v349
    %v1324 = vunpack.c.h.b16 %v349
    %v1325 = vunpack.c.l.b16 %v350
    %v1326 = vunpack.c.h.b16 %v350
    %v1327 = vunpack.c.l.b16 %v351
    %v1328 = vunpack.c.h.b16 %v351
    %v1329 = vunpack.c.l.b16 %v352
    %v1330 = vunpack.c.h.b16 %v352
    %v1331 = vunpack.c.l.b16 %v353
    %v1332 = vunpack.c.h.b16 %v353
    %v1333 = vunpack.c.l.b16 %v354
    %v1334 = vunpack.c.h.b16 %v354
    %v1335 = vunpack.c.l.b16 %v355
    %v1336 = vunpack.c.h.b16 %v355
    %v1337 = vunpack.c.l.b16 %v356
    %v1338 = vunpack.c.h.b16 %v356
    %v1339 = vunpack.c.l.b16 %v357
    %v1340 = vunpack.c.h.b16 %v357
    %v1341 = vunpack.c.l.b16 %v358
    %v1342 = vunpack.c.h.b16 %v358
    %v1343 = vunpack.c.l.b16 %v359
    %v1344 = vunpack.c.h.b16 %v359
    %v1345 = vunpack.c.l.b16 %v360
    %v1346 = vunpack.c.h.b16 %v360
    %v1347 = vunpack.c.l.b16 %v361
    %v1348 = vunpack.c.h.b16 %v361
    %v1349 = vunpack.c.l.b16 %v362
    %v1350 = vunpack.c.h.b16 %v362
    %v1351 = vunpack.c.l.b16 %v363
    %v1352 = vunpack.c.h.b16 %v363
    %v1353 = vunpack.c.l.b16 %v364
    %v1354 = vunpack.c.h.b16 %v364
    %v1355 = vunpack.c.l.b16 %v365
    %v1356 = vunpack.c.h.b16 %v365
    %v1357 = vunpack.c.l.b16 %v366
    %v1358 = vunpack.c.h.b16 %v366
    %v1359 = vunpack.c.l.b16 %v367
    %v1360 = vunpack.c.h.b16 %v367
    %v1361 = vunpack.c.l.b16 %v368
    %v1362 = vunpack.c.h.b16 %v368
    %v1363 = vunpack.c.l.b16 %v369
    %v1364 = vunpack.c.h.b16 %v369
    %v1365 = vunpack.c.l.b16 %v370
    %v1366 = vunpack.c.h.b16 %v370
    %v1367 = vunpack.c.l.b16 %v371
    %v1368 = vunpack.c.h.b16 %v371
    %v1369 = vunpack.c.l.b16 %v372
    %v1370 = vunpack.c.h.b16 %v372
    %v1371 = vunpack.c.l.b16 %v373
    %v1372 = vunpack.c.h.b16 %v373
    %v1373 = vunpack.c.l.b16 %v374
    %v1374 = vunpack.c.h.b16 %v374
    %v1375 = vunpack.c.l.b16 %v375
    %v1376 = vunpack.c.h.b16 %v375
    %v1377 = vunpack.c.l.b16 %v376
    %v1378 = vunpack.c.h.b16 %v376
    %v1379 = vunpack.c.l.b16 %v377
    %v1380 = vunpack.c.h.b16 %v377
    %v1381 = vunpack.c.l.b16 %v378
    %v1382 = vunpack.c.h.b16 %v378
    %v1383 = vunpack.c.l.b16 %v379
    %v1384 = vunpack.c.h.b16 %v379
    %v1385 = vunpack.c.l.b16 %v380
    %v1386 = vunpack.c.h.b16 %v380
    %v1387 = vunpack.c.l.b16 %v381
    %v1388 = vunpack.c.h.b16 %v381
    %v1389 = vunpack.c.l.b16 %v382
    %v1390 = vunpack.c.h.b16 %v382
    %v1391 = vunpack.c.l.b16 %v383
    %v1392 = vunpack.c.h.b16 %v383
    %v1393 = vunpack.c.l.b16 %v384
    %v1394 = vunpack.c.h.b16 %v384
    %v1395 = vunpack.c.l.b16 %v385
    %v1396 = vunpack.c.h.b16 %v385
    %v1397 = vunpack.c.l.b16 %v386
    %v1398 = vunpack.c.h.b16 %v386
    %v1399 = vpack.c.b16 %v1275, %v1271
    %v1400 = vpack.c.b16 %v1276, %v1272
    %v1401 = vpack.c.b16 %v1277, %v1273
    %v1402 = vpack.c.b16 %v1278, %v1274
    %v1403 = vpack.c.b16 %v1283, %v1279
    %v1404 = vpack.c.b16 %v1284, %v1280
    %v1405 = vpack.c.b16 %v1285, %v1281
    %v1406 = vpack.c.b16 %v1286, %v1282
    %v1407 = vpack.c.b16 %v1291, %v1287
    %v1408 = vpack.c.b16 %v1292, %v1288
    %v1409 = vpack.c.b16 %v1293, %v1289
    %v1410 = vpack.c.b16 %v1294, %v1290
    %v1411 = vpack.c.b16 %v1299, %v1295
    %v1412 = vpack.c.b16 %v1300, %v1296
    %v1413 = vpack.c.b16 %v1301, %v1297
    %v1414 = vpack.c.b16 %v1302, %v1298
    %v1415 = vpack.c.b16 %v1307, %v1303
    %v1416 = vpack.c.b16 %v1308, %v1304
    %v1417 = vpack.c.b16 %v1309, %v1305
    %v1418 = vpack.c.b16 %v1310, %v1306
    %v1419 = vpack.c.b16 %v1315, %v1311
    %v1420 = vpack.c.b16 %v1316, %v1312
    %v1421 = vpack.c.b16 %v1317, %v1313
    %v1422 = vpack.c.b16 %v1318, %v1314
    %v1423 = vpack.c.b16 %v1323, %v1319
    %v1424 = vpack.c.b16 %v1324, %v1320
    %v1425 = vpack.c.b16 %v1325, %v1321
    %v1426 = vpack.c.b16 %v1326, %v1322
    %v1427 = vpack.c.b16 %v1331, %v1327
    %v1428 = vpack.c.b16 %v1332, %v1328
    %v1429 = vpack.c.b16 %v1333, %v1329
    %v1430 = vpack.c.b16 %v1334, %v1330
    %v1431 = vpack.c.b16 %v1339, %v1335
    %v1432 = vpack.c.b16 %v1340, %v1336
    %v1433 = vpack.c.b16 %v1341, %v1337
    %v1434 = vpack.c.b16 %v1342, %v1338
    %v1435 = vpack.c.b16 %v1347, %v1343
    %v1436 = vpack.c.b16 %v1348, %v1344
    %v1437 = vpack.c.b16 %v1349, %v1345
    %v1438 = vpack.c.b16 %v1350, %v1346
    %v1439 = vpack.c.b16 %v1355, %v1351
    %v1440 = vpack.c.b16 %v1356, %v1352
    %v1441 = vpack.c.b16 %v1357, %v1353
    %v1442 = vpack.c.b16 %v1358, %v1354
    %v1443 = vpack.c.b16 %v1363, %v1359
    %v1444 = vpack.c.b16 %v1364, %v1360
    %v1445 = vpack.c.b16 %v1365, %v1361
    %v1446 = vpack.c.b16 %v1366, %v1362
    %v1447 = vpack.c.b16 %v1371, %v1367
    %v1448 = vpack.c.b16 %v1372, %v1368
    %v1449 = vpack.c.b16 %v1373, %v1369
    %v1450 = vpack.c.b16 %v1374, %v1370
    %v1451 = vpack.c.b16 %v1379, %v1375
    %v1452 = vpack.c.b16 %v1380, %v1376
    %v1453 = vpack.c.b16 %v1381, %v1377
    %v1454 = vpack.c.b16 %v1382, %v1378
    %v1455 = vpack.c.b16 %v1387, %v1383
    %v1456 = vpack.c.b16 %v1388, %v1384
    %v1457 = vpack.c.b16 %v1389, %v1385
    %v1458 = vpack.c.b16 %v1390, %v1386
    %v1459 = vpack.c.b16 %v1395, %v1391
    %v1460 = vpack.c.b16 %v1396, %v1392
    %v1461 = vpack.c.b16 %v1397, %v1393
    %v1462 = vpack.c.b16 %v1398, %v1394
    %1527 = vmatprep.subr.bf16.mxu0 %v1400
    %1528 = vmatpush1.bf16.msra.mxu0 %v1399
    %1529 = vmatprep.subr.bf16.mxu0 %v1404
    %1530 = vmatpush1.bf16.msra.mxu0 %v1403
    %1531 = vmatprep.subr.bf16.mxu0 %v1408
    %1532 = vmatpush1.bf16.msra.mxu0 %v1407
    %1533 = vmatprep.subr.bf16.mxu0 %v1412
    %1534 = vmatpush1.bf16.msra.mxu0 %v1411
    %1535 = vmatprep.subr.bf16.mxu0 %v1416
    %1536 = vmatpush1.bf16.msra.mxu0 %v1415
    %1537 = vmatprep.subr.bf16.mxu0 %v1420
    %1538 = vmatpush1.bf16.msra.mxu0 %v1419
    %1539 = vmatprep.subr.bf16.mxu0 %v1424
    %1540 = vmatpush1.bf16.msra.mxu0 %v1423
    %1541 = vmatprep.subr.bf16.mxu0 %v1428
    %1542 = vmatpush1.bf16.msra.mxu0 %v1427
    %1543 = vmatprep.subr.bf16.mxu0 %v1432
    %1544 = vmatpush1.bf16.msra.mxu0 %v1431
    %1545 = vmatprep.subr.bf16.mxu0 %v1436
    %1546 = vmatpush1.bf16.msra.mxu0 %v1435
    %1547 = vmatprep.subr.bf16.mxu0 %v1440
    %1548 = vmatpush1.bf16.msra.mxu0 %v1439
    %1549 = vmatprep.subr.bf16.mxu0 %v1444
    %1550 = vmatpush1.bf16.msra.mxu0 %v1443
    %1551 = vmatprep.subr.bf16.mxu0 %v1448
    %1552 = vmatpush1.bf16.msra.mxu0 %v1447
    %1553 = vmatprep.subr.bf16.mxu0 %v1452
    %1554 = vmatpush1.bf16.msra.mxu0 %v1451
    %1555 = vmatprep.subr.bf16.mxu0 %v1456
    %1556 = vmatpush1.bf16.msra.mxu0 %v1455
    %1557 = vmatprep.subr.bf16.mxu0 %v1460
    %1558 = vmatpush1.bf16.msra.mxu0 %v1459
    %1559 = vmatprep.mubr.bf16.mxu0 %v308
    %1560 = vmatmul.mubr.bf16.gmra.mrb[0].mxu0 %v307
    %v1561 = vpop.f32.mrb[0].mxu0
    %v1562 = vadd.f32 %v1016, %v1561
    %v1563 = vpop.f32.mrb[0].mxu0
    %v1564 = vadd.f32 %v1018, %v1563
    %v1565 = vpop.f32.mrb[0].mxu0
    %v1566 = vadd.f32 %v1020, %v1565
    %v1567 = vpop.f32.mrb[0].mxu0
    %v1568 = vadd.f32 %v1022, %v1567
    %1569 = vmatprep.mubr.bf16.mxu0 %v310
    %1570 = vmatmul.mubr.bf16.gmra.mrb[0].mxu0 %v309
    %v1571 = vpop.f32.mrb[0].mxu0
    %v1572 = vadd.f32 %v1026, %v1571
    %v1573 = vpop.f32.mrb[0].mxu0
    %v1574 = vadd.f32 %v1028, %v1573
    %v1575 = vpop.f32.mrb[0].mxu0
    %v1576 = vadd.f32 %v1030, %v1575
    %v1577 = vpop.f32.mrb[0].mxu0
    %v1578 = vadd.f32 %v1032, %v1577
    %1579 = vmatprep.mubr.bf16.mxu0 %v312
    %1580 = vmatmul.mubr.bf16.gmra.mrb[0].mxu0 %v311
    %v1581 = vpop.f32.mrb[0].mxu0
    %v1582 = vadd.f32 %v1036, %v1581
    %v1583 = vpop.f32.mrb[0].mxu0
    %v1584 = vadd.f32 %v1038, %v1583
    %v1585 = vpop.f32.mrb[0].mxu0
    %v1586 = vadd.f32 %v1040, %v1585
    %v1587 = vpop.f32.mrb[0].mxu0
    %v1588 = vadd.f32 %v1042, %v1587
    %1589 = vmatprep.mubr.bf16.mxu0 %v314
    %1590 = vmatmul.mubr.bf16.gmra.mrb[0].mxu0 %v313
    %v1591 = vpop.f32.mrb[0].mxu0
    %v1592 = vadd.f32 %v1046, %v1591
    %v1593 = vpop.f32.mrb[0].mxu0
    %v1594 = vadd.f32 %v1048, %v1593
    %v1595 = vpop.f32.mrb[0].mxu0
    %v1596 = vadd.f32 %v1050, %v1595
    %v1597 = vpop.f32.mrb[0].mxu0
    %v1598 = vadd.f32 %v1052, %v1597
    %1599 = vmatprep.mubr.bf16.mxu0 %v316
    %1600 = vmatmul.mubr.bf16.gmra.mrb[0].mxu0 %v315
    %v1601 = vpop.f32.mrb[0].mxu0
    %v1602 = vadd.f32 %v1056, %v1601
    %v1603 = vpop.f32.mrb[0].mxu0
    %v1604 = vadd.f32 %v1058, %v1603
    %v1605 = vpop.f32.mrb[0].mxu0
    %v1606 = vadd.f32 %v1060, %v1605
    %v1607 = vpop.f32.mrb[0].mxu0
    %v1608 = vadd.f32 %v1062, %v1607
    %1609 = vmatprep.mubr.bf16.mxu0 %v318
    %1610 = vmatmul.mubr.bf16.gmra.mrb[0].mxu0 %v317
    %v1611 = vpop.f32.mrb[0].mxu0
    %v1612 = vadd.f32 %v1066, %v1611
    %v1613 = vpop.f32.mrb[0].mxu0
    %v1614 = vadd.f32 %v1068, %v1613
    %v1615 = vpop.f32.mrb[0].mxu0
    %v1616 = vadd.f32 %v1070, %v1615
    %v1617 = vpop.f32.mrb[0].mxu0
    %v1618 = vadd.f32 %v1072, %v1617
    %1619 = vmatprep.mubr.bf16.mxu0 %v320
    %1620 = vmatmul.mubr.bf16.gmra.mrb[0].mxu0 %v319
    %v1621 = vpop.f32.mrb[0].mxu0
    %v1622 = vadd.f32 %v1076, %v1621
    %v1623 = vpop.f32.mrb[0].mxu0
    %v1624 = vadd.f32 %v1078, %v1623
    %v1625 = vpop.f32.mrb[0].mxu0
    %v1626 = vadd.f32 %v1080, %v1625
    %v1627 = vpop.f32.mrb[0].mxu0
    %v1628 = vadd.f32 %v1082, %v1627
    %1629 = vmatprep.mubr.bf16.mxu0 %v322
    %1630 = vmatmul.mubr.bf16.gmra.mrb[0].mxu0 %v321
    %v1631 = vpop.f32.mrb[0].mxu0
    %v1632 = vadd.f32 %v1086, %v1631
    %v1633 = vpop.f32.mrb[0].mxu0
    %v1634 = vadd.f32 %v1088, %v1633
    %v1635 = vpop.f32.mrb[0].mxu0
    %v1636 = vadd.f32 %v1090, %v1635
    %v1637 = vpop.f32.mrb[0].mxu0
    %v1638 = vadd.f32 %v1092, %v1637
    %1639 = vdwg.mxu0
    %1640 = vmatprep.subr.bf16.mxu0 %v1402
    %1641 = vmatpush1.bf16.msra.mxu0 %v1401
    %1642 = vmatprep.subr.bf16.mxu0 %v1406
    %1643 = vmatpush1.bf16.msra.mxu0 %v1405
    %1644 = vmatprep.subr.bf16.mxu0 %v1410
    %1645 = vmatpush1.bf16.msra.mxu0 %v1409
    %1646 = vmatprep.subr.bf16.mxu0 %v1414
    %1647 = vmatpush1.bf16.msra.mxu0 %v1413
    %1648 = vmatprep.subr.bf16.mxu0 %v1418
    %1649 = vmatpush1.bf16.msra.mxu0 %v1417
    %1650 = vmatprep.subr.bf16.mxu0 %v1422
    %1651 = vmatpush1.bf16.msra.mxu0 %v1421
    %1652 = vmatprep.subr.bf16.mxu0 %v1426
    %1653 = vmatpush1.bf16.msra.mxu0 %v1425
    %1654 = vmatprep.subr.bf16.mxu0 %v1430
    %1655 = vmatpush1.bf16.msra.mxu0 %v1429
    %1656 = vmatprep.subr.bf16.mxu0 %v1434
    %1657 = vmatpush1.bf16.msra.mxu0 %v1433
    %1658 = vmatprep.subr.bf16.mxu0 %v1438
    %1659 = vmatpush1.bf16.msra.mxu0 %v1437
    %1660 = vmatprep.subr.bf16.mxu0 %v1442
    %1661 = vmatpush1.bf16.msra.mxu0 %v1441
    %1662 = vmatprep.subr.bf16.mxu0 %v1446
    %1663 = vmatpush1.bf16.msra.mxu0 %v1445
    %1664 = vmatprep.subr.bf16.mxu0 %v1450
    %1665 = vmatpush1.bf16.msra.mxu0 %v1449
    %1666 = vmatprep.subr.bf16.mxu0 %v1454
    %1667 = vmatpush1.bf16.msra.mxu0 %v1453
    %1668 = vmatprep.subr.bf16.mxu0 %v1458
    %1669 = vmatpush1.bf16.msra.mxu0 %v1457
    %1670 = vmatprep.subr.bf16.mxu0 %v1462
    %1671 = vmatpush1.bf16.msra.mxu0 %v1461
    %1672 = vmatprep.mubr.bf16.mxu0 %v308
    %1673 = vmatmul.mubr.bf16.gmra.mrb[0].mxu0 %v307
    %v1674 = vpop.f32.mrb[0].mxu0
    %v1675 = vadd.f32 %v1129, %v1674
    %v1676 = vpop.f32.mrb[0].mxu0
    %v1677 = vadd.f32 %v1131, %v1676
    %v1678 = vpop.f32.mrb[0].mxu0
    %v1679 = vadd.f32 %v1133, %v1678
    %v1680 = vpop.f32.mrb[0].mxu0
    %v1681 = vadd.f32 %v1135, %v1680
    %1682 = vmatprep.mubr.bf16.mxu0 %v310
    %1683 = vmatmul.mubr.bf16.gmra.mrb[0].mxu0 %v309
    %v1684 = vpop.f32.mrb[0].mxu0
    %v1685 = vadd.f32 %v1139, %v1684
    %v1686 = vpop.f32.mrb[0].mxu0
    %v1687 = vadd.f32 %v1141, %v1686
    %v1688 = vpop.f32.mrb[0].mxu0
    %v1689 = vadd.f32 %v1143, %v1688
    %v1690 = vpop.f32.mrb[0].mxu0
    %v1691 = vadd.f32 %v1145, %v1690
    %1692 = vmatprep.mubr.bf16.mxu0 %v312
    %1693 = vmatmul.mubr.bf16.gmra.mrb[0].mxu0 %v311
    %v1694 = vpop.f32.mrb[0].mxu0
    %v1695 = vadd.f32 %v1149, %v1694
    %v1696 = vpop.f32.mrb[0].mxu0
    %v1697 = vadd.f32 %v1151, %v1696
    %v1698 = vpop.f32.mrb[0].mxu0
    %v1699 = vadd.f32 %v1153, %v1698
    %v1700 = vpop.f32.mrb[0].mxu0
    %v1701 = vadd.f32 %v1155, %v1700
    %1702 = vmatprep.mubr.bf16.mxu0 %v314
    %1703 = vmatmul.mubr.bf16.gmra.mrb[0].mxu0 %v313
    %v1704 = vpop.f32.mrb[0].mxu0
    %v1705 = vadd.f32 %v1159, %v1704
    %v1706 = vpop.f32.mrb[0].mxu0
    %v1707 = vadd.f32 %v1161, %v1706
    %v1708 = vpop.f32.mrb[0].mxu0
    %v1709 = vadd.f32 %v1163, %v1708
    %v1710 = vpop.f32.mrb[0].mxu0
    %v1711 = vadd.f32 %v1165, %v1710
    %1712 = vmatprep.mubr.bf16.mxu0 %v316
    %1713 = vmatmul.mubr.bf16.gmra.mrb[0].mxu0 %v315
    %v1714 = vpop.f32.mrb[0].mxu0
    %v1715 = vadd.f32 %v1169, %v1714
    %v1716 = vpop.f32.mrb[0].mxu0
    %v1717 = vadd.f32 %v1171, %v1716
    %v1718 = vpop.f32.mrb[0].mxu0
    %v1719 = vadd.f32 %v1173, %v1718
    %v1720 = vpop.f32.mrb[0].mxu0
    %v1721 = vadd.f32 %v1175, %v1720
    %1722 = vmatprep.mubr.bf16.mxu0 %v318
    %1723 = vmatmul.mubr.bf16.gmra.mrb[0].mxu0 %v317
    %v1724 = vpop.f32.mrb[0].mxu0
    %v1725 = vadd.f32 %v1179, %v1724
    %v1726 = vpop.f32.mrb[0].mxu0
    %v1727 = vadd.f32 %v1181, %v1726
    %v1728 = vpop.f32.mrb[0].mxu0
    %v1729 = vadd.f32 %v1183, %v1728
    %v1730 = vpop.f32.mrb[0].mxu0
    %v1731 = vadd.f32 %v1185, %v1730
    %1732 = vmatprep.mubr.bf16.mxu0 %v320
    %1733 = vmatmul.mubr.bf16.gmra.mrb[0].mxu0 %v319
    %v1734 = vpop.f32.mrb[0].mxu0
    %v1735 = vadd.f32 %v1189, %v1734
    %v1736 = vpop.f32.mrb[0].mxu0
    %v1737 = vadd.f32 %v1191, %v1736
    %v1738 = vpop.f32.mrb[0].mxu0
    %v1739 = vadd.f32 %v1193, %v1738
    %v1740 = vpop.f32.mrb[0].mxu0
    %v1741 = vadd.f32 %v1195, %v1740
    %1742 = vmatprep.mubr.bf16.mxu0 %v322
    %1743 = vmatmul.mubr.bf16.gmra.mrb[0].mxu0 %v321
    %v1744 = vpop.f32.mrb[0].mxu0
    %v1745 = vadd.f32 %v1199, %v1744
    %v1746 = vpop.f32.mrb[0].mxu0
    %v1747 = vadd.f32 %v1201, %v1746
    %v1748 = vpop.f32.mrb[0].mxu0
    %v1749 = vadd.f32 %v1203, %v1748
    %v1750 = vpop.f32.mrb[0].mxu0
    %v1751 = vadd.f32 %v1205, %v1750
    %1752 = vdwg.mxu0
    %v1753 = vld [vmem:[#allocation2] sm:$0xfc]
    %v1754 = vld [vmem:[#allocation2 + $0x8] sm:$0xfc]
    %v1755 = vld [vmem:[#allocation2 + $0x20] sm:$0x3]
    %v1756 = vld [vmem:[#allocation2 + $0x28] sm:$0x3]
    %v1757 = vld [vmem:[#allocation2 + $0x30] sm:$0xfc]
    %v1758 = vld [vmem:[#allocation2 + $0x38] sm:$0xfc]
    %v1759 = vld [vmem:[#allocation2 + $0x50] sm:$0x3]
    %v1760 = vld [vmem:[#allocation2 + $0x58] sm:$0x3]
    %v1761 = vld [vmem:[#allocation2 + $0x60] sm:$0xfc]
    %v1762 = vld [vmem:[#allocation2 + $0x68] sm:$0xfc]
    %v1763 = vld [vmem:[#allocation2 + $0x80] sm:$0x3]
    %v1764 = vld [vmem:[#allocation2 + $0x88] sm:$0x3]
    %v1765 = vld [vmem:[#allocation2 + $0x90] sm:$0xfc]
    %v1766 = vld [vmem:[#allocation2 + $0x98] sm:$0xfc]
    %v1767 = vld [vmem:[#allocation2 + $0xb0] sm:$0x3]
    %v1768 = vld [vmem:[#allocation2 + $0xb8] sm:$0x3]
    %v1769 = vld [vmem:[#allocation2 + $0xc0] sm:$0xfc]
    %v1770 = vld [vmem:[#allocation2 + $0xc8] sm:$0xfc]
    %v1771 = vld [vmem:[#allocation2 + $0xe0] sm:$0x3]
    %v1772 = vld [vmem:[#allocation2 + $0xe8] sm:$0x3]
    %v1773 = vld [vmem:[#allocation2 + $0xf0] sm:$0xfc]
    %v1774 = vld [vmem:[#allocation2 + $0xf8] sm:$0xfc]
    %v1775 = vld [vmem:[#allocation2 + $0x110] sm:$0x3]
    %v1776 = vld [vmem:[#allocation2 + $0x118] sm:$0x3]
    %v1777 = vld [vmem:[#allocation2 + $0x120] sm:$0xfc]
    %v1778 = vld [vmem:[#allocation2 + $0x128] sm:$0xfc]
    %v1779 = vld [vmem:[#allocation2 + $0x140] sm:$0x3]
    %v1780 = vld [vmem:[#allocation2 + $0x148] sm:$0x3]
    %v1781 = vld [vmem:[#allocation2 + $0x150] sm:$0xfc]
    %v1782 = vld [vmem:[#allocation2 + $0x158] sm:$0xfc]
    %v1783 = vld [vmem:[#allocation2 + $0x170] sm:$0x3]
    %v1784 = vld [vmem:[#allocation2 + $0x178] sm:$0x3]
    %vm1817 = vcmask 1045504
    %v1818 = vrot.slane %v1753, 2
    %v1819 = vrot.slane %v277, 2
    %v1820 = vsel %vm1817, %v1818, %v1819
    %v1821 = vrot.slane %v1754, 2
    %v1822 = vrot.slane %v278, 2
    %v1823 = vsel %vm1817, %v1821, %v1822
    %v1824 = vrot.slane %v1755, 2
    %v1825 = vsel %vm1817, %v1819, %v1824
    %v1826 = vrot.slane %v1756, 2
    %v1827 = vsel %vm1817, %v1822, %v1826
    %v1828 = vrot.slane %v1757, 2
    %v1829 = vrot.slane %v281, 2
    %v1830 = vsel %vm1817, %v1828, %v1829
    %v1831 = vrot.slane %v1758, 2
    %v1832 = vrot.slane %v282, 2
    %v1833 = vsel %vm1817, %v1831, %v1832
    %v1834 = vrot.slane %v1759, 2
    %v1835 = vsel %vm1817, %v1829, %v1834
    %v1836 = vrot.slane %v1760, 2
    %v1837 = vsel %vm1817, %v1832, %v1836
    %v1838 = vrot.slane %v1761, 2
    %v1839 = vrot.slane %v285, 2
    %v1840 = vsel %vm1817, %v1838, %v1839
    %v1841 = vrot.slane %v1762, 2
    %v1842 = vrot.slane %v286, 2
    %v1843 = vsel %vm1817, %v1841, %v1842
    %v1844 = vrot.slane %v1763, 2
    %v1845 = vsel %vm1817, %v1839, %v1844
    %v1846 = vrot.slane %v1764, 2
    %v1847 = vsel %vm1817, %v1842, %v1846
    %v1848 = vrot.slane %v1765, 2
    %v1849 = vrot.slane %v289, 2
    %v1850 = vsel %vm1817, %v1848, %v1849
    %v1851 = vrot.slane %v1766, 2
    %v1852 = vrot.slane %v290, 2
    %v1853 = vsel %vm1817, %v1851, %v1852
    %v1854 = vrot.slane %v1767, 2
    %v1855 = vsel %vm1817, %v1849, %v1854
    %v1856 = vrot.slane %v1768, 2
    %v1857 = vsel %vm1817, %v1852, %v1856
    %v1858 = vrot.slane %v1769, 2
    %v1859 = vrot.slane %v293, 2
    %v1860 = vsel %vm1817, %v1858, %v1859
    %v1861 = vrot.slane %v1770, 2
    %v1862 = vrot.slane %v294, 2
    %v1863 = vsel %vm1817, %v1861, %v1862
    %v1864 = vrot.slane %v1771, 2
    %v1865 = vsel %vm1817, %v1859, %v1864
    %v1866 = vrot.slane %v1772, 2
    %v1867 = vsel %vm1817, %v1862, %v1866
    %v1868 = vrot.slane %v1773, 2
    %v1869 = vrot.slane %v297, 2
    %v1870 = vsel %vm1817, %v1868, %v1869
    %v1871 = vrot.slane %v1774, 2
    %v1872 = vrot.slane %v298, 2
    %v1873 = vsel %vm1817, %v1871, %v1872
    %v1874 = vrot.slane %v1775, 2
    %v1875 = vsel %vm1817, %v1869, %v1874
    %v1876 = vrot.slane %v1776, 2
    %v1877 = vsel %vm1817, %v1872, %v1876
    %v1878 = vrot.slane %v1777, 2
    %v1879 = vrot.slane %v301, 2
    %v1880 = vsel %vm1817, %v1878, %v1879
    %v1881 = vrot.slane %v1778, 2
    %v1882 = vrot.slane %v302, 2
    %v1883 = vsel %vm1817, %v1881, %v1882
    %v1884 = vrot.slane %v1779, 2
    %v1885 = vsel %vm1817, %v1879, %v1884
    %v1886 = vrot.slane %v1780, 2
    %v1887 = vsel %vm1817, %v1882, %v1886
    %v1888 = vrot.slane %v1781, 2
    %v1889 = vrot.slane %v305, 2
    %v1890 = vsel %vm1817, %v1888, %v1889
    %v1891 = vrot.slane %v1782, 2
    %v1892 = vrot.slane %v306, 2
    %v1893 = vsel %vm1817, %v1891, %v1892
    %v1894 = vrot.slane %v1783, 2
    %v1895 = vsel %vm1817, %v1889, %v1894
    %v1896 = vrot.slane %v1784, 2
    %v1897 = vsel %vm1817, %v1892, %v1896
    %v1930 = vpack.c.bf16 %v1825, %v1820
    %v1931 = vpack.c.bf16 %v1827, %v1823
    %v1932 = vpack.c.bf16 %v1835, %v1830
    %v1933 = vpack.c.bf16 %v1837, %v1833
    %v1934 = vpack.c.bf16 %v1845, %v1840
    %v1935 = vpack.c.bf16 %v1847, %v1843
    %v1936 = vpack.c.bf16 %v1855, %v1850
    %v1937 = vpack.c.bf16 %v1857, %v1853
    %v1938 = vpack.c.bf16 %v1865, %v1860
    %v1939 = vpack.c.bf16 %v1867, %v1863
    %v1940 = vpack.c.bf16 %v1875, %v1870
    %v1941 = vpack.c.bf16 %v1877, %v1873
    %v1942 = vpack.c.bf16 %v1885, %v1880
    %v1943 = vpack.c.bf16 %v1887, %v1883
    %v1944 = vpack.c.bf16 %v1895, %v1890
    %v1945 = vpack.c.bf16 %v1897, %v1893
    %s1946 = scalar_lea.vmem %s1, 1024
    %v1947 = vld [vmem:[%s1946] sm:$0xff]
    %v1948 = vld [vmem:[%s1946 + $0x8] sm:$0xff]
    %v1949 = vld [vmem:[%s1946 + $0x10] sm:$0xff]
    %v1950 = vld [vmem:[%s1946 + $0x18] sm:$0xff]
    %v1951 = vld [vmem:[%s1946 + $0x20] sm:$0xff]
    %v1952 = vld [vmem:[%s1946 + $0x28] sm:$0xff]
    %v1953 = vld [vmem:[%s1946 + $0x30] sm:$0xff]
    %v1954 = vld [vmem:[%s1946 + $0x38] sm:$0xff]
    %v1955 = vld [vmem:[%s1946 + $0x40] sm:$0xff]
    %v1956 = vld [vmem:[%s1946 + $0x48] sm:$0xff]
    %v1957 = vld [vmem:[%s1946 + $0x50] sm:$0xff]
    %v1958 = vld [vmem:[%s1946 + $0x58] sm:$0xff]
    %v1959 = vld [vmem:[%s1946 + $0x60] sm:$0xff]
    %v1960 = vld [vmem:[%s1946 + $0x68] sm:$0xff]
    %v1961 = vld [vmem:[%s1946 + $0x70] sm:$0xff]
    %v1962 = vld [vmem:[%s1946 + $0x78] sm:$0xff]
    %v1963 = vld [vmem:[%s1946 + $0x80] sm:$0xff]
    %v1964 = vld [vmem:[%s1946 + $0x88] sm:$0xff]
    %v1965 = vld [vmem:[%s1946 + $0x90] sm:$0xff]
    %v1966 = vld [vmem:[%s1946 + $0x98] sm:$0xff]
    %v1967 = vld [vmem:[%s1946 + $0xa0] sm:$0xff]
    %v1968 = vld [vmem:[%s1946 + $0xa8] sm:$0xff]
    %v1969 = vld [vmem:[%s1946 + $0xb0] sm:$0xff]
    %v1970 = vld [vmem:[%s1946 + $0xb8] sm:$0xff]
    %v1971 = vld [vmem:[%s1946 + $0xc0] sm:$0xff]
    %v1972 = vld [vmem:[%s1946 + $0xc8] sm:$0xff]
    %v1973 = vld [vmem:[%s1946 + $0xd0] sm:$0xff]
    %v1974 = vld [vmem:[%s1946 + $0xd8] sm:$0xff]
    %v1975 = vld [vmem:[%s1946 + $0xe0] sm:$0xff]
    %v1976 = vld [vmem:[%s1946 + $0xe8] sm:$0xff]
    %v1977 = vld [vmem:[%s1946 + $0xf0] sm:$0xff]
    %v1978 = vld [vmem:[%s1946 + $0xf8] sm:$0xff]
    %v1979 = vld [vmem:[%s1946 + $0x100] sm:$0xff]
    %v1980 = vld [vmem:[%s1946 + $0x108] sm:$0xff]
    %v1981 = vld [vmem:[%s1946 + $0x110] sm:$0xff]
    %v1982 = vld [vmem:[%s1946 + $0x118] sm:$0xff]
    %v1983 = vld [vmem:[%s1946 + $0x120] sm:$0xff]
    %v1984 = vld [vmem:[%s1946 + $0x128] sm:$0xff]
    %v1985 = vld [vmem:[%s1946 + $0x130] sm:$0xff]
    %v1986 = vld [vmem:[%s1946 + $0x138] sm:$0xff]
    %v1987 = vld [vmem:[%s1946 + $0x140] sm:$0xff]
    %v1988 = vld [vmem:[%s1946 + $0x148] sm:$0xff]
    %v1989 = vld [vmem:[%s1946 + $0x150] sm:$0xff]
    %v1990 = vld [vmem:[%s1946 + $0x158] sm:$0xff]
    %v1991 = vld [vmem:[%s1946 + $0x160] sm:$0xff]
    %v1992 = vld [vmem:[%s1946 + $0x168] sm:$0xff]
    %v1993 = vld [vmem:[%s1946 + $0x170] sm:$0xff]
    %v1994 = vld [vmem:[%s1946 + $0x178] sm:$0xff]
    %v1995 = vld [vmem:[%s1946 + $0x180] sm:$0xff]
    %v1996 = vld [vmem:[%s1946 + $0x188] sm:$0xff]
    %v1997 = vld [vmem:[%s1946 + $0x190] sm:$0xff]
    %v1998 = vld [vmem:[%s1946 + $0x198] sm:$0xff]
    %v1999 = vld [vmem:[%s1946 + $0x1a0] sm:$0xff]
    %v2000 = vld [vmem:[%s1946 + $0x1a8] sm:$0xff]
    %v2001 = vld [vmem:[%s1946 + $0x1b0] sm:$0xff]
    %v2002 = vld [vmem:[%s1946 + $0x1b8] sm:$0xff]
    %v2003 = vld [vmem:[%s1946 + $0x1c0] sm:$0xff]
    %v2004 = vld [vmem:[%s1946 + $0x1c8] sm:$0xff]
    %v2005 = vld [vmem:[%s1946 + $0x1d0] sm:$0xff]
    %v2006 = vld [vmem:[%s1946 + $0x1d8] sm:$0xff]
    %v2007 = vld [vmem:[%s1946 + $0x1e0] sm:$0xff]
    %v2008 = vld [vmem:[%s1946 + $0x1e8] sm:$0xff]
    %v2009 = vld [vmem:[%s1946 + $0x1f0] sm:$0xff]
    %v2010 = vld [vmem:[%s1946 + $0x1f8] sm:$0xff]
    %v2075 = vunpack.c.l.b16 %v1947
    %v2076 = vunpack.c.h.b16 %v1947
    %v2077 = vunpack.c.l.b16 %v1948
    %v2078 = vunpack.c.h.b16 %v1948
    %v2079 = vunpack.c.l.b16 %v1949
    %v2080 = vunpack.c.h.b16 %v1949
    %v2081 = vunpack.c.l.b16 %v1950
    %v2082 = vunpack.c.h.b16 %v1950
    %v2083 = vunpack.c.l.b16 %v1951
    %v2084 = vunpack.c.h.b16 %v1951
    %v2085 = vunpack.c.l.b16 %v1952
    %v2086 = vunpack.c.h.b16 %v1952
    %v2087 = vunpack.c.l.b16 %v1953
    %v2088 = vunpack.c.h.b16 %v1953
    %v2089 = vunpack.c.l.b16 %v1954
    %v2090 = vunpack.c.h.b16 %v1954
    %v2091 = vunpack.c.l.b16 %v1955
    %v2092 = vunpack.c.h.b16 %v1955
    %v2093 = vunpack.c.l.b16 %v1956
    %v2094 = vunpack.c.h.b16 %v1956
    %v2095 = vunpack.c.l.b16 %v1957
    %v2096 = vunpack.c.h.b16 %v1957
    %v2097 = vunpack.c.l.b16 %v1958
    %v2098 = vunpack.c.h.b16 %v1958
    %v2099 = vunpack.c.l.b16 %v1959
    %v2100 = vunpack.c.h.b16 %v1959
    %v2101 = vunpack.c.l.b16 %v1960
    %v2102 = vunpack.c.h.b16 %v1960
    %v2103 = vunpack.c.l.b16 %v1961
    %v2104 = vunpack.c.h.b16 %v1961
    %v2105 = vunpack.c.l.b16 %v1962
    %v2106 = vunpack.c.h.b16 %v1962
    %v2107 = vunpack.c.l.b16 %v1963
    %v2108 = vunpack.c.h.b16 %v1963
    %v2109 = vunpack.c.l.b16 %v1964
    %v2110 = vunpack.c.h.b16 %v1964
    %v2111 = vunpack.c.l.b16 %v1965
    %v2112 = vunpack.c.h.b16 %v1965
    %v2113 = vunpack.c.l.b16 %v1966
    %v2114 = vunpack.c.h.b16 %v1966
    %v2115 = vunpack.c.l.b16 %v1967
    %v2116 = vunpack.c.h.b16 %v1967
    %v2117 = vunpack.c.l.b16 %v1968
    %v2118 = vunpack.c.h.b16 %v1968
    %v2119 = vunpack.c.l.b16 %v1969
    %v2120 = vunpack.c.h.b16 %v1969
    %v2121 = vunpack.c.l.b16 %v1970
    %v2122 = vunpack.c.h.b16 %v1970
    %v2123 = vunpack.c.l.b16 %v1971
    %v2124 = vunpack.c.h.b16 %v1971
    %v2125 = vunpack.c.l.b16 %v1972
    %v2126 = vunpack.c.h.b16 %v1972
    %v2127 = vunpack.c.l.b16 %v1973
    %v2128 = vunpack.c.h.b16 %v1973
    %v2129 = vunpack.c.l.b16 %v1974
    %v2130 = vunpack.c.h.b16 %v1974
    %v2131 = vunpack.c.l.b16 %v1975
    %v2132 = vunpack.c.h.b16 %v1975
    %v2133 = vunpack.c.l.b16 %v1976
    %v2134 = vunpack.c.h.b16 %v1976
    %v2135 = vunpack.c.l.b16 %v1977
    %v2136 = vunpack.c.h.b16 %v1977
    %v2137 = vunpack.c.l.b16 %v1978
    %v2138 = vunpack.c.h.b16 %v1978
    %v2139 = vunpack.c.l.b16 %v1979
    %v2140 = vunpack.c.h.b16 %v1979
    %v2141 = vunpack.c.l.b16 %v1980
    %v2142 = vunpack.c.h.b16 %v1980
    %v2143 = vunpack.c.l.b16 %v1981
    %v2144 = vunpack.c.h.b16 %v1981
    %v2145 = vunpack.c.l.b16 %v1982
    %v2146 = vunpack.c.h.b16 %v1982
    %v2147 = vunpack.c.l.b16 %v1983
    %v2148 = vunpack.c.h.b16 %v1983
    %v2149 = vunpack.c.l.b16 %v1984
    %v2150 = vunpack.c.h.b16 %v1984
    %v2151 = vunpack.c.l.b16 %v1985
    %v2152 = vunpack.c.h.b16 %v1985
    %v2153 = vunpack.c.l.b16 %v1986
    %v2154 = vunpack.c.h.b16 %v1986
    %v2155 = vunpack.c.l.b16 %v1987
    %v2156 = vunpack.c.h.b16 %v1987
    %v2157 = vunpack.c.l.b16 %v1988
    %v2158 = vunpack.c.h.b16 %v1988
    %v2159 = vunpack.c.l.b16 %v1989
    %v2160 = vunpack.c.h.b16 %v1989
    %v2161 = vunpack.c.l.b16 %v1990
    %v2162 = vunpack.c.h.b16 %v1990
    %v2163 = vunpack.c.l.b16 %v1991
    %v2164 = vunpack.c.h.b16 %v1991
    %v2165 = vunpack.c.l.b16 %v1992
    %v2166 = vunpack.c.h.b16 %v1992
    %v2167 = vunpack.c.l.b16 %v1993
    %v2168 = vunpack.c.h.b16 %v1993
    %v2169 = vunpack.c.l.b16 %v1994
    %v2170 = vunpack.c.h.b16 %v1994
    %v2171 = vunpack.c.l.b16 %v1995
    %v2172 = vunpack.c.h.b16 %v1995
    %v2173 = vunpack.c.l.b16 %v1996
    %v2174 = vunpack.c.h.b16 %v1996
    %v2175 = vunpack.c.l.b16 %v1997
    %v2176 = vunpack.c.h.b16 %v1997
    %v2177 = vunpack.c.l.b16 %v1998
    %v2178 = vunpack.c.h.b16 %v1998
    %v2179 = vunpack.c.l.b16 %v1999
    %v2180 = vunpack.c.h.b16 %v1999
    %v2181 = vunpack.c.l.b16 %v2000
    %v2182 = vunpack.c.h.b16 %v2000
    %v2183 = vunpack.c.l.b16 %v2001
    %v2184 = vunpack.c.h.b16 %v2001
    %v2185 = vunpack.c.l.b16 %v2002
    %v2186 = vunpack.c.h.b16 %v2002
    %v2187 = vunpack.c.l.b16 %v2003
    %v2188 = vunpack.c.h.b16 %v2003
    %v2189 = vunpack.c.l.b16 %v2004
    %v2190 = vunpack.c.h.b16 %v2004
    %v2191 = vunpack.c.l.b16 %v2005
    %v2192 = vunpack.c.h.b16 %v2005
    %v2193 = vunpack.c.l.b16 %v2006
    %v2194 = vunpack.c.h.b16 %v2006
    %v2195 = vunpack.c.l.b16 %v2007
    %v2196 = vunpack.c.h.b16 %v2007
    %v2197 = vunpack.c.l.b16 %v2008
    %v2198 = vunpack.c.h.b16 %v2008
    %v2199 = vunpack.c.l.b16 %v2009
    %v2200 = vunpack.c.h.b16 %v2009
    %v2201 = vunpack.c.l.b16 %v2010
    %v2202 = vunpack.c.h.b16 %v2010
    %v2203 = vpack.c.b16 %v2079, %v2075
    %v2204 = vpack.c.b16 %v2080, %v2076
    %v2205 = vpack.c.b16 %v2081, %v2077
    %v2206 = vpack.c.b16 %v2082, %v2078
    %v2207 = vpack.c.b16 %v2087, %v2083
    %v2208 = vpack.c.b16 %v2088, %v2084
    %v2209 = vpack.c.b16 %v2089, %v2085
    %v2210 = vpack.c.b16 %v2090, %v2086
    %v2211 = vpack.c.b16 %v2095, %v2091
    %v2212 = vpack.c.b16 %v2096, %v2092
    %v2213 = vpack.c.b16 %v2097, %v2093
    %v2214 = vpack.c.b16 %v2098, %v2094
    %v2215 = vpack.c.b16 %v2103, %v2099
    %v2216 = vpack.c.b16 %v2104, %v2100
    %v2217 = vpack.c.b16 %v2105, %v2101
    %v2218 = vpack.c.b16 %v2106, %v2102
    %v2219 = vpack.c.b16 %v2111, %v2107
    %v2220 = vpack.c.b16 %v2112, %v2108
    %v2221 = vpack.c.b16 %v2113, %v2109
    %v2222 = vpack.c.b16 %v2114, %v2110
    %v2223 = vpack.c.b16 %v2119, %v2115
    %v2224 = vpack.c.b16 %v2120, %v2116
    %v2225 = vpack.c.b16 %v2121, %v2117
    %v2226 = vpack.c.b16 %v2122, %v2118
    %v2227 = vpack.c.b16 %v2127, %v2123
    %v2228 = vpack.c.b16 %v2128, %v2124
    %v2229 = vpack.c.b16 %v2129, %v2125
    %v2230 = vpack.c.b16 %v2130, %v2126
    %v2231 = vpack.c.b16 %v2135, %v2131
    %v2232 = vpack.c.b16 %v2136, %v2132
    %v2233 = vpack.c.b16 %v2137, %v2133
    %v2234 = vpack.c.b16 %v2138, %v2134
    %v2235 = vpack.c.b16 %v2143, %v2139
    %v2236 = vpack.c.b16 %v2144, %v2140
    %v2237 = vpack.c.b16 %v2145, %v2141
    %v2238 = vpack.c.b16 %v2146, %v2142
    %v2239 = vpack.c.b16 %v2151, %v2147
    %v2240 = vpack.c.b16 %v2152, %v2148
    %v2241 = vpack.c.b16 %v2153, %v2149
    %v2242 = vpack.c.b16 %v2154, %v2150
    %v2243 = vpack.c.b16 %v2159, %v2155
    %v2244 = vpack.c.b16 %v2160, %v2156
    %v2245 = vpack.c.b16 %v2161, %v2157
    %v2246 = vpack.c.b16 %v2162, %v2158
    %v2247 = vpack.c.b16 %v2167, %v2163
    %v2248 = vpack.c.b16 %v2168, %v2164
    %v2249 = vpack.c.b16 %v2169, %v2165
    %v2250 = vpack.c.b16 %v2170, %v2166
    %v2251 = vpack.c.b16 %v2175, %v2171
    %v2252 = vpack.c.b16 %v2176, %v2172
    %v2253 = vpack.c.b16 %v2177, %v2173
    %v2254 = vpack.c.b16 %v2178, %v2174
    %v2255 = vpack.c.b16 %v2183, %v2179
    %v2256 = vpack.c.b16 %v2184, %v2180
    %v2257 = vpack.c.b16 %v2185, %v2181
    %v2258 = vpack.c.b16 %v2186, %v2182
    %v2259 = vpack.c.b16 %v2191, %v2187
    %v2260 = vpack.c.b16 %v2192, %v2188
    %v2261 = vpack.c.b16 %v2193, %v2189
    %v2262 = vpack.c.b16 %v2194, %v2190
    %v2263 = vpack.c.b16 %v2199, %v2195
    %v2264 = vpack.c.b16 %v2200, %v2196
    %v2265 = vpack.c.b16 %v2201, %v2197
    %v2266 = vpack.c.b16 %v2202, %v2198
    %2331 = vmatprep.subr.bf16.mxu0 %v2204
    %2332 = vmatpush1.bf16.msra.mxu0 %v2203
    %2333 = vmatprep.subr.bf16.mxu0 %v2208
    %2334 = vmatpush1.bf16.msra.mxu0 %v2207
    %2335 = vmatprep.subr.bf16.mxu0 %v2212
    %2336 = vmatpush1.bf16.msra.mxu0 %v2211
    %2337 = vmatprep.subr.bf16.mxu0 %v2216
    %2338 = vmatpush1.bf16.msra.mxu0 %v2215
    %2339 = vmatprep.subr.bf16.mxu0 %v2220
    %2340 = vmatpush1.bf16.msra.mxu0 %v2219
    %2341 = vmatprep.subr.bf16.mxu0 %v2224
    %2342 = vmatpush1.bf16.msra.mxu0 %v2223
    %2343 = vmatprep.subr.bf16.mxu0 %v2228
    %2344 = vmatpush1.bf16.msra.mxu0 %v2227
    %2345 = vmatprep.subr.bf16.mxu0 %v2232
    %2346 = vmatpush1.bf16.msra.mxu0 %v2231
    %2347 = vmatprep.subr.bf16.mxu0 %v2236
    %2348 = vmatpush1.bf16.msra.mxu0 %v2235
    %2349 = vmatprep.subr.bf16.mxu0 %v2240
    %2350 = vmatpush1.bf16.msra.mxu0 %v2239
    %2351 = vmatprep.subr.bf16.mxu0 %v2244
    %2352 = vmatpush1.bf16.msra.mxu0 %v2243
    %2353 = vmatprep.subr.bf16.mxu0 %v2248
    %2354 = vmatpush1.bf16.msra.mxu0 %v2247
    %2355 = vmatprep.subr.bf16.mxu0 %v2252
    %2356 = vmatpush1.bf16.msra.mxu0 %v2251
    %2357 = vmatprep.subr.bf16.mxu0 %v2256
    %2358 = vmatpush1.bf16.msra.mxu0 %v2255
    %2359 = vmatprep.subr.bf16.mxu0 %v2260
    %2360 = vmatpush1.bf16.msra.mxu0 %v2259
    %2361 = vmatprep.subr.bf16.mxu0 %v2264
    %2362 = vmatpush1.bf16.msra.mxu0 %v2263
    %2363 = vmatprep.mubr.bf16.mxu0 %v1931
    %2364 = vmatmul.mubr.bf16.gmra.mrb[0].mxu0 %v1930
    %v2365 = vpop.f32.mrb[0].mxu0
    %v2366 = vadd.f32 0.0, %v2365
    %v2367 = vpop.f32.mrb[0].mxu0
    %v2368 = vadd.f32 0.0, %v2367
    %v2369 = vpop.f32.mrb[0].mxu0
    %v2370 = vadd.f32 0.0, %v2369
    %v2371 = vpop.f32.mrb[0].mxu0
    %v2372 = vadd.f32 0.0, %v2371
    %2373 = vmatprep.mubr.bf16.mxu0 %v1933
    %2374 = vmatmul.mubr.bf16.gmra.mrb[0].mxu0 %v1932
    %v2375 = vpop.f32.mrb[0].mxu0
    %v2376 = vadd.f32 0.0, %v2375
    %v2377 = vpop.f32.mrb[0].mxu0
    %v2378 = vadd.f32 0.0, %v2377
    %v2379 = vpop.f32.mrb[0].mxu0
    %v2380 = vadd.f32 0.0, %v2379
    %v2381 = vpop.f32.mrb[0].mxu0
    %v2382 = vadd.f32 0.0, %v2381
    %2383 = vmatprep.mubr.bf16.mxu0 %v1935
    %2384 = vmatmul.mubr.bf16.gmra.mrb[0].mxu0 %v1934
    %v2385 = vpop.f32.mrb[0].mxu0
    %v2386 = vadd.f32 0.0, %v2385
    %v2387 = vpop.f32.mrb[0].mxu0
    %v2388 = vadd.f32 0.0, %v2387
    %v2389 = vpop.f32.mrb[0].mxu0
    %v2390 = vadd.f32 0.0, %v2389
    %v2391 = vpop.f32.mrb[0].mxu0
    %v2392 = vadd.f32 0.0, %v2391
    %2393 = vmatprep.mubr.bf16.mxu0 %v1937
    %2394 = vmatmul.mubr.bf16.gmra.mrb[0].mxu0 %v1936
    %v2395 = vpop.f32.mrb[0].mxu0
    %v2396 = vadd.f32 0.0, %v2395
    %v2397 = vpop.f32.mrb[0].mxu0
    %v2398 = vadd.f32 0.0, %v2397
    %v2399 = vpop.f32.mrb[0].mxu0
    %v2400 = vadd.f32 0.0, %v2399
    %v2401 = vpop.f32.mrb[0].mxu0
    %v2402 = vadd.f32 0.0, %v2401
    %2403 = vmatprep.mubr.bf16.mxu0 %v1939
    %2404 = vmatmul.mubr.bf16.gmra.mrb[0].mxu0 %v1938
    %v2405 = vpop.f32.mrb[0].mxu0
    %v2406 = vadd.f32 0.0, %v2405
    %v2407 = vpop.f32.mrb[0].mxu0
    %v2408 = vadd.f32 0.0, %v2407
    %v2409 = vpop.f32.mrb[0].mxu0
    %v2410 = vadd.f32 0.0, %v2409
    %v2411 = vpop.f32.mrb[0].mxu0
    %v2412 = vadd.f32 0.0, %v2411
    %2413 = vmatprep.mubr.bf16.mxu0 %v1941
    %2414 = vmatmul.mubr.bf16.gmra.mrb[0].mxu0 %v1940
    %v2415 = vpop.f32.mrb[0].mxu0
    %v2416 = vadd.f32 0.0, %v2415
    %v2417 = vpop.f32.mrb[0].mxu0
    %v2418 = vadd.f32 0.0, %v2417
    %v2419 = vpop.f32.mrb[0].mxu0
    %v2420 = vadd.f32 0.0, %v2419
    %v2421 = vpop.f32.mrb[0].mxu0
    %v2422 = vadd.f32 0.0, %v2421
    %2423 = vmatprep.mubr.bf16.mxu0 %v1943
    %2424 = vmatmul.mubr.bf16.gmra.mrb[0].mxu0 %v1942
    %v2425 = vpop.f32.mrb[0].mxu0
    %v2426 = vadd.f32 0.0, %v2425
    %v2427 = vpop.f32.mrb[0].mxu0
    %v2428 = vadd.f32 0.0, %v2427
    %v2429 = vpop.f32.mrb[0].mxu0
    %v2430 = vadd.f32 0.0, %v2429
    %v2431 = vpop.f32.mrb[0].mxu0
    %v2432 = vadd.f32 0.0, %v2431
    %2433 = vmatprep.mubr.bf16.mxu0 %v1945
    %2434 = vmatmul.mubr.bf16.gmra.mrb[0].mxu0 %v1944
    %v2435 = vpop.f32.mrb[0].mxu0
    %v2436 = vadd.f32 0.0, %v2435
    %v2437 = vpop.f32.mrb[0].mxu0
    %v2438 = vadd.f32 0.0, %v2437
    %v2439 = vpop.f32.mrb[0].mxu0
    %v2440 = vadd.f32 0.0, %v2439
    %v2441 = vpop.f32.mrb[0].mxu0
    %v2442 = vadd.f32 0.0, %v2441
    %2443 = vdwg.mxu0
    %2444 = vmatprep.subr.bf16.mxu0 %v2206
    %2445 = vmatpush1.bf16.msra.mxu0 %v2205
    %2446 = vmatprep.subr.bf16.mxu0 %v2210
    %2447 = vmatpush1.bf16.msra.mxu0 %v2209
    %2448 = vmatprep.subr.bf16.mxu0 %v2214
    %2449 = vmatpush1.bf16.msra.mxu0 %v2213
    %2450 = vmatprep.subr.bf16.mxu0 %v2218
    %2451 = vmatpush1.bf16.msra.mxu0 %v2217
    %2452 = vmatprep.subr.bf16.mxu0 %v2222
    %2453 = vmatpush1.bf16.msra.mxu0 %v2221
    %2454 = vmatprep.subr.bf16.mxu0 %v2226
    %2455 = vmatpush1.bf16.msra.mxu0 %v2225
    %2456 = vmatprep.subr.bf16.mxu0 %v2230
    %2457 = vmatpush1.bf16.msra.mxu0 %v2229
    %2458 = vmatprep.subr.bf16.mxu0 %v2234
    %2459 = vmatpush1.bf16.msra.mxu0 %v2233
    %2460 = vmatprep.subr.bf16.mxu0 %v2238
    %2461 = vmatpush1.bf16.msra.mxu0 %v2237
    %2462 = vmatprep.subr.bf16.mxu0 %v2242
    %2463 = vmatpush1.bf16.msra.mxu0 %v2241
    %2464 = vmatprep.subr.bf16.mxu0 %v2246
    %2465 = vmatpush1.bf16.msra.mxu0 %v2245
    %2466 = vmatprep.subr.bf16.mxu0 %v2250
    %2467 = vmatpush1.bf16.msra.mxu0 %v2249
    %2468 = vmatprep.subr.bf16.mxu0 %v2254
    %2469 = vmatpush1.bf16.msra.mxu0 %v2253
    %2470 = vmatprep.subr.bf16.mxu0 %v2258
    %2471 = vmatpush1.bf16.msra.mxu0 %v2257
    %2472 = vmatprep.subr.bf16.mxu0 %v2262
    %2473 = vmatpush1.bf16.msra.mxu0 %v2261
    %2474 = vmatprep.subr.bf16.mxu0 %v2266
    %2475 = vmatpush1.bf16.msra.mxu0 %v2265
    %2476 = vmatprep.mubr.bf16.mxu0 %v1931
    %2477 = vmatmul.mubr.bf16.gmra.mrb[0].mxu0 %v1930
    %v2478 = vpop.f32.mrb[0].mxu0
    %v2479 = vadd.f32 0.0, %v2478
    %v2480 = vpop.f32.mrb[0].mxu0
    %v2481 = vadd.f32 0.0, %v2480
    %v2482 = vpop.f32.mrb[0].mxu0
    %v2483 = vadd.f32 0.0, %v2482
    %v2484 = vpop.f32.mrb[0].mxu0
    %v2485 = vadd.f32 0.0, %v2484
    %2486 = vmatprep.mubr.bf16.mxu0 %v1933
    %2487 = vmatmul.mubr.bf16.gmra.mrb[0].mxu0 %v1932
    %v2488 = vpop.f32.mrb[0].mxu0
    %v2489 = vadd.f32 0.0, %v2488
    %v2490 = vpop.f32.mrb[0].mxu0
    %v2491 = vadd.f32 0.0, %v2490
    %v2492 = vpop.f32.mrb[0].mxu0
    %v2493 = vadd.f32 0.0, %v2492
    %v2494 = vpop.f32.mrb[0].mxu0
    %v2495 = vadd.f32 0.0, %v2494
    %2496 = vmatprep.mubr.bf16.mxu0 %v1935
    %2497 = vmatmul.mubr.bf16.gmra.mrb[0].mxu0 %v1934
    %v2498 = vpop.f32.mrb[0].mxu0
    %v2499 = vadd.f32 0.0, %v2498
    %v2500 = vpop.f32.mrb[0].mxu0
    %v2501 = vadd.f32 0.0, %v2500
    %v2502 = vpop.f32.mrb[0].mxu0
    %v2503 = vadd.f32 0.0, %v2502
    %v2504 = vpop.f32.mrb[0].mxu0
    %v2505 = vadd.f32 0.0, %v2504
    %2506 = vmatprep.mubr.bf16.mxu0 %v1937
    %2507 = vmatmul.mubr.bf16.gmra.mrb[0].mxu0 %v1936
    %v2508 = vpop.f32.mrb[0].mxu0
    %v2509 = vadd.f32 0.0, %v2508
    %v2510 = vpop.f32.mrb[0].mxu0
    %v2511 = vadd.f32 0.0, %v2510
    %v2512 = vpop.f32.mrb[0].mxu0
    %v2513 = vadd.f32 0.0, %v2512
    %v2514 = vpop.f32.mrb[0].mxu0
    %v2515 = vadd.f32 0.0, %v2514
    %2516 = vmatprep.mubr.bf16.mxu0 %v1939
    %2517 = vmatmul.mubr.bf16.gmra.mrb[0].mxu0 %v1938
    %v2518 = vpop.f32.mrb[0].mxu0
    %v2519 = vadd.f32 0.0, %v2518
    %v2520 = vpop.f32.mrb[0].mxu0
    %v2521 = vadd.f32 0.0, %v2520
    %v2522 = vpop.f32.mrb[0].mxu0
    %v2523 = vadd.f32 0.0, %v2522
    %v2524 = vpop.f32.mrb[0].mxu0
    %v2525 = vadd.f32 0.0, %v2524
    %2526 = vmatprep.mubr.bf16.mxu0 %v1941
    %2527 = vmatmul.mubr.bf16.gmra.mrb[0].mxu0 %v1940
    %v2528 = vpop.f32.mrb[0].mxu0
    %v2529 = vadd.f32 0.0, %v2528
    %v2530 = vpop.f32.mrb[0].mxu0
    %v2531 = vadd.f32 0.0, %v2530
    %v2532 = vpop.f32.mrb[0].mxu0
    %v2533 = vadd.f32 0.0, %v2532
    %v2534 = vpop.f32.mrb[0].mxu0
    %v2535 = vadd.f32 0.0, %v2534
    %2536 = vmatprep.mubr.bf16.mxu0 %v1943
    %2537 = vmatmul.mubr.bf16.gmra.mrb[0].mxu0 %v1942
    %v2538 = vpop.f32.mrb[0].mxu0
    %v2539 = vadd.f32 0.0, %v2538
    %v2540 = vpop.f32.mrb[0].mxu0
    %v2541 = vadd.f32 0.0, %v2540
    %v2542 = vpop.f32.mrb[0].mxu0
    %v2543 = vadd.f32 0.0, %v2542
    %v2544 = vpop.f32.mrb[0].mxu0
    %v2545 = vadd.f32 0.0, %v2544
    %2546 = vmatprep.mubr.bf16.mxu0 %v1945
    %2547 = vmatmul.mubr.bf16.gmra.mrb[0].mxu0 %v1944
    %v2548 = vpop.f32.mrb[0].mxu0
    %v2549 = vadd.f32 0.0, %v2548
    %v2550 = vpop.f32.mrb[0].mxu0
    %v2551 = vadd.f32 0.0, %v2550
    %v2552 = vpop.f32.mrb[0].mxu0
    %v2553 = vadd.f32 0.0, %v2552
    %v2554 = vpop.f32.mrb[0].mxu0
    %v2555 = vadd.f32 0.0, %v2554
    %2556 = vdwg.mxu0
    %v2557 = vadd.f32 %v1562, %v2366
    %v2558 = vadd.f32 %v1564, %v2368
    %v2559 = vadd.f32 %v1675, %v2479
    %v2560 = vadd.f32 %v1677, %v2481
    %v2561 = vadd.f32 %v1566, %v2370
    %v2562 = vadd.f32 %v1568, %v2372
    %v2563 = vadd.f32 %v1679, %v2483
    %v2564 = vadd.f32 %v1681, %v2485
    %v2565 = vadd.f32 %v1572, %v2376
    %v2566 = vadd.f32 %v1574, %v2378
    %v2567 = vadd.f32 %v1685, %v2489
    %v2568 = vadd.f32 %v1687, %v2491
    %v2569 = vadd.f32 %v1576, %v2380
    %v2570 = vadd.f32 %v1578, %v2382
    %v2571 = vadd.f32 %v1689, %v2493
    %v2572 = vadd.f32 %v1691, %v2495
    %v2573 = vadd.f32 %v1582, %v2386
    %v2574 = vadd.f32 %v1584, %v2388
    %v2575 = vadd.f32 %v1695, %v2499
    %v2576 = vadd.f32 %v1697, %v2501
    %v2577 = vadd.f32 %v1586, %v2390
    %v2578 = vadd.f32 %v1588, %v2392
    %v2579 = vadd.f32 %v1699, %v2503
    %v2580 = vadd.f32 %v1701, %v2505
    %v2581 = vadd.f32 %v1592, %v2396
    %v2582 = vadd.f32 %v1594, %v2398
    %v2583 = vadd.f32 %v1705, %v2509
    %v2584 = vadd.f32 %v1707, %v2511
    %v2585 = vadd.f32 %v1596, %v2400
    %v2586 = vadd.f32 %v1598, %v2402
    %v2587 = vadd.f32 %v1709, %v2513
    %v2588 = vadd.f32 %v1711, %v2515
    %v2589 = vadd.f32 %v1602, %v2406
    %v2590 = vadd.f32 %v1604, %v2408
    %v2591 = vadd.f32 %v1715, %v2519
    %v2592 = vadd.f32 %v1717, %v2521
    %v2593 = vadd.f32 %v1606, %v2410
    %v2594 = vadd.f32 %v1608, %v2412
    %v2595 = vadd.f32 %v1719, %v2523
    %v2596 = vadd.f32 %v1721, %v2525
    %v2597 = vadd.f32 %v1612, %v2416
    %v2598 = vadd.f32 %v1614, %v2418
    %v2599 = vadd.f32 %v1725, %v2529
    %v2600 = vadd.f32 %v1727, %v2531
    %v2601 = vadd.f32 %v1616, %v2420
    %v2602 = vadd.f32 %v1618, %v2422
    %v2603 = vadd.f32 %v1729, %v2533
    %v2604 = vadd.f32 %v1731, %v2535
    %v2605 = vadd.f32 %v1622, %v2426
    %v2606 = vadd.f32 %v1624, %v2428
    %v2607 = vadd.f32 %v1735, %v2539
    %v2608 = vadd.f32 %v1737, %v2541
    %v2609 = vadd.f32 %v1626, %v2430
    %v2610 = vadd.f32 %v1628, %v2432
    %v2611 = vadd.f32 %v1739, %v2543
    %v2612 = vadd.f32 %v1741, %v2545
    %v2613 = vadd.f32 %v1632, %v2436
    %v2614 = vadd.f32 %v1634, %v2438
    %v2615 = vadd.f32 %v1745, %v2549
    %v2616 = vadd.f32 %v1747, %v2551
    %v2617 = vadd.f32 %v1636, %v2440
    %v2618 = vadd.f32 %v1638, %v2442
    %v2619 = vadd.f32 %v1749, %v2553
    %v2620 = vadd.f32 %v1751, %v2555
    %v2621 = vadd.f32 %v2557, %v2561
    %v2622 = vadd.f32 %v2621, %v2565
    %v2623 = vadd.f32 %v2622, %v2569
    %v2624 = vadd.f32 %v2623, %v2573
    %v2625 = vadd.f32 %v2624, %v2577
    %v2626 = vadd.f32 %v2625, %v2581
    %v2627 = vadd.f32 %v2626, %v2585
    %v2628 = vrot.slane %v2627, 4
    %v2629 = vadd.f32 %v2627, %v2628
    %v2630 = vrot.slane %v2629, 2
    %v2631 = vadd.f32 %v2629, %v2630
    %v2632 = vrot.slane %v2631, 1
    %v2633 = vadd.f32 %v2631, %v2632
    %v2634 = vadd.f32 %v2558, %v2562
    %v2635 = vadd.f32 %v2634, %v2566
    %v2636 = vadd.f32 %v2635, %v2570
    %v2637 = vadd.f32 %v2636, %v2574
    %v2638 = vadd.f32 %v2637, %v2578
    %v2639 = vadd.f32 %v2638, %v2582
    %v2640 = vadd.f32 %v2639, %v2586
    %v2641 = vrot.slane %v2640, 4
    %v2642 = vadd.f32 %v2640, %v2641
    %v2643 = vrot.slane %v2642, 2
    %v2644 = vadd.f32 %v2642, %v2643
    %v2645 = vrot.slane %v2644, 1
    %v2646 = vadd.f32 %v2644, %v2645
    %v2647 = vadd.f32 %v2559, %v2563
    %v2648 = vadd.f32 %v2647, %v2567
    %v2649 = vadd.f32 %v2648, %v2571
    %v2650 = vadd.f32 %v2649, %v2575
    %v2651 = vadd.f32 %v2650, %v2579
    %v2652 = vadd.f32 %v2651, %v2583
    %v2653 = vadd.f32 %v2652, %v2587
    %v2654 = vrot.slane %v2653, 4
    %v2655 = vadd.f32 %v2653, %v2654
    %v2656 = vrot.slane %v2655, 2
    %v2657 = vadd.f32 %v2655, %v2656
    %v2658 = vrot.slane %v2657, 1
    %v2659 = vadd.f32 %v2657, %v2658
    %v2660 = vadd.f32 %v2560, %v2564
    %v2661 = vadd.f32 %v2660, %v2568
    %v2662 = vadd.f32 %v2661, %v2572
    %v2663 = vadd.f32 %v2662, %v2576
    %v2664 = vadd.f32 %v2663, %v2580
    %v2665 = vadd.f32 %v2664, %v2584
    %v2666 = vadd.f32 %v2665, %v2588
    %v2667 = vrot.slane %v2666, 4
    %v2668 = vadd.f32 %v2666, %v2667
    %v2669 = vrot.slane %v2668, 2
    %v2670 = vadd.f32 %v2668, %v2669
    %v2671 = vrot.slane %v2670, 1
    %v2672 = vadd.f32 %v2670, %v2671
    %v2673 = vadd.f32 %v2589, %v2593
    %v2674 = vadd.f32 %v2673, %v2597
    %v2675 = vadd.f32 %v2674, %v2601
    %v2676 = vadd.f32 %v2675, %v2605
    %v2677 = vadd.f32 %v2676, %v2609
    %v2678 = vadd.f32 %v2677, %v2613
    %v2679 = vadd.f32 %v2678, %v2617
    %v2680 = vrot.slane %v2679, 4
    %v2681 = vadd.f32 %v2679, %v2680
    %v2682 = vrot.slane %v2681, 2
    %v2683 = vadd.f32 %v2681, %v2682
    %v2684 = vrot.slane %v2683, 1
    %v2685 = vadd.f32 %v2683, %v2684
    %v2686 = vadd.f32 %v2590, %v2594
    %v2687 = vadd.f32 %v2686, %v2598
    %v2688 = vadd.f32 %v2687, %v2602
    %v2689 = vadd.f32 %v2688, %v2606
    %v2690 = vadd.f32 %v2689, %v2610
    %v2691 = vadd.f32 %v2690, %v2614
    %v2692 = vadd.f32 %v2691, %v2618
    %v2693 = vrot.slane %v2692, 4
    %v2694 = vadd.f32 %v2692, %v2693
    %v2695 = vrot.slane %v2694, 2
    %v2696 = vadd.f32 %v2694, %v2695
    %v2697 = vrot.slane %v2696, 1
    %v2698 = vadd.f32 %v2696, %v2697
    %v2699 = vadd.f32 %v2591, %v2595
    %v2700 = vadd.f32 %v2699, %v2599
    %v2701 = vadd.f32 %v2700, %v2603
    %v2702 = vadd.f32 %v2701, %v2607
    %v2703 = vadd.f32 %v2702, %v2611
    %v2704 = vadd.f32 %v2703, %v2615
    %v2705 = vadd.f32 %v2704, %v2619
    %v2706 = vrot.slane %v2705, 4
    %v2707 = vadd.f32 %v2705, %v2706
    %v2708 = vrot.slane %v2707, 2
    %v2709 = vadd.f32 %v2707, %v2708
    %v2710 = vrot.slane %v2709, 1
    %v2711 = vadd.f32 %v2709, %v2710
    %v2712 = vadd.f32 %v2592, %v2596
    %v2713 = vadd.f32 %v2712, %v2600
    %v2714 = vadd.f32 %v2713, %v2604
    %v2715 = vadd.f32 %v2714, %v2608
    %v2716 = vadd.f32 %v2715, %v2612
    %v2717 = vadd.f32 %v2716, %v2616
    %v2718 = vadd.f32 %v2717, %v2620
    %v2719 = vrot.slane %v2718, 4
    %v2720 = vadd.f32 %v2718, %v2719
    %v2721 = vrot.slane %v2720, 2
    %v2722 = vadd.f32 %v2720, %v2721
    %v2723 = vrot.slane %v2722, 1
    %v2724 = vadd.f32 %v2722, %v2723
    %v2725 = vrcp.pop 64.0
    %v2726 = vmul.f32 %v2633, %v2725
    %v2727 = vmul.f32 %v2646, %v2725
    %v2728 = vmul.f32 %v2659, %v2725
    %v2729 = vmul.f32 %v2672, %v2725
    %v2730 = vmul.f32 %v2685, %v2725
    %v2731 = vmul.f32 %v2698, %v2725
    %v2732 = vmul.f32 %v2711, %v2725
    %v2733 = vmul.f32 %v2724, %v2725
    %v2734 = vmul.f32 %v2557, %v2557
    %v2735 = vmul.f32 %v2558, %v2558
    %v2736 = vmul.f32 %v2559, %v2559
    %v2737 = vmul.f32 %v2560, %v2560
    %v2738 = vmul.f32 %v2561, %v2561
    %v2739 = vmul.f32 %v2562, %v2562
    %v2740 = vmul.f32 %v2563, %v2563
    %v2741 = vmul.f32 %v2564, %v2564
    %v2742 = vmul.f32 %v2565, %v2565
    %v2743 = vmul.f32 %v2566, %v2566
    %v2744 = vmul.f32 %v2567, %v2567
    %v2745 = vmul.f32 %v2568, %v2568
    %v2746 = vmul.f32 %v2569, %v2569
    %v2747 = vmul.f32 %v2570, %v2570
    %v2748 = vmul.f32 %v2571, %v2571
    %v2749 = vmul.f32 %v2572, %v2572
    %v2750 = vmul.f32 %v2573, %v2573
    %v2751 = vmul.f32 %v2574, %v2574
    %v2752 = vmul.f32 %v2575, %v2575
    %v2753 = vmul.f32 %v2576, %v2576
    %v2754 = vmul.f32 %v2577, %v2577
    %v2755 = vmul.f32 %v2578, %v2578
    %v2756 = vmul.f32 %v2579, %v2579
    %v2757 = vmul.f32 %v2580, %v2580
    %v2758 = vmul.f32 %v2581, %v2581
    %v2759 = vmul.f32 %v2582, %v2582
    %v2760 = vmul.f32 %v2583, %v2583
    %v2761 = vmul.f32 %v2584, %v2584
    %v2762 = vmul.f32 %v2585, %v2585
    %v2763 = vmul.f32 %v2586, %v2586
    %v2764 = vmul.f32 %v2587, %v2587
    %v2765 = vmul.f32 %v2588, %v2588
    %v2766 = vmul.f32 %v2589, %v2589
    %v2767 = vmul.f32 %v2590, %v2590
    %v2768 = vmul.f32 %v2591, %v2591
    %v2769 = vmul.f32 %v2592, %v2592
    %v2770 = vmul.f32 %v2593, %v2593
    %v2771 = vmul.f32 %v2594, %v2594
    %v2772 = vmul.f32 %v2595, %v2595
    %v2773 = vmul.f32 %v2596, %v2596
    %v2774 = vmul.f32 %v2597, %v2597
    %v2775 = vmul.f32 %v2598, %v2598
    %v2776 = vmul.f32 %v2599, %v2599
    %v2777 = vmul.f32 %v2600, %v2600
    %v2778 = vmul.f32 %v2601, %v2601
    %v2779 = vmul.f32 %v2602, %v2602
    %v2780 = vmul.f32 %v2603, %v2603
    %v2781 = vmul.f32 %v2604, %v2604
    %v2782 = vmul.f32 %v2605, %v2605
    %v2783 = vmul.f32 %v2606, %v2606
    %v2784 = vmul.f32 %v2607, %v2607
    %v2785 = vmul.f32 %v2608, %v2608
    %v2786 = vmul.f32 %v2609, %v2609
    %v2787 = vmul.f32 %v2610, %v2610
    %v2788 = vmul.f32 %v2611, %v2611
    %v2789 = vmul.f32 %v2612, %v2612
    %v2790 = vmul.f32 %v2613, %v2613
    %v2791 = vmul.f32 %v2614, %v2614
    %v2792 = vmul.f32 %v2615, %v2615
    %v2793 = vmul.f32 %v2616, %v2616
    %v2794 = vmul.f32 %v2617, %v2617
    %v2795 = vmul.f32 %v2618, %v2618
    %v2796 = vmul.f32 %v2619, %v2619
    %v2797 = vmul.f32 %v2620, %v2620
    %v2798 = vadd.f32 %v2734, %v2738
    %v2799 = vadd.f32 %v2798, %v2742
    %v2800 = vadd.f32 %v2799, %v2746
    %v2801 = vadd.f32 %v2800, %v2750
    %v2802 = vadd.f32 %v2801, %v2754
    %v2803 = vadd.f32 %v2802, %v2758
    %v2804 = vadd.f32 %v2803, %v2762
    %v2805 = vrot.slane %v2804, 4
    %v2806 = vadd.f32 %v2804, %v2805
    %v2807 = vrot.slane %v2806, 2
    %v2808 = vadd.f32 %v2806, %v2807
    %v2809 = vrot.slane %v2808, 1
    %v2810 = vadd.f32 %v2808, %v2809
    %v2811 = vadd.f32 %v2735, %v2739
    %v2812 = vadd.f32 %v2811, %v2743
    %v2813 = vadd.f32 %v2812, %v2747
    %v2814 = vadd.f32 %v2813, %v2751
    %v2815 = vadd.f32 %v2814, %v2755
    %v2816 = vadd.f32 %v2815, %v2759
    %v2817 = vadd.f32 %v2816, %v2763
    %v2818 = vrot.slane %v2817, 4
    %v2819 = vadd.f32 %v2817, %v2818
    %v2820 = vrot.slane %v2819, 2
    %v2821 = vadd.f32 %v2819, %v2820
    %v2822 = vrot.slane %v2821, 1
    %v2823 = vadd.f32 %v2821, %v2822
    %v2824 = vadd.f32 %v2736, %v2740
    %v2825 = vadd.f32 %v2824, %v2744
    %v2826 = vadd.f32 %v2825, %v2748
    %v2827 = vadd.f32 %v2826, %v2752
    %v2828 = vadd.f32 %v2827, %v2756
    %v2829 = vadd.f32 %v2828, %v2760
    %v2830 = vadd.f32 %v2829, %v2764
    %v2831 = vrot.slane %v2830, 4
    %v2832 = vadd.f32 %v2830, %v2831
    %v2833 = vrot.slane %v2832, 2
    %v2834 = vadd.f32 %v2832, %v2833
    %v2835 = vrot.slane %v2834, 1
    %v2836 = vadd.f32 %v2834, %v2835
    %v2837 = vadd.f32 %v2737, %v2741
    %v2838 = vadd.f32 %v2837, %v2745
    %v2839 = vadd.f32 %v2838, %v2749
    %v2840 = vadd.f32 %v2839, %v2753
    %v2841 = vadd.f32 %v2840, %v2757
    %v2842 = vadd.f32 %v2841, %v2761
    %v2843 = vadd.f32 %v2842, %v2765
    %v2844 = vrot.slane %v2843, 4
    %v2845 = vadd.f32 %v2843, %v2844
    %v2846 = vrot.slane %v2845, 2
    %v2847 = vadd.f32 %v2845, %v2846
    %v2848 = vrot.slane %v2847, 1
    %v2849 = vadd.f32 %v2847, %v2848
    %v2850 = vadd.f32 %v2766, %v2770
    %v2851 = vadd.f32 %v2850, %v2774
    %v2852 = vadd.f32 %v2851, %v2778
    %v2853 = vadd.f32 %v2852, %v2782
    %v2854 = vadd.f32 %v2853, %v2786
    %v2855 = vadd.f32 %v2854, %v2790
    %v2856 = vadd.f32 %v2855, %v2794
    %v2857 = vrot.slane %v2856, 4
    %v2858 = vadd.f32 %v2856, %v2857
    %v2859 = vrot.slane %v2858, 2
    %v2860 = vadd.f32 %v2858, %v2859
    %v2861 = vrot.slane %v2860, 1
    %v2862 = vadd.f32 %v2860, %v2861
    %v2863 = vadd.f32 %v2767, %v2771
    %v2864 = vadd.f32 %v2863, %v2775
    %v2865 = vadd.f32 %v2864, %v2779
    %v2866 = vadd.f32 %v2865, %v2783
    %v2867 = vadd.f32 %v2866, %v2787
    %v2868 = vadd.f32 %v2867, %v2791
    %v2869 = vadd.f32 %v2868, %v2795
    %v2870 = vrot.slane %v2869, 4
    %v2871 = vadd.f32 %v2869, %v2870
    %v2872 = vrot.slane %v2871, 2
    %v2873 = vadd.f32 %v2871, %v2872
    %v2874 = vrot.slane %v2873, 1
    %v2875 = vadd.f32 %v2873, %v2874
    %v2876 = vadd.f32 %v2768, %v2772
    %v2877 = vadd.f32 %v2876, %v2776
    %v2878 = vadd.f32 %v2877, %v2780
    %v2879 = vadd.f32 %v2878, %v2784
    %v2880 = vadd.f32 %v2879, %v2788
    %v2881 = vadd.f32 %v2880, %v2792
    %v2882 = vadd.f32 %v2881, %v2796
    %v2883 = vrot.slane %v2882, 4
    %v2884 = vadd.f32 %v2882, %v2883
    %v2885 = vrot.slane %v2884, 2
    %v2886 = vadd.f32 %v2884, %v2885
    %v2887 = vrot.slane %v2886, 1
    %v2888 = vadd.f32 %v2886, %v2887
    %v2889 = vadd.f32 %v2769, %v2773
    %v2890 = vadd.f32 %v2889, %v2777
    %v2891 = vadd.f32 %v2890, %v2781
    %v2892 = vadd.f32 %v2891, %v2785
    %v2893 = vadd.f32 %v2892, %v2789
    %v2894 = vadd.f32 %v2893, %v2793
    %v2895 = vadd.f32 %v2894, %v2797
    %v2896 = vrot.slane %v2895, 4
    %v2897 = vadd.f32 %v2895, %v2896
    %v2898 = vrot.slane %v2897, 2
    %v2899 = vadd.f32 %v2897, %v2898
    %v2900 = vrot.slane %v2899, 1
    %v2901 = vadd.f32 %v2899, %v2900
    %v2902 = vmul.f32 %v2810, %v2725
    %v2903 = vmul.f32 %v2823, %v2725
    %v2904 = vmul.f32 %v2836, %v2725
    %v2905 = vmul.f32 %v2849, %v2725
    %v2906 = vmul.f32 %v2862, %v2725
    %v2907 = vmul.f32 %v2875, %v2725
    %v2908 = vmul.f32 %v2888, %v2725
    %v2909 = vmul.f32 %v2901, %v2725
    %v2910 = vmul.f32 %v2726, %v2726
    %v2911 = vmul.f32 %v2727, %v2727
    %v2912 = vmul.f32 %v2728, %v2728
    %v2913 = vmul.f32 %v2729, %v2729
    %v2914 = vmul.f32 %v2730, %v2730
    %v2915 = vmul.f32 %v2731, %v2731
    %v2916 = vmul.f32 %v2732, %v2732
    %v2917 = vmul.f32 %v2733, %v2733
    %v2918 = vsub.f32 %v2902, %v2910
    %v2919 = vsub.f32 %v2903, %v2911
    %v2920 = vsub.f32 %v2904, %v2912
    %v2921 = vsub.f32 %v2905, %v2913
    %v2922 = vsub.f32 %v2906, %v2914
    %v2923 = vsub.f32 %v2907, %v2915
    %v2924 = vsub.f32 %v2908, %v2916
    %v2925 = vsub.f32 %v2909, %v2917
    %v2926 = vmax.f32 %v2918, 0.0
    %v2927 = vmax.f32 %v2919, 0.0
    %v2928 = vmax.f32 %v2920, 0.0
    %v2929 = vmax.f32 %v2921, 0.0
    %v2930 = vmax.f32 %v2922, 0.0
    %v2931 = vmax.f32 %v2923, 0.0
    %v2932 = vmax.f32 %v2924, 0.0
    %v2933 = vmax.f32 %v2925, 0.0
    %v2934 = vsub.f32 %v2557, %v2726
    %v2935 = vsub.f32 %v2558, %v2727
    %v2936 = vsub.f32 %v2559, %v2728
    %v2937 = vsub.f32 %v2560, %v2729
    %v2938 = vsub.f32 %v2561, %v2726
    %v2939 = vsub.f32 %v2562, %v2727
    %v2940 = vsub.f32 %v2563, %v2728
    %v2941 = vsub.f32 %v2564, %v2729
    %v2942 = vsub.f32 %v2565, %v2726
    %v2943 = vsub.f32 %v2566, %v2727
    %v2944 = vsub.f32 %v2567, %v2728
    %v2945 = vsub.f32 %v2568, %v2729
    %v2946 = vsub.f32 %v2569, %v2726
    %v2947 = vsub.f32 %v2570, %v2727
    %v2948 = vsub.f32 %v2571, %v2728
    %v2949 = vsub.f32 %v2572, %v2729
    %v2950 = vsub.f32 %v2573, %v2726
    %v2951 = vsub.f32 %v2574, %v2727
    %v2952 = vsub.f32 %v2575, %v2728
    %v2953 = vsub.f32 %v2576, %v2729
    %v2954 = vsub.f32 %v2577, %v2726
    %v2955 = vsub.f32 %v2578, %v2727
    %v2956 = vsub.f32 %v2579, %v2728
    %v2957 = vsub.f32 %v2580, %v2729
    %v2958 = vsub.f32 %v2581, %v2726
    %v2959 = vsub.f32 %v2582, %v2727
    %v2960 = vsub.f32 %v2583, %v2728
    %v2961 = vsub.f32 %v2584, %v2729
    %v2962 = vsub.f32 %v2585, %v2726
    %v2963 = vsub.f32 %v2586, %v2727
    %v2964 = vsub.f32 %v2587, %v2728
    %v2965 = vsub.f32 %v2588, %v2729
    %v2966 = vsub.f32 %v2589, %v2730
    %v2967 = vsub.f32 %v2590, %v2731
    %v2968 = vsub.f32 %v2591, %v2732
    %v2969 = vsub.f32 %v2592, %v2733
    %v2970 = vsub.f32 %v2593, %v2730
    %v2971 = vsub.f32 %v2594, %v2731
    %v2972 = vsub.f32 %v2595, %v2732
    %v2973 = vsub.f32 %v2596, %v2733
    %v2974 = vsub.f32 %v2597, %v2730
    %v2975 = vsub.f32 %v2598, %v2731
    %v2976 = vsub.f32 %v2599, %v2732
    %v2977 = vsub.f32 %v2600, %v2733
    %v2978 = vsub.f32 %v2601, %v2730
    %v2979 = vsub.f32 %v2602, %v2731
    %v2980 = vsub.f32 %v2603, %v2732
    %v2981 = vsub.f32 %v2604, %v2733
    %v2982 = vsub.f32 %v2605, %v2730
    %v2983 = vsub.f32 %v2606, %v2731
    %v2984 = vsub.f32 %v2607, %v2732
    %v2985 = vsub.f32 %v2608, %v2733
    %v2986 = vsub.f32 %v2609, %v2730
    %v2987 = vsub.f32 %v2610, %v2731
    %v2988 = vsub.f32 %v2611, %v2732
    %v2989 = vsub.f32 %v2612, %v2733
    %v2990 = vsub.f32 %v2613, %v2730
    %v2991 = vsub.f32 %v2614, %v2731
    %v2992 = vsub.f32 %v2615, %v2732
    %v2993 = vsub.f32 %v2616, %v2733
    %v2994 = vsub.f32 %v2617, %v2730
    %v2995 = vsub.f32 %v2618, %v2731
    %v2996 = vsub.f32 %v2619, %v2732
    %v2997 = vsub.f32 %v2620, %v2733
    %v2998 = vadd.f32 %v2926, 1e-05
    %v2999 = vadd.f32 %v2927, 1e-05
    %v3000 = vadd.f32 %v2928, 1e-05
    %v3001 = vadd.f32 %v2929, 1e-05
    %v3002 = vadd.f32 %v2930, 1e-05
    %v3003 = vadd.f32 %v2931, 1e-05
    %v3004 = vadd.f32 %v2932, 1e-05
    %v3005 = vadd.f32 %v2933, 1e-05
    %v3006 = vrsqrt.pop %v2998
    %v3007 = vrsqrt.pop %v2999
    %v3008 = vrsqrt.pop %v3000
    %v3009 = vrsqrt.pop %v3001
    %v3010 = vrsqrt.pop %v3002
    %v3011 = vrsqrt.pop %v3003
    %v3012 = vrsqrt.pop %v3004
    %v3013 = vrsqrt.pop %v3005
    %v3014 = vmul.f32 %v2934, %v3006
    %v3015 = vmul.f32 %v2935, %v3007
    %v3016 = vmul.f32 %v2936, %v3008
    %v3017 = vmul.f32 %v2937, %v3009
    %v3018 = vmul.f32 %v2938, %v3006
    %v3019 = vmul.f32 %v2939, %v3007
    %v3020 = vmul.f32 %v2940, %v3008
    %v3021 = vmul.f32 %v2941, %v3009
    %v3022 = vmul.f32 %v2942, %v3006
    %v3023 = vmul.f32 %v2943, %v3007
    %v3024 = vmul.f32 %v2944, %v3008
    %v3025 = vmul.f32 %v2945, %v3009
    %v3026 = vmul.f32 %v2946, %v3006
    %v3027 = vmul.f32 %v2947, %v3007
    %v3028 = vmul.f32 %v2948, %v3008
    %v3029 = vmul.f32 %v2949, %v3009
    %v3030 = vmul.f32 %v2950, %v3006
    %v3031 = vmul.f32 %v2951, %v3007
    %v3032 = vmul.f32 %v2952, %v3008
    %v3033 = vmul.f32 %v2953, %v3009
    %v3034 = vmul.f32 %v2954, %v3006
    %v3035 = vmul.f32 %v2955, %v3007
    %v3036 = vmul.f32 %v2956, %v3008
    %v3037 = vmul.f32 %v2957, %v3009
    %v3038 = vmul.f32 %v2958, %v3006
    %v3039 = vmul.f32 %v2959, %v3007
    %v3040 = vmul.f32 %v2960, %v3008
    %v3041 = vmul.f32 %v2961, %v3009
    %v3042 = vmul.f32 %v2962, %v3006
    %v3043 = vmul.f32 %v2963, %v3007
    %v3044 = vmul.f32 %v2964, %v3008
    %v3045 = vmul.f32 %v2965, %v3009
    %v3046 = vmul.f32 %v2966, %v3010
    %v3047 = vmul.f32 %v2967, %v3011
    %v3048 = vmul.f32 %v2968, %v3012
    %v3049 = vmul.f32 %v2969, %v3013
    %v3050 = vmul.f32 %v2970, %v3010
    %v3051 = vmul.f32 %v2971, %v3011
    %v3052 = vmul.f32 %v2972, %v3012
    %v3053 = vmul.f32 %v2973, %v3013
    %v3054 = vmul.f32 %v2974, %v3010
    %v3055 = vmul.f32 %v2975, %v3011
    %v3056 = vmul.f32 %v2976, %v3012
    %v3057 = vmul.f32 %v2977, %v3013
    %v3058 = vmul.f32 %v2978, %v3010
    %v3059 = vmul.f32 %v2979, %v3011
    %v3060 = vmul.f32 %v2980, %v3012
    %v3061 = vmul.f32 %v2981, %v3013
    %v3062 = vmul.f32 %v2982, %v3010
    %v3063 = vmul.f32 %v2983, %v3011
    %v3064 = vmul.f32 %v2984, %v3012
    %v3065 = vmul.f32 %v2985, %v3013
    %v3066 = vmul.f32 %v2986, %v3010
    %v3067 = vmul.f32 %v2987, %v3011
    %v3068 = vmul.f32 %v2988, %v3012
    %v3069 = vmul.f32 %v2989, %v3013
    %v3070 = vmul.f32 %v2990, %v3010
    %v3071 = vmul.f32 %v2991, %v3011
    %v3072 = vmul.f32 %v2992, %v3012
    %v3073 = vmul.f32 %v2993, %v3013
    %v3074 = vmul.f32 %v2994, %v3010
    %v3075 = vmul.f32 %v2995, %v3011
    %v3076 = vmul.f32 %v2996, %v3012
    %v3077 = vmul.f32 %v2997, %v3013
    %v3078 = vxor.u32 %v3016, 2147483648
    %v3079 = vxor.u32 %v3017, 2147483648
    %v3080 = vxor.u32 %v3020, 2147483648
    %v3081 = vxor.u32 %v3021, 2147483648
    %v3082 = vxor.u32 %v3024, 2147483648
    %v3083 = vxor.u32 %v3025, 2147483648
    %v3084 = vxor.u32 %v3028, 2147483648
    %v3085 = vxor.u32 %v3029, 2147483648
    %v3086 = vxor.u32 %v3032, 2147483648
    %v3087 = vxor.u32 %v3033, 2147483648
    %v3088 = vxor.u32 %v3036, 2147483648
    %v3089 = vxor.u32 %v3037, 2147483648
    %v3090 = vxor.u32 %v3040, 2147483648
    %v3091 = vxor.u32 %v3041, 2147483648
    %v3092 = vxor.u32 %v3044, 2147483648
    %v3093 = vxor.u32 %v3045, 2147483648
    %v3094 = vxor.u32 %v3048, 2147483648
    %v3095 = vxor.u32 %v3049, 2147483648
    %v3096 = vxor.u32 %v3052, 2147483648
    %v3097 = vxor.u32 %v3053, 2147483648
    %v3098 = vxor.u32 %v3056, 2147483648
    %v3099 = vxor.u32 %v3057, 2147483648
    %v3100 = vxor.u32 %v3060, 2147483648
    %v3101 = vxor.u32 %v3061, 2147483648
    %v3102 = vxor.u32 %v3064, 2147483648
    %v3103 = vxor.u32 %v3065, 2147483648
    %v3104 = vxor.u32 %v3068, 2147483648
    %v3105 = vxor.u32 %v3069, 2147483648
    %v3106 = vxor.u32 %v3072, 2147483648
    %v3107 = vxor.u32 %v3073, 2147483648
    %v3108 = vxor.u32 %v3076, 2147483648
    %v3109 = vxor.u32 %v3077, 2147483648
    %v3110 = vmul.f32 %v3078, 1.442695
    %v3111 = vpow.pop %v3110
    %v3112 = vmul.f32 %v3079, 1.442695
    %v3113 = vpow.pop %v3112
    %v3114 = vmul.f32 %v3080, 1.442695
    %v3115 = vpow.pop %v3114
    %v3116 = vmul.f32 %v3081, 1.442695
    %v3117 = vpow.pop %v3116
    %v3118 = vmul.f32 %v3082, 1.442695
    %v3119 = vpow.pop %v3118
    %v3120 = vmul.f32 %v3083, 1.442695
    %v3121 = vpow.pop %v3120
    %v3122 = vmul.f32 %v3084, 1.442695
    %v3123 = vpow.pop %v3122
    %v3124 = vmul.f32 %v3085, 1.442695
    %v3125 = vpow.pop %v3124
    %v3126 = vmul.f32 %v3086, 1.442695
    %v3127 = vpow.pop %v3126
    %v3128 = vmul.f32 %v3087, 1.442695
    %v3129 = vpow.pop %v3128
    %v3130 = vmul.f32 %v3088, 1.442695
    %v3131 = vpow.pop %v3130
    %v3132 = vmul.f32 %v3089, 1.442695
    %v3133 = vpow.pop %v3132
    %v3134 = vmul.f32 %v3090, 1.442695
    %v3135 = vpow.pop %v3134
    %v3136 = vmul.f32 %v3091, 1.442695
    %v3137 = vpow.pop %v3136
    %v3138 = vmul.f32 %v3092, 1.442695
    %v3139 = vpow.pop %v3138
    %v3140 = vmul.f32 %v3093, 1.442695
    %v3141 = vpow.pop %v3140
    %v3142 = vmul.f32 %v3094, 1.442695
    %v3143 = vpow.pop %v3142
    %v3144 = vmul.f32 %v3095, 1.442695
    %v3145 = vpow.pop %v3144
    %v3146 = vmul.f32 %v3096, 1.442695
    %v3147 = vpow.pop %v3146
    %v3148 = vmul.f32 %v3097, 1.442695
    %v3149 = vpow.pop %v3148
    %v3150 = vmul.f32 %v3098, 1.442695
    %v3151 = vpow.pop %v3150
    %v3152 = vmul.f32 %v3099, 1.442695
    %v3153 = vpow.pop %v3152
    %v3154 = vmul.f32 %v3100, 1.442695
    %v3155 = vpow.pop %v3154
    %v3156 = vmul.f32 %v3101, 1.442695
    %v3157 = vpow.pop %v3156
    %v3158 = vmul.f32 %v3102, 1.442695
    %v3159 = vpow.pop %v3158
    %v3160 = vmul.f32 %v3103, 1.442695
    %v3161 = vpow.pop %v3160
    %v3162 = vmul.f32 %v3104, 1.442695
    %v3163 = vpow.pop %v3162
    %v3164 = vmul.f32 %v3105, 1.442695
    %v3165 = vpow.pop %v3164
    %v3166 = vmul.f32 %v3106, 1.442695
    %v3167 = vpow.pop %v3166
    %v3168 = vmul.f32 %v3107, 1.442695
    %v3169 = vpow.pop %v3168
    %v3170 = vmul.f32 %v3108, 1.442695
    %v3171 = vpow.pop %v3170
    %v3172 = vmul.f32 %v3109, 1.442695
    %v3173 = vpow.pop %v3172
    %v3174 = vadd.f32 %v3111, 1.0
    %v3175 = vadd.f32 %v3113, 1.0
    %v3176 = vadd.f32 %v3115, 1.0
    %v3177 = vadd.f32 %v3117, 1.0
    %v3178 = vadd.f32 %v3119, 1.0
    %v3179 = vadd.f32 %v3121, 1.0
    %v3180 = vadd.f32 %v3123, 1.0
    %v3181 = vadd.f32 %v3125, 1.0
    %v3182 = vadd.f32 %v3127, 1.0
    %v3183 = vadd.f32 %v3129, 1.0
    %v3184 = vadd.f32 %v3131, 1.0
    %v3185 = vadd.f32 %v3133, 1.0
    %v3186 = vadd.f32 %v3135, 1.0
    %v3187 = vadd.f32 %v3137, 1.0
    %v3188 = vadd.f32 %v3139, 1.0
    %v3189 = vadd.f32 %v3141, 1.0
    %v3190 = vadd.f32 %v3143, 1.0
    %v3191 = vadd.f32 %v3145, 1.0
    %v3192 = vadd.f32 %v3147, 1.0
    %v3193 = vadd.f32 %v3149, 1.0
    %v3194 = vadd.f32 %v3151, 1.0
    %v3195 = vadd.f32 %v3153, 1.0
    %v3196 = vadd.f32 %v3155, 1.0
    %v3197 = vadd.f32 %v3157, 1.0
    %v3198 = vadd.f32 %v3159, 1.0
    %v3199 = vadd.f32 %v3161, 1.0
    %v3200 = vadd.f32 %v3163, 1.0
    %v3201 = vadd.f32 %v3165, 1.0
    %v3202 = vadd.f32 %v3167, 1.0
    %v3203 = vadd.f32 %v3169, 1.0
    %v3204 = vadd.f32 %v3171, 1.0
    %v3205 = vadd.f32 %v3173, 1.0
    %v3206 = vrcp.pop %v3174
    %v3207 = vmul.f32 1.0, %v3206
    %v3208 = vrcp.pop %v3175
    %v3209 = vmul.f32 1.0, %v3208
    %v3210 = vrcp.pop %v3176
    %v3211 = vmul.f32 1.0, %v3210
    %v3212 = vrcp.pop %v3177
    %v3213 = vmul.f32 1.0, %v3212
    %v3214 = vrcp.pop %v3178
    %v3215 = vmul.f32 1.0, %v3214
    %v3216 = vrcp.pop %v3179
    %v3217 = vmul.f32 1.0, %v3216
    %v3218 = vrcp.pop %v3180
    %v3219 = vmul.f32 1.0, %v3218
    %v3220 = vrcp.pop %v3181
    %v3221 = vmul.f32 1.0, %v3220
    %v3222 = vrcp.pop %v3182
    %v3223 = vmul.f32 1.0, %v3222
    %v3224 = vrcp.pop %v3183
    %v3225 = vmul.f32 1.0, %v3224
    %v3226 = vrcp.pop %v3184
    %v3227 = vmul.f32 1.0, %v3226
    %v3228 = vrcp.pop %v3185
    %v3229 = vmul.f32 1.0, %v3228
    %v3230 = vrcp.pop %v3186
    %v3231 = vmul.f32 1.0, %v3230
    %v3232 = vrcp.pop %v3187
    %v3233 = vmul.f32 1.0, %v3232
    %v3234 = vrcp.pop %v3188
    %v3235 = vmul.f32 1.0, %v3234
    %v3236 = vrcp.pop %v3189
    %v3237 = vmul.f32 1.0, %v3236
    %v3238 = vrcp.pop %v3190
    %v3239 = vmul.f32 1.0, %v3238
    %v3240 = vrcp.pop %v3191
    %v3241 = vmul.f32 1.0, %v3240
    %v3242 = vrcp.pop %v3192
    %v3243 = vmul.f32 1.0, %v3242
    %v3244 = vrcp.pop %v3193
    %v3245 = vmul.f32 1.0, %v3244
    %v3246 = vrcp.pop %v3194
    %v3247 = vmul.f32 1.0, %v3246
    %v3248 = vrcp.pop %v3195
    %v3249 = vmul.f32 1.0, %v3248
    %v3250 = vrcp.pop %v3196
    %v3251 = vmul.f32 1.0, %v3250
    %v3252 = vrcp.pop %v3197
    %v3253 = vmul.f32 1.0, %v3252
    %v3254 = vrcp.pop %v3198
    %v3255 = vmul.f32 1.0, %v3254
    %v3256 = vrcp.pop %v3199
    %v3257 = vmul.f32 1.0, %v3256
    %v3258 = vrcp.pop %v3200
    %v3259 = vmul.f32 1.0, %v3258
    %v3260 = vrcp.pop %v3201
    %v3261 = vmul.f32 1.0, %v3260
    %v3262 = vrcp.pop %v3202
    %v3263 = vmul.f32 1.0, %v3262
    %v3264 = vrcp.pop %v3203
    %v3265 = vmul.f32 1.0, %v3264
    %v3266 = vrcp.pop %v3204
    %v3267 = vmul.f32 1.0, %v3266
    %v3268 = vrcp.pop %v3205
    %v3269 = vmul.f32 1.0, %v3268
    %v3270 = vmul.f32 %v3014, %v3207
    %v3271 = vmul.f32 %v3015, %v3209
    %v3272 = vmul.f32 %v3018, %v3211
    %v3273 = vmul.f32 %v3019, %v3213
    %v3274 = vmul.f32 %v3022, %v3215
    %v3275 = vmul.f32 %v3023, %v3217
    %v3276 = vmul.f32 %v3026, %v3219
    %v3277 = vmul.f32 %v3027, %v3221
    %v3278 = vmul.f32 %v3030, %v3223
    %v3279 = vmul.f32 %v3031, %v3225
    %v3280 = vmul.f32 %v3034, %v3227
    %v3281 = vmul.f32 %v3035, %v3229
    %v3282 = vmul.f32 %v3038, %v3231
    %v3283 = vmul.f32 %v3039, %v3233
    %v3284 = vmul.f32 %v3042, %v3235
    %v3285 = vmul.f32 %v3043, %v3237
    %v3286 = vmul.f32 %v3046, %v3239
    %v3287 = vmul.f32 %v3047, %v3241
    %v3288 = vmul.f32 %v3050, %v3243
    %v3289 = vmul.f32 %v3051, %v3245
    %v3290 = vmul.f32 %v3054, %v3247
    %v3291 = vmul.f32 %v3055, %v3249
    %v3292 = vmul.f32 %v3058, %v3251
    %v3293 = vmul.f32 %v3059, %v3253
    %v3294 = vmul.f32 %v3062, %v3255
    %v3295 = vmul.f32 %v3063, %v3257
    %v3296 = vmul.f32 %v3066, %v3259
    %v3297 = vmul.f32 %v3067, %v3261
    %v3298 = vmul.f32 %v3070, %v3263
    %v3299 = vmul.f32 %v3071, %v3265
    %v3300 = vmul.f32 %v3074, %v3267
    %v3301 = vmul.f32 %v3075, %v3269
    %v3334 = vrot.slane %v3270, 7
    %v3335 = vrot.slane %v3271, 7
    %v3336 = vrot.slane %v3272, 7
    %v3337 = vsel %vm130, %v3334, %v3336
    %v3338 = vrot.slane %v3273, 7
    %v3339 = vsel %vm130, %v3335, %v3338
    %v3340 = vrot.slane %v3274, 7
    %v3341 = vrot.slane %v3275, 7
    %v3342 = vrot.slane %v3276, 7
    %v3343 = vsel %vm130, %v3340, %v3342
    %v3344 = vrot.slane %v3277, 7
    %v3345 = vsel %vm130, %v3341, %v3344
    %v3346 = vrot.slane %v3278, 7
    %v3347 = vrot.slane %v3279, 7
    %v3348 = vrot.slane %v3280, 7
    %v3349 = vsel %vm130, %v3346, %v3348
    %v3350 = vrot.slane %v3281, 7
    %v3351 = vsel %vm130, %v3347, %v3350
    %v3352 = vrot.slane %v3282, 7
    %v3353 = vrot.slane %v3283, 7
    %v3354 = vrot.slane %v3284, 7
    %v3355 = vsel %vm130, %v3352, %v3354
    %v3356 = vrot.slane %v3285, 7
    %v3357 = vsel %vm130, %v3353, %v3356
    %v3358 = vrot.slane %v3286, 7
    %v3359 = vrot.slane %v3287, 7
    %v3360 = vrot.slane %v3288, 7
    %v3361 = vsel %vm130, %v3358, %v3360
    %v3362 = vrot.slane %v3289, 7
    %v3363 = vsel %vm130, %v3359, %v3362
    %v3364 = vrot.slane %v3290, 7
    %v3365 = vrot.slane %v3291, 7
    %v3366 = vrot.slane %v3292, 7
    %v3367 = vsel %vm130, %v3364, %v3366
    %v3368 = vrot.slane %v3293, 7
    %v3369 = vsel %vm130, %v3365, %v3368
    %v3370 = vrot.slane %v3294, 7
    %v3371 = vrot.slane %v3295, 7
    %v3372 = vrot.slane %v3296, 7
    %v3373 = vsel %vm130, %v3370, %v3372
    %v3374 = vrot.slane %v3297, 7
    %v3375 = vsel %vm130, %v3371, %v3374
    %v3376 = vrot.slane %v3298, 7
    %v3377 = vrot.slane %v3299, 7
    %v3378 = vrot.slane %v3300, 7
    %v3379 = vsel %vm130, %v3376, %v3378
    %v3380 = vrot.slane %v3301, 7
    %v3381 = vsel %vm130, %v3377, %v3380
    %3430 = vst [vmem:[#allocation2] sm:$0xfe] %v3334
    %3431 = vst [vmem:[#allocation2 + $0x8] sm:$0xfe] %v3335
    %3432 = vst [vmem:[#allocation2 + $0x10] sm:$0xff] %v3337
    %3433 = vst [vmem:[#allocation2 + $0x18] sm:$0xff] %v3339
    %3434 = vst [vmem:[#allocation2 + $0x20] sm:$0x1] %v3336
    %3435 = vst [vmem:[#allocation2 + $0x28] sm:$0x1] %v3338
    %3436 = vst [vmem:[#allocation2 + $0x30] sm:$0xfe] %v3340
    %3437 = vst [vmem:[#allocation2 + $0x38] sm:$0xfe] %v3341
    %3438 = vst [vmem:[#allocation2 + $0x40] sm:$0xff] %v3343
    %3439 = vst [vmem:[#allocation2 + $0x48] sm:$0xff] %v3345
    %3440 = vst [vmem:[#allocation2 + $0x50] sm:$0x1] %v3342
    %3441 = vst [vmem:[#allocation2 + $0x58] sm:$0x1] %v3344
    %3442 = vst [vmem:[#allocation2 + $0x60] sm:$0xfe] %v3346
    %3443 = vst [vmem:[#allocation2 + $0x68] sm:$0xfe] %v3347
    %3444 = vst [vmem:[#allocation2 + $0x70] sm:$0xff] %v3349
    %3445 = vst [vmem:[#allocation2 + $0x78] sm:$0xff] %v3351
    %3446 = vst [vmem:[#allocation2 + $0x80] sm:$0x1] %v3348
    %3447 = vst [vmem:[#allocation2 + $0x88] sm:$0x1] %v3350
    %3448 = vst [vmem:[#allocation2 + $0x90] sm:$0xfe] %v3352
    %3449 = vst [vmem:[#allocation2 + $0x98] sm:$0xfe] %v3353
    %3450 = vst [vmem:[#allocation2 + $0xa0] sm:$0xff] %v3355
    %3451 = vst [vmem:[#allocation2 + $0xa8] sm:$0xff] %v3357
    %3452 = vst [vmem:[#allocation2 + $0xb0] sm:$0x1] %v3354
    %3453 = vst [vmem:[#allocation2 + $0xb8] sm:$0x1] %v3356
    %3454 = vst [vmem:[#allocation2 + $0xc0] sm:$0xfe] %v3358
    %3455 = vst [vmem:[#allocation2 + $0xc8] sm:$0xfe] %v3359
    %3456 = vst [vmem:[#allocation2 + $0xd0] sm:$0xff] %v3361
    %3457 = vst [vmem:[#allocation2 + $0xd8] sm:$0xff] %v3363
    %3458 = vst [vmem:[#allocation2 + $0xe0] sm:$0x1] %v3360
    %3459 = vst [vmem:[#allocation2 + $0xe8] sm:$0x1] %v3362
    %3460 = vst [vmem:[#allocation2 + $0xf0] sm:$0xfe] %v3364
    %3461 = vst [vmem:[#allocation2 + $0xf8] sm:$0xfe] %v3365
    %3462 = vst [vmem:[#allocation2 + $0x100] sm:$0xff] %v3367
    %3463 = vst [vmem:[#allocation2 + $0x108] sm:$0xff] %v3369
    %3464 = vst [vmem:[#allocation2 + $0x110] sm:$0x1] %v3366
    %3465 = vst [vmem:[#allocation2 + $0x118] sm:$0x1] %v3368
    %3466 = vst [vmem:[#allocation2 + $0x120] sm:$0xfe] %v3370
    %3467 = vst [vmem:[#allocation2 + $0x128] sm:$0xfe] %v3371
    %3468 = vst [vmem:[#allocation2 + $0x130] sm:$0xff] %v3373
    %3469 = vst [vmem:[#allocation2 + $0x138] sm:$0xff] %v3375
    %3470 = vst [vmem:[#allocation2 + $0x140] sm:$0x1] %v3372
    %3471 = vst [vmem:[#allocation2 + $0x148] sm:$0x1] %v3374
    %3472 = vst [vmem:[#allocation2 + $0x150] sm:$0xfe] %v3376
    %3473 = vst [vmem:[#allocation2 + $0x158] sm:$0xfe] %v3377
    %3474 = vst [vmem:[#allocation2 + $0x160] sm:$0xff] %v3379
    %3475 = vst [vmem:[#allocation2 + $0x168] sm:$0xff] %v3381
    %3476 = vst [vmem:[#allocation2 + $0x170] sm:$0x1] %v3378
    %3477 = vst [vmem:[#allocation2 + $0x178] sm:$0x1] %v3380
    %v3478 = vld [vmem:[#allocation2] sm:$0xff]
    %v3479 = vld [vmem:[#allocation2 + $0x8] sm:$0xff]
    %v3480 = vld [vmem:[#allocation2 + $0x10] sm:$0xff]
    %v3481 = vld [vmem:[#allocation2 + $0x18] sm:$0xff]
    %v3482 = vld [vmem:[#allocation2 + $0x30] sm:$0xff]
    %v3483 = vld [vmem:[#allocation2 + $0x38] sm:$0xff]
    %v3484 = vld [vmem:[#allocation2 + $0x40] sm:$0xff]
    %v3485 = vld [vmem:[#allocation2 + $0x48] sm:$0xff]
    %v3486 = vld [vmem:[#allocation2 + $0x60] sm:$0xff]
    %v3487 = vld [vmem:[#allocation2 + $0x68] sm:$0xff]
    %v3488 = vld [vmem:[#allocation2 + $0x70] sm:$0xff]
    %v3489 = vld [vmem:[#allocation2 + $0x78] sm:$0xff]
    %v3490 = vld [vmem:[#allocation2 + $0x90] sm:$0xff]
    %v3491 = vld [vmem:[#allocation2 + $0x98] sm:$0xff]
    %v3492 = vld [vmem:[#allocation2 + $0xa0] sm:$0xff]
    %v3493 = vld [vmem:[#allocation2 + $0xa8] sm:$0xff]
    %v3494 = vld [vmem:[#allocation2 + $0xc0] sm:$0xff]
    %v3495 = vld [vmem:[#allocation2 + $0xc8] sm:$0xff]
    %v3496 = vld [vmem:[#allocation2 + $0xd0] sm:$0xff]
    %v3497 = vld [vmem:[#allocation2 + $0xd8] sm:$0xff]
    %v3498 = vld [vmem:[#allocation2 + $0xf0] sm:$0xff]
    %v3499 = vld [vmem:[#allocation2 + $0xf8] sm:$0xff]
    %v3500 = vld [vmem:[#allocation2 + $0x100] sm:$0xff]
    %v3501 = vld [vmem:[#allocation2 + $0x108] sm:$0xff]
    %v3502 = vld [vmem:[#allocation2 + $0x120] sm:$0xff]
    %v3503 = vld [vmem:[#allocation2 + $0x128] sm:$0xff]
    %v3504 = vld [vmem:[#allocation2 + $0x130] sm:$0xff]
    %v3505 = vld [vmem:[#allocation2 + $0x138] sm:$0xff]
    %v3506 = vld [vmem:[#allocation2 + $0x150] sm:$0xff]
    %v3507 = vld [vmem:[#allocation2 + $0x158] sm:$0xff]
    %v3508 = vld [vmem:[#allocation2 + $0x160] sm:$0xff]
    %v3509 = vld [vmem:[#allocation2 + $0x168] sm:$0xff]
    %v3510 = vpack.c.bf16 %v3480, %v3478
    %v3511 = vpack.c.bf16 %v3481, %v3479
    %v3512 = vpack.c.bf16 %v3484, %v3482
    %v3513 = vpack.c.bf16 %v3485, %v3483
    %v3514 = vpack.c.bf16 %v3488, %v3486
    %v3515 = vpack.c.bf16 %v3489, %v3487
    %v3516 = vpack.c.bf16 %v3492, %v3490
    %v3517 = vpack.c.bf16 %v3493, %v3491
    %v3518 = vpack.c.bf16 %v3496, %v3494
    %v3519 = vpack.c.bf16 %v3497, %v3495
    %v3520 = vpack.c.bf16 %v3500, %v3498
    %v3521 = vpack.c.bf16 %v3501, %v3499
    %v3522 = vpack.c.bf16 %v3504, %v3502
    %v3523 = vpack.c.bf16 %v3505, %v3503
    %v3524 = vpack.c.bf16 %v3508, %v3506
    %v3525 = vpack.c.bf16 %v3509, %v3507
    %v3526 = vld [vmem:[%s2] sm:$0xff]
    %v3527 = vld [vmem:[%s2 + $0x8] sm:$0xff]
    %v3528 = vld [vmem:[%s2 + $0x10] sm:$0xff]
    %v3529 = vld [vmem:[%s2 + $0x18] sm:$0xff]
    %v3530 = vld [vmem:[%s2 + $0x20] sm:$0xff]
    %v3531 = vld [vmem:[%s2 + $0x28] sm:$0xff]
    %v3532 = vld [vmem:[%s2 + $0x30] sm:$0xff]
    %v3533 = vld [vmem:[%s2 + $0x38] sm:$0xff]
    %v3534 = vld [vmem:[%s2 + $0x40] sm:$0xff]
    %v3535 = vld [vmem:[%s2 + $0x48] sm:$0xff]
    %v3536 = vld [vmem:[%s2 + $0x50] sm:$0xff]
    %v3537 = vld [vmem:[%s2 + $0x58] sm:$0xff]
    %v3538 = vld [vmem:[%s2 + $0x60] sm:$0xff]
    %v3539 = vld [vmem:[%s2 + $0x68] sm:$0xff]
    %v3540 = vld [vmem:[%s2 + $0x70] sm:$0xff]
    %v3541 = vld [vmem:[%s2 + $0x78] sm:$0xff]
    %v3542 = vld [vmem:[%s2 + $0x80] sm:$0xff]
    %v3543 = vld [vmem:[%s2 + $0x88] sm:$0xff]
    %v3544 = vld [vmem:[%s2 + $0x90] sm:$0xff]
    %v3545 = vld [vmem:[%s2 + $0x98] sm:$0xff]
    %v3546 = vld [vmem:[%s2 + $0xa0] sm:$0xff]
    %v3547 = vld [vmem:[%s2 + $0xa8] sm:$0xff]
    %v3548 = vld [vmem:[%s2 + $0xb0] sm:$0xff]
    %v3549 = vld [vmem:[%s2 + $0xb8] sm:$0xff]
    %v3550 = vld [vmem:[%s2 + $0xc0] sm:$0xff]
    %v3551 = vld [vmem:[%s2 + $0xc8] sm:$0xff]
    %v3552 = vld [vmem:[%s2 + $0xd0] sm:$0xff]
    %v3553 = vld [vmem:[%s2 + $0xd8] sm:$0xff]
    %v3554 = vld [vmem:[%s2 + $0xe0] sm:$0xff]
    %v3555 = vld [vmem:[%s2 + $0xe8] sm:$0xff]
    %v3556 = vld [vmem:[%s2 + $0xf0] sm:$0xff]
    %v3557 = vld [vmem:[%s2 + $0xf8] sm:$0xff]
    %v3558 = vld [vmem:[#allocation2] sm:$0xfe]
    %v3559 = vld [vmem:[#allocation2 + $0x8] sm:$0xfe]
    %v3560 = vld [vmem:[#allocation2 + $0x20] sm:$0x1]
    %v3561 = vld [vmem:[#allocation2 + $0x28] sm:$0x1]
    %v3562 = vld [vmem:[#allocation2 + $0x30] sm:$0xfe]
    %v3563 = vld [vmem:[#allocation2 + $0x38] sm:$0xfe]
    %v3564 = vld [vmem:[#allocation2 + $0x50] sm:$0x1]
    %v3565 = vld [vmem:[#allocation2 + $0x58] sm:$0x1]
    %v3566 = vld [vmem:[#allocation2 + $0x60] sm:$0xfe]
    %v3567 = vld [vmem:[#allocation2 + $0x68] sm:$0xfe]
    %v3568 = vld [vmem:[#allocation2 + $0x80] sm:$0x1]
    %v3569 = vld [vmem:[#allocation2 + $0x88] sm:$0x1]
    %v3570 = vld [vmem:[#allocation2 + $0x90] sm:$0xfe]
    %v3571 = vld [vmem:[#allocation2 + $0x98] sm:$0xfe]
    %v3572 = vld [vmem:[#allocation2 + $0xb0] sm:$0x1]
    %v3573 = vld [vmem:[#allocation2 + $0xb8] sm:$0x1]
    %v3574 = vld [vmem:[#allocation2 + $0xc0] sm:$0xfe]
    %v3575 = vld [vmem:[#allocation2 + $0xc8] sm:$0xfe]
    %v3576 = vld [vmem:[#allocation2 + $0xe0] sm:$0x1]
    %v3577 = vld [vmem:[#allocation2 + $0xe8] sm:$0x1]
    %v3578 = vld [vmem:[#allocation2 + $0xf0] sm:$0xfe]
    %v3579 = vld [vmem:[#allocation2 + $0xf8] sm:$0xfe]
    %v3580 = vld [vmem:[#allocation2 + $0x110] sm:$0x1]
    %v3581 = vld [vmem:[#allocation2 + $0x118] sm:$0x1]
    %v3582 = vld [vmem:[#allocation2 + $0x120] sm:$0xfe]
    %v3583 = vld [vmem:[#allocation2 + $0x128] sm:$0xfe]
    %v3584 = vld [vmem:[#allocation2 + $0x140] sm:$0x1]
    %v3585 = vld [vmem:[#allocation2 + $0x148] sm:$0x1]
    %v3586 = vld [vmem:[#allocation2 + $0x150] sm:$0xfe]
    %v3587 = vld [vmem:[#allocation2 + $0x158] sm:$0xfe]
    %v3588 = vld [vmem:[#allocation2 + $0x170] sm:$0x1]
    %v3589 = vld [vmem:[#allocation2 + $0x178] sm:$0x1]
    %v3638 = vrot.slane %v3558, 1
    %v3639 = vrot.slane %v3480, 1
    %v3640 = vsel %vm467, %v3638, %v3639
    %v3641 = vrot.slane %v3559, 1
    %v3642 = vrot.slane %v3481, 1
    %v3643 = vsel %vm467, %v3641, %v3642
    %v3644 = vrot.slane %v3560, 1
    %v3645 = vsel %vm467, %v3639, %v3644
    %v3646 = vrot.slane %v3561, 1
    %v3647 = vsel %vm467, %v3642, %v3646
    %v3648 = vrot.slane %v3562, 1
    %v3649 = vrot.slane %v3484, 1
    %v3650 = vsel %vm467, %v3648, %v3649
    %v3651 = vrot.slane %v3563, 1
    %v3652 = vrot.slane %v3485, 1
    %v3653 = vsel %vm467, %v3651, %v3652
    %v3654 = vrot.slane %v3564, 1
    %v3655 = vsel %vm467, %v3649, %v3654
    %v3656 = vrot.slane %v3565, 1
    %v3657 = vsel %vm467, %v3652, %v3656
    %v3658 = vrot.slane %v3566, 1
    %v3659 = vrot.slane %v3488, 1
    %v3660 = vsel %vm467, %v3658, %v3659
    %v3661 = vrot.slane %v3567, 1
    %v3662 = vrot.slane %v3489, 1
    %v3663 = vsel %vm467, %v3661, %v3662
    %v3664 = vrot.slane %v3568, 1
    %v3665 = vsel %vm467, %v3659, %v3664
    %v3666 = vrot.slane %v3569, 1
    %v3667 = vsel %vm467, %v3662, %v3666
    %v3668 = vrot.slane %v3570, 1
    %v3669 = vrot.slane %v3492, 1
    %v3670 = vsel %vm467, %v3668, %v3669
    %v3671 = vrot.slane %v3571, 1
    %v3672 = vrot.slane %v3493, 1
    %v3673 = vsel %vm467, %v3671, %v3672
    %v3674 = vrot.slane %v3572, 1
    %v3675 = vsel %vm467, %v3669, %v3674
    %v3676 = vrot.slane %v3573, 1
    %v3677 = vsel %vm467, %v3672, %v3676
    %v3678 = vrot.slane %v3574, 1
    %v3679 = vrot.slane %v3496, 1
    %v3680 = vsel %vm467, %v3678, %v3679
    %v3681 = vrot.slane %v3575, 1
    %v3682 = vrot.slane %v3497, 1
    %v3683 = vsel %vm467, %v3681, %v3682
    %v3684 = vrot.slane %v3576, 1
    %v3685 = vsel %vm467, %v3679, %v3684
    %v3686 = vrot.slane %v3577, 1
    %v3687 = vsel %vm467, %v3682, %v3686
    %v3688 = vrot.slane %v3578, 1
    %v3689 = vrot.slane %v3500, 1
    %v3690 = vsel %vm467, %v3688, %v3689
    %v3691 = vrot.slane %v3579, 1
    %v3692 = vrot.slane %v3501, 1
    %v3693 = vsel %vm467, %v3691, %v3692
    %v3694 = vrot.slane %v3580, 1
    %v3695 = vsel %vm467, %v3689, %v3694
    %v3696 = vrot.slane %v3581, 1
    %v3697 = vsel %vm467, %v3692, %v3696
    %v3698 = vrot.slane %v3582, 1
    %v3699 = vrot.slane %v3504, 1
    %v3700 = vsel %vm467, %v3698, %v3699
    %v3701 = vrot.slane %v3583, 1
    %v3702 = vrot.slane %v3505, 1
    %v3703 = vsel %vm467, %v3701, %v3702
    %v3704 = vrot.slane %v3584, 1
    %v3705 = vsel %vm467, %v3699, %v3704
    %v3706 = vrot.slane %v3585, 1
    %v3707 = vsel %vm467, %v3702, %v3706
    %v3708 = vrot.slane %v3586, 1
    %v3709 = vrot.slane %v3508, 1
    %v3710 = vsel %vm467, %v3708, %v3709
    %v3711 = vrot.slane %v3587, 1
    %v3712 = vrot.slane %v3509, 1
    %v3713 = vsel %vm467, %v3711, %v3712
    %v3714 = vrot.slane %v3588, 1
    %v3715 = vsel %vm467, %v3709, %v3714
    %v3716 = vrot.slane %v3589, 1
    %v3717 = vsel %vm467, %v3712, %v3716
    %v3750 = vpack.c.bf16 %v3645, %v3640
    %v3751 = vpack.c.bf16 %v3647, %v3643
    %v3752 = vpack.c.bf16 %v3655, %v3650
    %v3753 = vpack.c.bf16 %v3657, %v3653
    %v3754 = vpack.c.bf16 %v3665, %v3660
    %v3755 = vpack.c.bf16 %v3667, %v3663
    %v3756 = vpack.c.bf16 %v3675, %v3670
    %v3757 = vpack.c.bf16 %v3677, %v3673
    %v3758 = vpack.c.bf16 %v3685, %v3680
    %v3759 = vpack.c.bf16 %v3687, %v3683
    %v3760 = vpack.c.bf16 %v3695, %v3690
    %v3761 = vpack.c.bf16 %v3697, %v3693
    %v3762 = vpack.c.bf16 %v3705, %v3700
    %v3763 = vpack.c.bf16 %v3707, %v3703
    %v3764 = vpack.c.bf16 %v3715, %v3710
    %v3765 = vpack.c.bf16 %v3717, %v3713
    %s3766 = scalar_lea.vmem %s2, 256
    %v3767 = vld [vmem:[%s3766] sm:$0xff]
    %v3768 = vld [vmem:[%s3766 + $0x8] sm:$0xff]
    %v3769 = vld [vmem:[%s3766 + $0x10] sm:$0xff]
    %v3770 = vld [vmem:[%s3766 + $0x18] sm:$0xff]
    %v3771 = vld [vmem:[%s3766 + $0x20] sm:$0xff]
    %v3772 = vld [vmem:[%s3766 + $0x28] sm:$0xff]
    %v3773 = vld [vmem:[%s3766 + $0x30] sm:$0xff]
    %v3774 = vld [vmem:[%s3766 + $0x38] sm:$0xff]
    %v3775 = vld [vmem:[%s3766 + $0x40] sm:$0xff]
    %v3776 = vld [vmem:[%s3766 + $0x48] sm:$0xff]
    %v3777 = vld [vmem:[%s3766 + $0x50] sm:$0xff]
    %v3778 = vld [vmem:[%s3766 + $0x58] sm:$0xff]
    %v3779 = vld [vmem:[%s3766 + $0x60] sm:$0xff]
    %v3780 = vld [vmem:[%s3766 + $0x68] sm:$0xff]
    %v3781 = vld [vmem:[%s3766 + $0x70] sm:$0xff]
    %v3782 = vld [vmem:[%s3766 + $0x78] sm:$0xff]
    %v3783 = vld [vmem:[%s3766 + $0x80] sm:$0xff]
    %v3784 = vld [vmem:[%s3766 + $0x88] sm:$0xff]
    %v3785 = vld [vmem:[%s3766 + $0x90] sm:$0xff]
    %v3786 = vld [vmem:[%s3766 + $0x98] sm:$0xff]
    %v3787 = vld [vmem:[%s3766 + $0xa0] sm:$0xff]
    %v3788 = vld [vmem:[%s3766 + $0xa8] sm:$0xff]
    %v3789 = vld [vmem:[%s3766 + $0xb0] sm:$0xff]
    %v3790 = vld [vmem:[%s3766 + $0xb8] sm:$0xff]
    %v3791 = vld [vmem:[%s3766 + $0xc0] sm:$0xff]
    %v3792 = vld [vmem:[%s3766 + $0xc8] sm:$0xff]
    %v3793 = vld [vmem:[%s3766 + $0xd0] sm:$0xff]
    %v3794 = vld [vmem:[%s3766 + $0xd8] sm:$0xff]
    %v3795 = vld [vmem:[%s3766 + $0xe0] sm:$0xff]
    %v3796 = vld [vmem:[%s3766 + $0xe8] sm:$0xff]
    %v3797 = vld [vmem:[%s3766 + $0xf0] sm:$0xff]
    %v3798 = vld [vmem:[%s3766 + $0xf8] sm:$0xff]
    %v3831 = vunpack.c.l.b16 %v3767
    %v3832 = vunpack.c.h.b16 %v3767
    %v3833 = vunpack.c.l.b16 %v3768
    %v3834 = vunpack.c.h.b16 %v3768
    %v3835 = vunpack.c.l.b16 %v3769
    %v3836 = vunpack.c.h.b16 %v3769
    %v3837 = vunpack.c.l.b16 %v3770
    %v3838 = vunpack.c.h.b16 %v3770
    %v3839 = vunpack.c.l.b16 %v3771
    %v3840 = vunpack.c.h.b16 %v3771
    %v3841 = vunpack.c.l.b16 %v3772
    %v3842 = vunpack.c.h.b16 %v3772
    %v3843 = vunpack.c.l.b16 %v3773
    %v3844 = vunpack.c.h.b16 %v3773
    %v3845 = vunpack.c.l.b16 %v3774
    %v3846 = vunpack.c.h.b16 %v3774
    %v3847 = vunpack.c.l.b16 %v3775
    %v3848 = vunpack.c.h.b16 %v3775
    %v3849 = vunpack.c.l.b16 %v3776
    %v3850 = vunpack.c.h.b16 %v3776
    %v3851 = vunpack.c.l.b16 %v3777
    %v3852 = vunpack.c.h.b16 %v3777
    %v3853 = vunpack.c.l.b16 %v3778
    %v3854 = vunpack.c.h.b16 %v3778
    %v3855 = vunpack.c.l.b16 %v3779
    %v3856 = vunpack.c.h.b16 %v3779
    %v3857 = vunpack.c.l.b16 %v3780
    %v3858 = vunpack.c.h.b16 %v3780
    %v3859 = vunpack.c.l.b16 %v3781
    %v3860 = vunpack.c.h.b16 %v3781
    %v3861 = vunpack.c.l.b16 %v3782
    %v3862 = vunpack.c.h.b16 %v3782
    %v3863 = vunpack.c.l.b16 %v3783
    %v3864 = vunpack.c.h.b16 %v3783
    %v3865 = vunpack.c.l.b16 %v3784
    %v3866 = vunpack.c.h.b16 %v3784
    %v3867 = vunpack.c.l.b16 %v3785
    %v3868 = vunpack.c.h.b16 %v3785
    %v3869 = vunpack.c.l.b16 %v3786
    %v3870 = vunpack.c.h.b16 %v3786
    %v3871 = vunpack.c.l.b16 %v3787
    %v3872 = vunpack.c.h.b16 %v3787
    %v3873 = vunpack.c.l.b16 %v3788
    %v3874 = vunpack.c.h.b16 %v3788
    %v3875 = vunpack.c.l.b16 %v3789
    %v3876 = vunpack.c.h.b16 %v3789
    %v3877 = vunpack.c.l.b16 %v3790
    %v3878 = vunpack.c.h.b16 %v3790
    %v3879 = vunpack.c.l.b16 %v3791
    %v3880 = vunpack.c.h.b16 %v3791
    %v3881 = vunpack.c.l.b16 %v3792
    %v3882 = vunpack.c.h.b16 %v3792
    %v3883 = vunpack.c.l.b16 %v3793
    %v3884 = vunpack.c.h.b16 %v3793
    %v3885 = vunpack.c.l.b16 %v3794
    %v3886 = vunpack.c.h.b16 %v3794
    %v3887 = vunpack.c.l.b16 %v3795
    %v3888 = vunpack.c.h.b16 %v3795
    %v3889 = vunpack.c.l.b16 %v3796
    %v3890 = vunpack.c.h.b16 %v3796
    %v3891 = vunpack.c.l.b16 %v3797
    %v3892 = vunpack.c.h.b16 %v3797
    %v3893 = vunpack.c.l.b16 %v3798
    %v3894 = vunpack.c.h.b16 %v3798
    %v3895 = vpack.c.b16 %v3833, %v3831
    %v3896 = vpack.c.b16 %v3834, %v3832
    %v3897 = vpack.c.b16 %v3837, %v3835
    %v3898 = vpack.c.b16 %v3838, %v3836
    %v3899 = vpack.c.b16 %v3841, %v3839
    %v3900 = vpack.c.b16 %v3842, %v3840
    %v3901 = vpack.c.b16 %v3845, %v3843
    %v3902 = vpack.c.b16 %v3846, %v3844
    %v3903 = vpack.c.b16 %v3849, %v3847
    %v3904 = vpack.c.b16 %v3850, %v3848
    %v3905 = vpack.c.b16 %v3853, %v3851
    %v3906 = vpack.c.b16 %v3854, %v3852
    %v3907 = vpack.c.b16 %v3857, %v3855
    %v3908 = vpack.c.b16 %v3858, %v3856
    %v3909 = vpack.c.b16 %v3861, %v3859
    %v3910 = vpack.c.b16 %v3862, %v3860
    %v3911 = vpack.c.b16 %v3865, %v3863
    %v3912 = vpack.c.b16 %v3866, %v3864
    %v3913 = vpack.c.b16 %v3869, %v3867
    %v3914 = vpack.c.b16 %v3870, %v3868
    %v3915 = vpack.c.b16 %v3873, %v3871
    %v3916 = vpack.c.b16 %v3874, %v3872
    %v3917 = vpack.c.b16 %v3877, %v3875
    %v3918 = vpack.c.b16 %v3878, %v3876
    %v3919 = vpack.c.b16 %v3881, %v3879
    %v3920 = vpack.c.b16 %v3882, %v3880
    %v3921 = vpack.c.b16 %v3885, %v3883
    %v3922 = vpack.c.b16 %v3886, %v3884
    %v3923 = vpack.c.b16 %v3889, %v3887
    %v3924 = vpack.c.b16 %v3890, %v3888
    %v3925 = vpack.c.b16 %v3893, %v3891
    %v3926 = vpack.c.b16 %v3894, %v3892
    %3959 = vmatprep.subr.bf16.mxu0 %v3896
    %3960 = vmatpush1.bf16.msra.mxu0 %v3895
    %3961 = vmatprep.subr.bf16.mxu0 %v3898
    %3962 = vmatpush1.bf16.msra.mxu0 %v3897
    %3963 = vmatprep.subr.bf16.mxu0 %v3900
    %3964 = vmatpush1.bf16.msra.mxu0 %v3899
    %3965 = vmatprep.subr.bf16.mxu0 %v3902
    %3966 = vmatpush1.bf16.msra.mxu0 %v3901
    %3967 = vmatprep.subr.bf16.mxu0 %v3904
    %3968 = vmatpush1.bf16.msra.mxu0 %v3903
    %3969 = vmatprep.subr.bf16.mxu0 %v3906
    %3970 = vmatpush1.bf16.msra.mxu0 %v3905
    %3971 = vmatprep.subr.bf16.mxu0 %v3908
    %3972 = vmatpush1.bf16.msra.mxu0 %v3907
    %3973 = vmatprep.subr.bf16.mxu0 %v3910
    %3974 = vmatpush1.bf16.msra.mxu0 %v3909
    %3975 = vmatprep.subr.bf16.mxu0 %v3912
    %3976 = vmatpush1.bf16.msra.mxu0 %v3911
    %3977 = vmatprep.subr.bf16.mxu0 %v3914
    %3978 = vmatpush1.bf16.msra.mxu0 %v3913
    %3979 = vmatprep.subr.bf16.mxu0 %v3916
    %3980 = vmatpush1.bf16.msra.mxu0 %v3915
    %3981 = vmatprep.subr.bf16.mxu0 %v3918
    %3982 = vmatpush1.bf16.msra.mxu0 %v3917
    %3983 = vmatprep.subr.bf16.mxu0 %v3920
    %3984 = vmatpush1.bf16.msra.mxu0 %v3919
    %3985 = vmatprep.subr.bf16.mxu0 %v3922
    %3986 = vmatpush1.bf16.msra.mxu0 %v3921
    %3987 = vmatprep.subr.bf16.mxu0 %v3924
    %3988 = vmatpush1.bf16.msra.mxu0 %v3923
    %3989 = vmatprep.subr.bf16.mxu0 %v3926
    %3990 = vmatpush1.bf16.msra.mxu0 %v3925
    %3991 = vmatprep.mubr.bf16.mxu0 %v3751
    %3992 = vmatmul.mubr.bf16.gmra.mrb[0].mxu0 %v3750
    %v3993 = vpop.f32.mrb[0].mxu0
    %v3994 = vadd.f32 0.0, %v3993
    %v3995 = vpop.f32.mrb[0].mxu0
    %v3996 = vadd.f32 0.0, %v3995
    %v3997 = vpop.f32.mrb[0].mxu0
    %v3998 = vadd.f32 0.0, %v3997
    %v3999 = vpop.f32.mrb[0].mxu0
    %v4000 = vadd.f32 0.0, %v3999
    %4001 = vmatprep.mubr.bf16.mxu0 %v3753
    %4002 = vmatmul.mubr.bf16.gmra.mrb[0].mxu0 %v3752
    %v4003 = vpop.f32.mrb[0].mxu0
    %v4004 = vadd.f32 0.0, %v4003
    %v4005 = vpop.f32.mrb[0].mxu0
    %v4006 = vadd.f32 0.0, %v4005
    %v4007 = vpop.f32.mrb[0].mxu0
    %v4008 = vadd.f32 0.0, %v4007
    %v4009 = vpop.f32.mrb[0].mxu0
    %v4010 = vadd.f32 0.0, %v4009
    %4011 = vmatprep.mubr.bf16.mxu0 %v3755
    %4012 = vmatmul.mubr.bf16.gmra.mrb[0].mxu0 %v3754
    %v4013 = vpop.f32.mrb[0].mxu0
    %v4014 = vadd.f32 0.0, %v4013
    %v4015 = vpop.f32.mrb[0].mxu0
    %v4016 = vadd.f32 0.0, %v4015
    %v4017 = vpop.f32.mrb[0].mxu0
    %v4018 = vadd.f32 0.0, %v4017
    %v4019 = vpop.f32.mrb[0].mxu0
    %v4020 = vadd.f32 0.0, %v4019
    %4021 = vmatprep.mubr.bf16.mxu0 %v3757
    %4022 = vmatmul.mubr.bf16.gmra.mrb[0].mxu0 %v3756
    %v4023 = vpop.f32.mrb[0].mxu0
    %v4024 = vadd.f32 0.0, %v4023
    %v4025 = vpop.f32.mrb[0].mxu0
    %v4026 = vadd.f32 0.0, %v4025
    %v4027 = vpop.f32.mrb[0].mxu0
    %v4028 = vadd.f32 0.0, %v4027
    %v4029 = vpop.f32.mrb[0].mxu0
    %v4030 = vadd.f32 0.0, %v4029
    %4031 = vmatprep.mubr.bf16.mxu0 %v3759
    %4032 = vmatmul.mubr.bf16.gmra.mrb[0].mxu0 %v3758
    %v4033 = vpop.f32.mrb[0].mxu0
    %v4034 = vadd.f32 0.0, %v4033
    %v4035 = vpop.f32.mrb[0].mxu0
    %v4036 = vadd.f32 0.0, %v4035
    %v4037 = vpop.f32.mrb[0].mxu0
    %v4038 = vadd.f32 0.0, %v4037
    %v4039 = vpop.f32.mrb[0].mxu0
    %v4040 = vadd.f32 0.0, %v4039
    %4041 = vmatprep.mubr.bf16.mxu0 %v3761
    %4042 = vmatmul.mubr.bf16.gmra.mrb[0].mxu0 %v3760
    %v4043 = vpop.f32.mrb[0].mxu0
    %v4044 = vadd.f32 0.0, %v4043
    %v4045 = vpop.f32.mrb[0].mxu0
    %v4046 = vadd.f32 0.0, %v4045
    %v4047 = vpop.f32.mrb[0].mxu0
    %v4048 = vadd.f32 0.0, %v4047
    %v4049 = vpop.f32.mrb[0].mxu0
    %v4050 = vadd.f32 0.0, %v4049
    %4051 = vmatprep.mubr.bf16.mxu0 %v3763
    %4052 = vmatmul.mubr.bf16.gmra.mrb[0].mxu0 %v3762
    %v4053 = vpop.f32.mrb[0].mxu0
    %v4054 = vadd.f32 0.0, %v4053
    %v4055 = vpop.f32.mrb[0].mxu0
    %v4056 = vadd.f32 0.0, %v4055
    %v4057 = vpop.f32.mrb[0].mxu0
    %v4058 = vadd.f32 0.0, %v4057
    %v4059 = vpop.f32.mrb[0].mxu0
    %v4060 = vadd.f32 0.0, %v4059
    %4061 = vmatprep.mubr.bf16.mxu0 %v3765
    %4062 = vmatmul.mubr.bf16.gmra.mrb[0].mxu0 %v3764
    %v4063 = vpop.f32.mrb[0].mxu0
    %v4064 = vadd.f32 0.0, %v4063
    %v4065 = vpop.f32.mrb[0].mxu0
    %v4066 = vadd.f32 0.0, %v4065
    %v4067 = vpop.f32.mrb[0].mxu0
    %v4068 = vadd.f32 0.0, %v4067
    %v4069 = vpop.f32.mrb[0].mxu0
    %v4070 = vadd.f32 0.0, %v4069
    %4071 = vdwg.mxu0
    %v4104 = vunpack.c.l.b16 %v3526
    %v4105 = vunpack.c.h.b16 %v3526
    %v4106 = vunpack.c.l.b16 %v3527
    %v4107 = vunpack.c.h.b16 %v3527
    %v4108 = vunpack.c.l.b16 %v3528
    %v4109 = vunpack.c.h.b16 %v3528
    %v4110 = vunpack.c.l.b16 %v3529
    %v4111 = vunpack.c.h.b16 %v3529
    %v4112 = vunpack.c.l.b16 %v3530
    %v4113 = vunpack.c.h.b16 %v3530
    %v4114 = vunpack.c.l.b16 %v3531
    %v4115 = vunpack.c.h.b16 %v3531
    %v4116 = vunpack.c.l.b16 %v3532
    %v4117 = vunpack.c.h.b16 %v3532
    %v4118 = vunpack.c.l.b16 %v3533
    %v4119 = vunpack.c.h.b16 %v3533
    %v4120 = vunpack.c.l.b16 %v3534
    %v4121 = vunpack.c.h.b16 %v3534
    %v4122 = vunpack.c.l.b16 %v3535
    %v4123 = vunpack.c.h.b16 %v3535
    %v4124 = vunpack.c.l.b16 %v3536
    %v4125 = vunpack.c.h.b16 %v3536
    %v4126 = vunpack.c.l.b16 %v3537
    %v4127 = vunpack.c.h.b16 %v3537
    %v4128 = vunpack.c.l.b16 %v3538
    %v4129 = vunpack.c.h.b16 %v3538
    %v4130 = vunpack.c.l.b16 %v3539
    %v4131 = vunpack.c.h.b16 %v3539
    %v4132 = vunpack.c.l.b16 %v3540
    %v4133 = vunpack.c.h.b16 %v3540
    %v4134 = vunpack.c.l.b16 %v3541
    %v4135 = vunpack.c.h.b16 %v3541
    %v4136 = vunpack.c.l.b16 %v3542
    %v4137 = vunpack.c.h.b16 %v3542
    %v4138 = vunpack.c.l.b16 %v3543
    %v4139 = vunpack.c.h.b16 %v3543
    %v4140 = vunpack.c.l.b16 %v3544
    %v4141 = vunpack.c.h.b16 %v3544
    %v4142 = vunpack.c.l.b16 %v3545
    %v4143 = vunpack.c.h.b16 %v3545
    %v4144 = vunpack.c.l.b16 %v3546
    %v4145 = vunpack.c.h.b16 %v3546
    %v4146 = vunpack.c.l.b16 %v3547
    %v4147 = vunpack.c.h.b16 %v3547
    %v4148 = vunpack.c.l.b16 %v3548
    %v4149 = vunpack.c.h.b16 %v3548
    %v4150 = vunpack.c.l.b16 %v3549
    %v4151 = vunpack.c.h.b16 %v3549
    %v4152 = vunpack.c.l.b16 %v3550
    %v4153 = vunpack.c.h.b16 %v3550
    %v4154 = vunpack.c.l.b16 %v3551
    %v4155 = vunpack.c.h.b16 %v3551
    %v4156 = vunpack.c.l.b16 %v3552
    %v4157 = vunpack.c.h.b16 %v3552
    %v4158 = vunpack.c.l.b16 %v3553
    %v4159 = vunpack.c.h.b16 %v3553
    %v4160 = vunpack.c.l.b16 %v3554
    %v4161 = vunpack.c.h.b16 %v3554
    %v4162 = vunpack.c.l.b16 %v3555
    %v4163 = vunpack.c.h.b16 %v3555
    %v4164 = vunpack.c.l.b16 %v3556
    %v4165 = vunpack.c.h.b16 %v3556
    %v4166 = vunpack.c.l.b16 %v3557
    %v4167 = vunpack.c.h.b16 %v3557
    %v4168 = vpack.c.b16 %v4106, %v4104
    %v4169 = vpack.c.b16 %v4107, %v4105
    %v4170 = vpack.c.b16 %v4110, %v4108
    %v4171 = vpack.c.b16 %v4111, %v4109
    %v4172 = vpack.c.b16 %v4114, %v4112
    %v4173 = vpack.c.b16 %v4115, %v4113
    %v4174 = vpack.c.b16 %v4118, %v4116
    %v4175 = vpack.c.b16 %v4119, %v4117
    %v4176 = vpack.c.b16 %v4122, %v4120
    %v4177 = vpack.c.b16 %v4123, %v4121
    %v4178 = vpack.c.b16 %v4126, %v4124
    %v4179 = vpack.c.b16 %v4127, %v4125
    %v4180 = vpack.c.b16 %v4130, %v4128
    %v4181 = vpack.c.b16 %v4131, %v4129
    %v4182 = vpack.c.b16 %v4134, %v4132
    %v4183 = vpack.c.b16 %v4135, %v4133
    %v4184 = vpack.c.b16 %v4138, %v4136
    %v4185 = vpack.c.b16 %v4139, %v4137
    %v4186 = vpack.c.b16 %v4142, %v4140
    %v4187 = vpack.c.b16 %v4143, %v4141
    %v4188 = vpack.c.b16 %v4146, %v4144
    %v4189 = vpack.c.b16 %v4147, %v4145
    %v4190 = vpack.c.b16 %v4150, %v4148
    %v4191 = vpack.c.b16 %v4151, %v4149
    %v4192 = vpack.c.b16 %v4154, %v4152
    %v4193 = vpack.c.b16 %v4155, %v4153
    %v4194 = vpack.c.b16 %v4158, %v4156
    %v4195 = vpack.c.b16 %v4159, %v4157
    %v4196 = vpack.c.b16 %v4162, %v4160
    %v4197 = vpack.c.b16 %v4163, %v4161
    %v4198 = vpack.c.b16 %v4166, %v4164
    %v4199 = vpack.c.b16 %v4167, %v4165
    %4232 = vmatprep.subr.bf16.mxu0 %v4169
    %4233 = vmatpush1.bf16.msra.mxu0 %v4168
    %4234 = vmatprep.subr.bf16.mxu0 %v4171
    %4235 = vmatpush1.bf16.msra.mxu0 %v4170
    %4236 = vmatprep.subr.bf16.mxu0 %v4173
    %4237 = vmatpush1.bf16.msra.mxu0 %v4172
    %4238 = vmatprep.subr.bf16.mxu0 %v4175
    %4239 = vmatpush1.bf16.msra.mxu0 %v4174
    %4240 = vmatprep.subr.bf16.mxu0 %v4177
    %4241 = vmatpush1.bf16.msra.mxu0 %v4176
    %4242 = vmatprep.subr.bf16.mxu0 %v4179
    %4243 = vmatpush1.bf16.msra.mxu0 %v4178
    %4244 = vmatprep.subr.bf16.mxu0 %v4181
    %4245 = vmatpush1.bf16.msra.mxu0 %v4180
    %4246 = vmatprep.subr.bf16.mxu0 %v4183
    %4247 = vmatpush1.bf16.msra.mxu0 %v4182
    %4248 = vmatprep.subr.bf16.mxu0 %v4185
    %4249 = vmatpush1.bf16.msra.mxu0 %v4184
    %4250 = vmatprep.subr.bf16.mxu0 %v4187
    %4251 = vmatpush1.bf16.msra.mxu0 %v4186
    %4252 = vmatprep.subr.bf16.mxu0 %v4189
    %4253 = vmatpush1.bf16.msra.mxu0 %v4188
    %4254 = vmatprep.subr.bf16.mxu0 %v4191
    %4255 = vmatpush1.bf16.msra.mxu0 %v4190
    %4256 = vmatprep.subr.bf16.mxu0 %v4193
    %4257 = vmatpush1.bf16.msra.mxu0 %v4192
    %4258 = vmatprep.subr.bf16.mxu0 %v4195
    %4259 = vmatpush1.bf16.msra.mxu0 %v4194
    %4260 = vmatprep.subr.bf16.mxu0 %v4197
    %4261 = vmatpush1.bf16.msra.mxu0 %v4196
    %4262 = vmatprep.subr.bf16.mxu0 %v4199
    %4263 = vmatpush1.bf16.msra.mxu0 %v4198
    %4264 = vmatprep.mubr.bf16.mxu0 %v3511
    %4265 = vmatmul.mubr.bf16.gmra.mrb[0].mxu0 %v3510
    %v4266 = vpop.f32.mrb[0].mxu0
    %v4267 = vadd.f32 %v3994, %v4266
    %v4268 = vpop.f32.mrb[0].mxu0
    %v4269 = vadd.f32 %v3996, %v4268
    %v4270 = vpop.f32.mrb[0].mxu0
    %v4271 = vadd.f32 %v3998, %v4270
    %v4272 = vpop.f32.mrb[0].mxu0
    %v4273 = vadd.f32 %v4000, %v4272
    %4274 = vmatprep.mubr.bf16.mxu0 %v3513
    %4275 = vmatmul.mubr.bf16.gmra.mrb[0].mxu0 %v3512
    %v4276 = vpop.f32.mrb[0].mxu0
    %v4277 = vadd.f32 %v4004, %v4276
    %v4278 = vpop.f32.mrb[0].mxu0
    %v4279 = vadd.f32 %v4006, %v4278
    %v4280 = vpop.f32.mrb[0].mxu0
    %v4281 = vadd.f32 %v4008, %v4280
    %v4282 = vpop.f32.mrb[0].mxu0
    %v4283 = vadd.f32 %v4010, %v4282
    %4284 = vmatprep.mubr.bf16.mxu0 %v3515
    %4285 = vmatmul.mubr.bf16.gmra.mrb[0].mxu0 %v3514
    %v4286 = vpop.f32.mrb[0].mxu0
    %v4287 = vadd.f32 %v4014, %v4286
    %v4288 = vpop.f32.mrb[0].mxu0
    %v4289 = vadd.f32 %v4016, %v4288
    %v4290 = vpop.f32.mrb[0].mxu0
    %v4291 = vadd.f32 %v4018, %v4290
    %v4292 = vpop.f32.mrb[0].mxu0
    %v4293 = vadd.f32 %v4020, %v4292
    %4294 = vmatprep.mubr.bf16.mxu0 %v3517
    %4295 = vmatmul.mubr.bf16.gmra.mrb[0].mxu0 %v3516
    %v4296 = vpop.f32.mrb[0].mxu0
    %v4297 = vadd.f32 %v4024, %v4296
    %v4298 = vpop.f32.mrb[0].mxu0
    %v4299 = vadd.f32 %v4026, %v4298
    %v4300 = vpop.f32.mrb[0].mxu0
    %v4301 = vadd.f32 %v4028, %v4300
    %v4302 = vpop.f32.mrb[0].mxu0
    %v4303 = vadd.f32 %v4030, %v4302
    %4304 = vmatprep.mubr.bf16.mxu0 %v3519
    %4305 = vmatmul.mubr.bf16.gmra.mrb[0].mxu0 %v3518
    %v4306 = vpop.f32.mrb[0].mxu0
    %v4307 = vadd.f32 %v4034, %v4306
    %v4308 = vpop.f32.mrb[0].mxu0
    %v4309 = vadd.f32 %v4036, %v4308
    %v4310 = vpop.f32.mrb[0].mxu0
    %v4311 = vadd.f32 %v4038, %v4310
    %v4312 = vpop.f32.mrb[0].mxu0
    %v4313 = vadd.f32 %v4040, %v4312
    %4314 = vmatprep.mubr.bf16.mxu0 %v3521
    %4315 = vmatmul.mubr.bf16.gmra.mrb[0].mxu0 %v3520
    %v4316 = vpop.f32.mrb[0].mxu0
    %v4317 = vadd.f32 %v4044, %v4316
    %v4318 = vpop.f32.mrb[0].mxu0
    %v4319 = vadd.f32 %v4046, %v4318
    %v4320 = vpop.f32.mrb[0].mxu0
    %v4321 = vadd.f32 %v4048, %v4320
    %v4322 = vpop.f32.mrb[0].mxu0
    %v4323 = vadd.f32 %v4050, %v4322
    %4324 = vmatprep.mubr.bf16.mxu0 %v3523
    %4325 = vmatmul.mubr.bf16.gmra.mrb[0].mxu0 %v3522
    %v4326 = vpop.f32.mrb[0].mxu0
    %v4327 = vadd.f32 %v4054, %v4326
    %v4328 = vpop.f32.mrb[0].mxu0
    %v4329 = vadd.f32 %v4056, %v4328
    %v4330 = vpop.f32.mrb[0].mxu0
    %v4331 = vadd.f32 %v4058, %v4330
    %v4332 = vpop.f32.mrb[0].mxu0
    %v4333 = vadd.f32 %v4060, %v4332
    %4334 = vmatprep.mubr.bf16.mxu0 %v3525
    %4335 = vmatmul.mubr.bf16.gmra.mrb[0].mxu0 %v3524
    %v4336 = vpop.f32.mrb[0].mxu0
    %v4337 = vadd.f32 %v4064, %v4336
    %v4338 = vpop.f32.mrb[0].mxu0
    %v4339 = vadd.f32 %v4066, %v4338
    %v4340 = vpop.f32.mrb[0].mxu0
    %v4341 = vadd.f32 %v4068, %v4340
    %v4342 = vpop.f32.mrb[0].mxu0
    %v4343 = vadd.f32 %v4070, %v4342
    %4344 = vdwg.mxu0
    %v4345 = vld [vmem:[#allocation2] sm:$0xfc]
    %v4346 = vld [vmem:[#allocation2 + $0x8] sm:$0xfc]
    %v4347 = vld [vmem:[#allocation2 + $0x20] sm:$0x3]
    %v4348 = vld [vmem:[#allocation2 + $0x28] sm:$0x3]
    %v4349 = vld [vmem:[#allocation2 + $0x30] sm:$0xfc]
    %v4350 = vld [vmem:[#allocation2 + $0x38] sm:$0xfc]
    %v4351 = vld [vmem:[#allocation2 + $0x50] sm:$0x3]
    %v4352 = vld [vmem:[#allocation2 + $0x58] sm:$0x3]
    %v4353 = vld [vmem:[#allocation2 + $0x60] sm:$0xfc]
    %v4354 = vld [vmem:[#allocation2 + $0x68] sm:$0xfc]
    %v4355 = vld [vmem:[#allocation2 + $0x80] sm:$0x3]
    %v4356 = vld [vmem:[#allocation2 + $0x88] sm:$0x3]
    %v4357 = vld [vmem:[#allocation2 + $0x90] sm:$0xfc]
    %v4358 = vld [vmem:[#allocation2 + $0x98] sm:$0xfc]
    %v4359 = vld [vmem:[#allocation2 + $0xb0] sm:$0x3]
    %v4360 = vld [vmem:[#allocation2 + $0xb8] sm:$0x3]
    %v4361 = vld [vmem:[#allocation2 + $0xc0] sm:$0xfc]
    %v4362 = vld [vmem:[#allocation2 + $0xc8] sm:$0xfc]
    %v4363 = vld [vmem:[#allocation2 + $0xe0] sm:$0x3]
    %v4364 = vld [vmem:[#allocation2 + $0xe8] sm:$0x3]
    %v4365 = vld [vmem:[#allocation2 + $0xf0] sm:$0xfc]
    %v4366 = vld [vmem:[#allocation2 + $0xf8] sm:$0xfc]
    %v4367 = vld [vmem:[#allocation2 + $0x110] sm:$0x3]
    %v4368 = vld [vmem:[#allocation2 + $0x118] sm:$0x3]
    %v4369 = vld [vmem:[#allocation2 + $0x120] sm:$0xfc]
    %v4370 = vld [vmem:[#allocation2 + $0x128] sm:$0xfc]
    %v4371 = vld [vmem:[#allocation2 + $0x140] sm:$0x3]
    %v4372 = vld [vmem:[#allocation2 + $0x148] sm:$0x3]
    %v4373 = vld [vmem:[#allocation2 + $0x150] sm:$0xfc]
    %v4374 = vld [vmem:[#allocation2 + $0x158] sm:$0xfc]
    %v4375 = vld [vmem:[#allocation2 + $0x170] sm:$0x3]
    %v4376 = vld [vmem:[#allocation2 + $0x178] sm:$0x3]
    %v4409 = vrot.slane %v4345, 2
    %v4410 = vrot.slane %v3480, 2
    %v4411 = vsel %vm1817, %v4409, %v4410
    %v4412 = vrot.slane %v4346, 2
    %v4413 = vrot.slane %v3481, 2
    %v4414 = vsel %vm1817, %v4412, %v4413
    %v4415 = vrot.slane %v4347, 2
    %v4416 = vsel %vm1817, %v4410, %v4415
    %v4417 = vrot.slane %v4348, 2
    %v4418 = vsel %vm1817, %v4413, %v4417
    %v4419 = vrot.slane %v4349, 2
    %v4420 = vrot.slane %v3484, 2
    %v4421 = vsel %vm1817, %v4419, %v4420
    %v4422 = vrot.slane %v4350, 2
    %v4423 = vrot.slane %v3485, 2
    %v4424 = vsel %vm1817, %v4422, %v4423
    %v4425 = vrot.slane %v4351, 2
    %v4426 = vsel %vm1817, %v4420, %v4425
    %v4427 = vrot.slane %v4352, 2
    %v4428 = vsel %vm1817, %v4423, %v4427
    %v4429 = vrot.slane %v4353, 2
    %v4430 = vrot.slane %v3488, 2
    %v4431 = vsel %vm1817, %v4429, %v4430
    %v4432 = vrot.slane %v4354, 2
    %v4433 = vrot.slane %v3489, 2
    %v4434 = vsel %vm1817, %v4432, %v4433
    %v4435 = vrot.slane %v4355, 2
    %v4436 = vsel %vm1817, %v4430, %v4435
    %v4437 = vrot.slane %v4356, 2
    %v4438 = vsel %vm1817, %v4433, %v4437
    %v4439 = vrot.slane %v4357, 2
    %v4440 = vrot.slane %v3492, 2
    %v4441 = vsel %vm1817, %v4439, %v4440
    %v4442 = vrot.slane %v4358, 2
    %v4443 = vrot.slane %v3493, 2
    %v4444 = vsel %vm1817, %v4442, %v4443
    %v4445 = vrot.slane %v4359, 2
    %v4446 = vsel %vm1817, %v4440, %v4445
    %v4447 = vrot.slane %v4360, 2
    %v4448 = vsel %vm1817, %v4443, %v4447
    %v4449 = vrot.slane %v4361, 2
    %v4450 = vrot.slane %v3496, 2
    %v4451 = vsel %vm1817, %v4449, %v4450
    %v4452 = vrot.slane %v4362, 2
    %v4453 = vrot.slane %v3497, 2
    %v4454 = vsel %vm1817, %v4452, %v4453
    %v4455 = vrot.slane %v4363, 2
    %v4456 = vsel %vm1817, %v4450, %v4455
    %v4457 = vrot.slane %v4364, 2
    %v4458 = vsel %vm1817, %v4453, %v4457
    %v4459 = vrot.slane %v4365, 2
    %v4460 = vrot.slane %v3500, 2
    %v4461 = vsel %vm1817, %v4459, %v4460
    %v4462 = vrot.slane %v4366, 2
    %v4463 = vrot.slane %v3501, 2
    %v4464 = vsel %vm1817, %v4462, %v4463
    %v4465 = vrot.slane %v4367, 2
    %v4466 = vsel %vm1817, %v4460, %v4465
    %v4467 = vrot.slane %v4368, 2
    %v4468 = vsel %vm1817, %v4463, %v4467
    %v4469 = vrot.slane %v4369, 2
    %v4470 = vrot.slane %v3504, 2
    %v4471 = vsel %vm1817, %v4469, %v4470
    %v4472 = vrot.slane %v4370, 2
    %v4473 = vrot.slane %v3505, 2
    %v4474 = vsel %vm1817, %v4472, %v4473
    %v4475 = vrot.slane %v4371, 2
    %v4476 = vsel %vm1817, %v4470, %v4475
    %v4477 = vrot.slane %v4372, 2
    %v4478 = vsel %vm1817, %v4473, %v4477
    %v4479 = vrot.slane %v4373, 2
    %v4480 = vrot.slane %v3508, 2
    %v4481 = vsel %vm1817, %v4479, %v4480
    %v4482 = vrot.slane %v4374, 2
    %v4483 = vrot.slane %v3509, 2
    %v4484 = vsel %vm1817, %v4482, %v4483
    %v4485 = vrot.slane %v4375, 2
    %v4486 = vsel %vm1817, %v4480, %v4485
    %v4487 = vrot.slane %v4376, 2
    %v4488 = vsel %vm1817, %v4483, %v4487
    %v4521 = vpack.c.bf16 %v4416, %v4411
    %v4522 = vpack.c.bf16 %v4418, %v4414
    %v4523 = vpack.c.bf16 %v4426, %v4421
    %v4524 = vpack.c.bf16 %v4428, %v4424
    %v4525 = vpack.c.bf16 %v4436, %v4431
    %v4526 = vpack.c.bf16 %v4438, %v4434
    %v4527 = vpack.c.bf16 %v4446, %v4441
    %v4528 = vpack.c.bf16 %v4448, %v4444
    %v4529 = vpack.c.bf16 %v4456, %v4451
    %v4530 = vpack.c.bf16 %v4458, %v4454
    %v4531 = vpack.c.bf16 %v4466, %v4461
    %v4532 = vpack.c.bf16 %v4468, %v4464
    %v4533 = vpack.c.bf16 %v4476, %v4471
    %v4534 = vpack.c.bf16 %v4478, %v4474
    %v4535 = vpack.c.bf16 %v4486, %v4481
    %v4536 = vpack.c.bf16 %v4488, %v4484
    %s4537 = scalar_lea.vmem %s2, 512
    %v4538 = vld [vmem:[%s4537] sm:$0xff]
    %v4539 = vld [vmem:[%s4537 + $0x8] sm:$0xff]
    %v4540 = vld [vmem:[%s4537 + $0x10] sm:$0xff]
    %v4541 = vld [vmem:[%s4537 + $0x18] sm:$0xff]
    %v4542 = vld [vmem:[%s4537 + $0x20] sm:$0xff]
    %v4543 = vld [vmem:[%s4537 + $0x28] sm:$0xff]
    %v4544 = vld [vmem:[%s4537 + $0x30] sm:$0xff]
    %v4545 = vld [vmem:[%s4537 + $0x38] sm:$0xff]
    %v4546 = vld [vmem:[%s4537 + $0x40] sm:$0xff]
    %v4547 = vld [vmem:[%s4537 + $0x48] sm:$0xff]
    %v4548 = vld [vmem:[%s4537 + $0x50] sm:$0xff]
    %v4549 = vld [vmem:[%s4537 + $0x58] sm:$0xff]
    %v4550 = vld [vmem:[%s4537 + $0x60] sm:$0xff]
    %v4551 = vld [vmem:[%s4537 + $0x68] sm:$0xff]
    %v4552 = vld [vmem:[%s4537 + $0x70] sm:$0xff]
    %v4553 = vld [vmem:[%s4537 + $0x78] sm:$0xff]
    %v4554 = vld [vmem:[%s4537 + $0x80] sm:$0xff]
    %v4555 = vld [vmem:[%s4537 + $0x88] sm:$0xff]
    %v4556 = vld [vmem:[%s4537 + $0x90] sm:$0xff]
    %v4557 = vld [vmem:[%s4537 + $0x98] sm:$0xff]
    %v4558 = vld [vmem:[%s4537 + $0xa0] sm:$0xff]
    %v4559 = vld [vmem:[%s4537 + $0xa8] sm:$0xff]
    %v4560 = vld [vmem:[%s4537 + $0xb0] sm:$0xff]
    %v4561 = vld [vmem:[%s4537 + $0xb8] sm:$0xff]
    %v4562 = vld [vmem:[%s4537 + $0xc0] sm:$0xff]
    %v4563 = vld [vmem:[%s4537 + $0xc8] sm:$0xff]
    %v4564 = vld [vmem:[%s4537 + $0xd0] sm:$0xff]
    %v4565 = vld [vmem:[%s4537 + $0xd8] sm:$0xff]
    %v4566 = vld [vmem:[%s4537 + $0xe0] sm:$0xff]
    %v4567 = vld [vmem:[%s4537 + $0xe8] sm:$0xff]
    %v4568 = vld [vmem:[%s4537 + $0xf0] sm:$0xff]
    %v4569 = vld [vmem:[%s4537 + $0xf8] sm:$0xff]
    %v4602 = vunpack.c.l.b16 %v4538
    %v4603 = vunpack.c.h.b16 %v4538
    %v4604 = vunpack.c.l.b16 %v4539
    %v4605 = vunpack.c.h.b16 %v4539
    %v4606 = vunpack.c.l.b16 %v4540
    %v4607 = vunpack.c.h.b16 %v4540
    %v4608 = vunpack.c.l.b16 %v4541
    %v4609 = vunpack.c.h.b16 %v4541
    %v4610 = vunpack.c.l.b16 %v4542
    %v4611 = vunpack.c.h.b16 %v4542
    %v4612 = vunpack.c.l.b16 %v4543
    %v4613 = vunpack.c.h.b16 %v4543
    %v4614 = vunpack.c.l.b16 %v4544
    %v4615 = vunpack.c.h.b16 %v4544
    %v4616 = vunpack.c.l.b16 %v4545
    %v4617 = vunpack.c.h.b16 %v4545
    %v4618 = vunpack.c.l.b16 %v4546
    %v4619 = vunpack.c.h.b16 %v4546
    %v4620 = vunpack.c.l.b16 %v4547
    %v4621 = vunpack.c.h.b16 %v4547
    %v4622 = vunpack.c.l.b16 %v4548
    %v4623 = vunpack.c.h.b16 %v4548
    %v4624 = vunpack.c.l.b16 %v4549
    %v4625 = vunpack.c.h.b16 %v4549
    %v4626 = vunpack.c.l.b16 %v4550
    %v4627 = vunpack.c.h.b16 %v4550
    %v4628 = vunpack.c.l.b16 %v4551
    %v4629 = vunpack.c.h.b16 %v4551
    %v4630 = vunpack.c.l.b16 %v4552
    %v4631 = vunpack.c.h.b16 %v4552
    %v4632 = vunpack.c.l.b16 %v4553
    %v4633 = vunpack.c.h.b16 %v4553
    %v4634 = vunpack.c.l.b16 %v4554
    %v4635 = vunpack.c.h.b16 %v4554
    %v4636 = vunpack.c.l.b16 %v4555
    %v4637 = vunpack.c.h.b16 %v4555
    %v4638 = vunpack.c.l.b16 %v4556
    %v4639 = vunpack.c.h.b16 %v4556
    %v4640 = vunpack.c.l.b16 %v4557
    %v4641 = vunpack.c.h.b16 %v4557
    %v4642 = vunpack.c.l.b16 %v4558
    %v4643 = vunpack.c.h.b16 %v4558
    %v4644 = vunpack.c.l.b16 %v4559
    %v4645 = vunpack.c.h.b16 %v4559
    %v4646 = vunpack.c.l.b16 %v4560
    %v4647 = vunpack.c.h.b16 %v4560
    %v4648 = vunpack.c.l.b16 %v4561
    %v4649 = vunpack.c.h.b16 %v4561
    %v4650 = vunpack.c.l.b16 %v4562
    %v4651 = vunpack.c.h.b16 %v4562
    %v4652 = vunpack.c.l.b16 %v4563
    %v4653 = vunpack.c.h.b16 %v4563
    %v4654 = vunpack.c.l.b16 %v4564
    %v4655 = vunpack.c.h.b16 %v4564
    %v4656 = vunpack.c.l.b16 %v4565
    %v4657 = vunpack.c.h.b16 %v4565
    %v4658 = vunpack.c.l.b16 %v4566
    %v4659 = vunpack.c.h.b16 %v4566
    %v4660 = vunpack.c.l.b16 %v4567
    %v4661 = vunpack.c.h.b16 %v4567
    %v4662 = vunpack.c.l.b16 %v4568
    %v4663 = vunpack.c.h.b16 %v4568
    %v4664 = vunpack.c.l.b16 %v4569
    %v4665 = vunpack.c.h.b16 %v4569
    %v4666 = vpack.c.b16 %v4604, %v4602
    %v4667 = vpack.c.b16 %v4605, %v4603
    %v4668 = vpack.c.b16 %v4608, %v4606
    %v4669 = vpack.c.b16 %v4609, %v4607
    %v4670 = vpack.c.b16 %v4612, %v4610
    %v4671 = vpack.c.b16 %v4613, %v4611
    %v4672 = vpack.c.b16 %v4616, %v4614
    %v4673 = vpack.c.b16 %v4617, %v4615
    %v4674 = vpack.c.b16 %v4620, %v4618
    %v4675 = vpack.c.b16 %v4621, %v4619
    %v4676 = vpack.c.b16 %v4624, %v4622
    %v4677 = vpack.c.b16 %v4625, %v4623
    %v4678 = vpack.c.b16 %v4628, %v4626
    %v4679 = vpack.c.b16 %v4629, %v4627
    %v4680 = vpack.c.b16 %v4632, %v4630
    %v4681 = vpack.c.b16 %v4633, %v4631
    %v4682 = vpack.c.b16 %v4636, %v4634
    %v4683 = vpack.c.b16 %v4637, %v4635
    %v4684 = vpack.c.b16 %v4640, %v4638
    %v4685 = vpack.c.b16 %v4641, %v4639
    %v4686 = vpack.c.b16 %v4644, %v4642
    %v4687 = vpack.c.b16 %v4645, %v4643
    %v4688 = vpack.c.b16 %v4648, %v4646
    %v4689 = vpack.c.b16 %v4649, %v4647
    %v4690 = vpack.c.b16 %v4652, %v4650
    %v4691 = vpack.c.b16 %v4653, %v4651
    %v4692 = vpack.c.b16 %v4656, %v4654
    %v4693 = vpack.c.b16 %v4657, %v4655
    %v4694 = vpack.c.b16 %v4660, %v4658
    %v4695 = vpack.c.b16 %v4661, %v4659
    %v4696 = vpack.c.b16 %v4664, %v4662
    %v4697 = vpack.c.b16 %v4665, %v4663
    %4730 = vmatprep.subr.bf16.mxu0 %v4667
    %4731 = vmatpush1.bf16.msra.mxu0 %v4666
    %4732 = vmatprep.subr.bf16.mxu0 %v4669
    %4733 = vmatpush1.bf16.msra.mxu0 %v4668
    %4734 = vmatprep.subr.bf16.mxu0 %v4671
    %4735 = vmatpush1.bf16.msra.mxu0 %v4670
    %4736 = vmatprep.subr.bf16.mxu0 %v4673
    %4737 = vmatpush1.bf16.msra.mxu0 %v4672
    %4738 = vmatprep.subr.bf16.mxu0 %v4675
    %4739 = vmatpush1.bf16.msra.mxu0 %v4674
    %4740 = vmatprep.subr.bf16.mxu0 %v4677
    %4741 = vmatpush1.bf16.msra.mxu0 %v4676
    %4742 = vmatprep.subr.bf16.mxu0 %v4679
    %4743 = vmatpush1.bf16.msra.mxu0 %v4678
    %4744 = vmatprep.subr.bf16.mxu0 %v4681
    %4745 = vmatpush1.bf16.msra.mxu0 %v4680
    %4746 = vmatprep.subr.bf16.mxu0 %v4683
    %4747 = vmatpush1.bf16.msra.mxu0 %v4682
    %4748 = vmatprep.subr.bf16.mxu0 %v4685
    %4749 = vmatpush1.bf16.msra.mxu0 %v4684
    %4750 = vmatprep.subr.bf16.mxu0 %v4687
    %4751 = vmatpush1.bf16.msra.mxu0 %v4686
    %4752 = vmatprep.subr.bf16.mxu0 %v4689
    %4753 = vmatpush1.bf16.msra.mxu0 %v4688
    %4754 = vmatprep.subr.bf16.mxu0 %v4691
    %4755 = vmatpush1.bf16.msra.mxu0 %v4690
    %4756 = vmatprep.subr.bf16.mxu0 %v4693
    %4757 = vmatpush1.bf16.msra.mxu0 %v4692
    %4758 = vmatprep.subr.bf16.mxu0 %v4695
    %4759 = vmatpush1.bf16.msra.mxu0 %v4694
    %4760 = vmatprep.subr.bf16.mxu0 %v4697
    %4761 = vmatpush1.bf16.msra.mxu0 %v4696
    %4762 = vmatprep.mubr.bf16.mxu0 %v4522
    %4763 = vmatmul.mubr.bf16.gmra.mrb[0].mxu0 %v4521
    %v4764 = vpop.f32.mrb[0].mxu0
    %v4765 = vadd.f32 0.0, %v4764
    %v4766 = vpop.f32.mrb[0].mxu0
    %v4767 = vadd.f32 0.0, %v4766
    %v4768 = vpop.f32.mrb[0].mxu0
    %v4769 = vadd.f32 0.0, %v4768
    %v4770 = vpop.f32.mrb[0].mxu0
    %v4771 = vadd.f32 0.0, %v4770
    %4772 = vmatprep.mubr.bf16.mxu0 %v4524
    %4773 = vmatmul.mubr.bf16.gmra.mrb[0].mxu0 %v4523
    %v4774 = vpop.f32.mrb[0].mxu0
    %v4775 = vadd.f32 0.0, %v4774
    %v4776 = vpop.f32.mrb[0].mxu0
    %v4777 = vadd.f32 0.0, %v4776
    %v4778 = vpop.f32.mrb[0].mxu0
    %v4779 = vadd.f32 0.0, %v4778
    %v4780 = vpop.f32.mrb[0].mxu0
    %v4781 = vadd.f32 0.0, %v4780
    %4782 = vmatprep.mubr.bf16.mxu0 %v4526
    %4783 = vmatmul.mubr.bf16.gmra.mrb[0].mxu0 %v4525
    %v4784 = vpop.f32.mrb[0].mxu0
    %v4785 = vadd.f32 0.0, %v4784
    %v4786 = vpop.f32.mrb[0].mxu0
    %v4787 = vadd.f32 0.0, %v4786
    %v4788 = vpop.f32.mrb[0].mxu0
    %v4789 = vadd.f32 0.0, %v4788
    %v4790 = vpop.f32.mrb[0].mxu0
    %v4791 = vadd.f32 0.0, %v4790
    %4792 = vmatprep.mubr.bf16.mxu0 %v4528
    %4793 = vmatmul.mubr.bf16.gmra.mrb[0].mxu0 %v4527
    %v4794 = vpop.f32.mrb[0].mxu0
    %v4795 = vadd.f32 0.0, %v4794
    %v4796 = vpop.f32.mrb[0].mxu0
    %v4797 = vadd.f32 0.0, %v4796
    %v4798 = vpop.f32.mrb[0].mxu0
    %v4799 = vadd.f32 0.0, %v4798
    %v4800 = vpop.f32.mrb[0].mxu0
    %v4801 = vadd.f32 0.0, %v4800
    %4802 = vmatprep.mubr.bf16.mxu0 %v4530
    %4803 = vmatmul.mubr.bf16.gmra.mrb[0].mxu0 %v4529
    %v4804 = vpop.f32.mrb[0].mxu0
    %v4805 = vadd.f32 0.0, %v4804
    %v4806 = vpop.f32.mrb[0].mxu0
    %v4807 = vadd.f32 0.0, %v4806
    %v4808 = vpop.f32.mrb[0].mxu0
    %v4809 = vadd.f32 0.0, %v4808
    %v4810 = vpop.f32.mrb[0].mxu0
    %v4811 = vadd.f32 0.0, %v4810
    %4812 = vmatprep.mubr.bf16.mxu0 %v4532
    %4813 = vmatmul.mubr.bf16.gmra.mrb[0].mxu0 %v4531
    %v4814 = vpop.f32.mrb[0].mxu0
    %v4815 = vadd.f32 0.0, %v4814
    %v4816 = vpop.f32.mrb[0].mxu0
    %v4817 = vadd.f32 0.0, %v4816
    %v4818 = vpop.f32.mrb[0].mxu0
    %v4819 = vadd.f32 0.0, %v4818
    %v4820 = vpop.f32.mrb[0].mxu0
    %v4821 = vadd.f32 0.0, %v4820
    %4822 = vmatprep.mubr.bf16.mxu0 %v4534
    %4823 = vmatmul.mubr.bf16.gmra.mrb[0].mxu0 %v4533
    %v4824 = vpop.f32.mrb[0].mxu0
    %v4825 = vadd.f32 0.0, %v4824
    %v4826 = vpop.f32.mrb[0].mxu0
    %v4827 = vadd.f32 0.0, %v4826
    %v4828 = vpop.f32.mrb[0].mxu0
    %v4829 = vadd.f32 0.0, %v4828
    %v4830 = vpop.f32.mrb[0].mxu0
    %v4831 = vadd.f32 0.0, %v4830
    %4832 = vmatprep.mubr.bf16.mxu0 %v4536
    %4833 = vmatmul.mubr.bf16.gmra.mrb[0].mxu0 %v4535
    %v4834 = vpop.f32.mrb[0].mxu0
    %v4835 = vadd.f32 0.0, %v4834
    %v4836 = vpop.f32.mrb[0].mxu0
    %v4837 = vadd.f32 0.0, %v4836
    %v4838 = vpop.f32.mrb[0].mxu0
    %v4839 = vadd.f32 0.0, %v4838
    %v4840 = vpop.f32.mrb[0].mxu0
    %v4841 = vadd.f32 0.0, %v4840
    %4842 = vdwg.mxu0
    %v4843 = vadd.f32 %v4267, %v4765
    %v4844 = vadd.f32 %v4269, %v4767
    %v4845 = vadd.f32 %v4271, %v4769
    %v4846 = vadd.f32 %v4273, %v4771
    %v4847 = vadd.f32 %v4277, %v4775
    %v4848 = vadd.f32 %v4279, %v4777
    %v4849 = vadd.f32 %v4281, %v4779
    %v4850 = vadd.f32 %v4283, %v4781
    %v4851 = vadd.f32 %v4287, %v4785
    %v4852 = vadd.f32 %v4289, %v4787
    %v4853 = vadd.f32 %v4291, %v4789
    %v4854 = vadd.f32 %v4293, %v4791
    %v4855 = vadd.f32 %v4297, %v4795
    %v4856 = vadd.f32 %v4299, %v4797
    %v4857 = vadd.f32 %v4301, %v4799
    %v4858 = vadd.f32 %v4303, %v4801
    %v4859 = vadd.f32 %v4307, %v4805
    %v4860 = vadd.f32 %v4309, %v4807
    %v4861 = vadd.f32 %v4311, %v4809
    %v4862 = vadd.f32 %v4313, %v4811
    %v4863 = vadd.f32 %v4317, %v4815
    %v4864 = vadd.f32 %v4319, %v4817
    %v4865 = vadd.f32 %v4321, %v4819
    %v4866 = vadd.f32 %v4323, %v4821
    %v4867 = vadd.f32 %v4327, %v4825
    %v4868 = vadd.f32 %v4329, %v4827
    %v4869 = vadd.f32 %v4331, %v4829
    %v4870 = vadd.f32 %v4333, %v4831
    %v4871 = vadd.f32 %v4337, %v4835
    %v4872 = vadd.f32 %v4339, %v4837
    %v4873 = vadd.f32 %v4341, %v4839
    %v4874 = vadd.f32 %v4343, %v4841
    %v4875 = vadd.f32 %v4843, %v4845
    %v4876 = vadd.f32 %v4875, %v4847
    %v4877 = vadd.f32 %v4876, %v4849
    %v4878 = vadd.f32 %v4877, %v4851
    %v4879 = vadd.f32 %v4878, %v4853
    %v4880 = vadd.f32 %v4879, %v4855
    %v4881 = vadd.f32 %v4880, %v4857
    %v4882 = vrot.slane %v4881, 4
    %v4883 = vadd.f32 %v4881, %v4882
    %v4884 = vrot.slane %v4883, 2
    %v4885 = vadd.f32 %v4883, %v4884
    %v4886 = vrot.slane %v4885, 1
    %v4887 = vadd.f32 %v4885, %v4886
    %v4888 = vadd.f32 %v4844, %v4846
    %v4889 = vadd.f32 %v4888, %v4848
    %v4890 = vadd.f32 %v4889, %v4850
    %v4891 = vadd.f32 %v4890, %v4852
    %v4892 = vadd.f32 %v4891, %v4854
    %v4893 = vadd.f32 %v4892, %v4856
    %v4894 = vadd.f32 %v4893, %v4858
    %v4895 = vrot.slane %v4894, 4
    %v4896 = vadd.f32 %v4894, %v4895
    %v4897 = vrot.slane %v4896, 2
    %v4898 = vadd.f32 %v4896, %v4897
    %v4899 = vrot.slane %v4898, 1
    %v4900 = vadd.f32 %v4898, %v4899
    %v4901 = vadd.f32 %v4859, %v4861
    %v4902 = vadd.f32 %v4901, %v4863
    %v4903 = vadd.f32 %v4902, %v4865
    %v4904 = vadd.f32 %v4903, %v4867
    %v4905 = vadd.f32 %v4904, %v4869
    %v4906 = vadd.f32 %v4905, %v4871
    %v4907 = vadd.f32 %v4906, %v4873
    %v4908 = vrot.slane %v4907, 4
    %v4909 = vadd.f32 %v4907, %v4908
    %v4910 = vrot.slane %v4909, 2
    %v4911 = vadd.f32 %v4909, %v4910
    %v4912 = vrot.slane %v4911, 1
    %v4913 = vadd.f32 %v4911, %v4912
    %v4914 = vadd.f32 %v4860, %v4862
    %v4915 = vadd.f32 %v4914, %v4864
    %v4916 = vadd.f32 %v4915, %v4866
    %v4917 = vadd.f32 %v4916, %v4868
    %v4918 = vadd.f32 %v4917, %v4870
    %v4919 = vadd.f32 %v4918, %v4872
    %v4920 = vadd.f32 %v4919, %v4874
    %v4921 = vrot.slane %v4920, 4
    %v4922 = vadd.f32 %v4920, %v4921
    %v4923 = vrot.slane %v4922, 2
    %v4924 = vadd.f32 %v4922, %v4923
    %v4925 = vrot.slane %v4924, 1
    %v4926 = vadd.f32 %v4924, %v4925
    %v4927 = vmul.f32 %v4887, %v2725
    %v4928 = vmul.f32 %v4900, %v2725
    %v4929 = vmul.f32 %v4913, %v2725
    %v4930 = vmul.f32 %v4926, %v2725
    %v4931 = vmul.f32 %v4843, %v4843
    %v4932 = vmul.f32 %v4844, %v4844
    %v4933 = vmul.f32 %v4845, %v4845
    %v4934 = vmul.f32 %v4846, %v4846
    %v4935 = vmul.f32 %v4847, %v4847
    %v4936 = vmul.f32 %v4848, %v4848
    %v4937 = vmul.f32 %v4849, %v4849
    %v4938 = vmul.f32 %v4850, %v4850
    %v4939 = vmul.f32 %v4851, %v4851
    %v4940 = vmul.f32 %v4852, %v4852
    %v4941 = vmul.f32 %v4853, %v4853
    %v4942 = vmul.f32 %v4854, %v4854
    %v4943 = vmul.f32 %v4855, %v4855
    %v4944 = vmul.f32 %v4856, %v4856
    %v4945 = vmul.f32 %v4857, %v4857
    %v4946 = vmul.f32 %v4858, %v4858
    %v4947 = vmul.f32 %v4859, %v4859
    %v4948 = vmul.f32 %v4860, %v4860
    %v4949 = vmul.f32 %v4861, %v4861
    %v4950 = vmul.f32 %v4862, %v4862
    %v4951 = vmul.f32 %v4863, %v4863
    %v4952 = vmul.f32 %v4864, %v4864
    %v4953 = vmul.f32 %v4865, %v4865
    %v4954 = vmul.f32 %v4866, %v4866
    %v4955 = vmul.f32 %v4867, %v4867
    %v4956 = vmul.f32 %v4868, %v4868
    %v4957 = vmul.f32 %v4869, %v4869
    %v4958 = vmul.f32 %v4870, %v4870
    %v4959 = vmul.f32 %v4871, %v4871
    %v4960 = vmul.f32 %v4872, %v4872
    %v4961 = vmul.f32 %v4873, %v4873
    %v4962 = vmul.f32 %v4874, %v4874
    %v4963 = vadd.f32 %v4931, %v4933
    %v4964 = vadd.f32 %v4963, %v4935
    %v4965 = vadd.f32 %v4964, %v4937
    %v4966 = vadd.f32 %v4965, %v4939
    %v4967 = vadd.f32 %v4966, %v4941
    %v4968 = vadd.f32 %v4967, %v4943
    %v4969 = vadd.f32 %v4968, %v4945
    %v4970 = vrot.slane %v4969, 4
    %v4971 = vadd.f32 %v4969, %v4970
    %v4972 = vrot.slane %v4971, 2
    %v4973 = vadd.f32 %v4971, %v4972
    %v4974 = vrot.slane %v4973, 1
    %v4975 = vadd.f32 %v4973, %v4974
    %v4976 = vadd.f32 %v4932, %v4934
    %v4977 = vadd.f32 %v4976, %v4936
    %v4978 = vadd.f32 %v4977, %v4938
    %v4979 = vadd.f32 %v4978, %v4940
    %v4980 = vadd.f32 %v4979, %v4942
    %v4981 = vadd.f32 %v4980, %v4944
    %v4982 = vadd.f32 %v4981, %v4946
    %v4983 = vrot.slane %v4982, 4
    %v4984 = vadd.f32 %v4982, %v4983
    %v4985 = vrot.slane %v4984, 2
    %v4986 = vadd.f32 %v4984, %v4985
    %v4987 = vrot.slane %v4986, 1
    %v4988 = vadd.f32 %v4986, %v4987
    %v4989 = vadd.f32 %v4947, %v4949
    %v4990 = vadd.f32 %v4989, %v4951
    %v4991 = vadd.f32 %v4990, %v4953
    %v4992 = vadd.f32 %v4991, %v4955
    %v4993 = vadd.f32 %v4992, %v4957
    %v4994 = vadd.f32 %v4993, %v4959
    %v4995 = vadd.f32 %v4994, %v4961
    %v4996 = vrot.slane %v4995, 4
    %v4997 = vadd.f32 %v4995, %v4996
    %v4998 = vrot.slane %v4997, 2
    %v4999 = vadd.f32 %v4997, %v4998
    %v5000 = vrot.slane %v4999, 1
    %v5001 = vadd.f32 %v4999, %v5000
    %v5002 = vadd.f32 %v4948, %v4950
    %v5003 = vadd.f32 %v5002, %v4952
    %v5004 = vadd.f32 %v5003, %v4954
    %v5005 = vadd.f32 %v5004, %v4956
    %v5006 = vadd.f32 %v5005, %v4958
    %v5007 = vadd.f32 %v5006, %v4960
    %v5008 = vadd.f32 %v5007, %v4962
    %v5009 = vrot.slane %v5008, 4
    %v5010 = vadd.f32 %v5008, %v5009
    %v5011 = vrot.slane %v5010, 2
    %v5012 = vadd.f32 %v5010, %v5011
    %v5013 = vrot.slane %v5012, 1
    %v5014 = vadd.f32 %v5012, %v5013
    %v5015 = vmul.f32 %v4975, %v2725
    %v5016 = vmul.f32 %v4988, %v2725
    %v5017 = vmul.f32 %v5001, %v2725
    %v5018 = vmul.f32 %v5014, %v2725
    %v5019 = vmul.f32 %v4927, %v4927
    %v5020 = vmul.f32 %v4928, %v4928
    %v5021 = vmul.f32 %v4929, %v4929
    %v5022 = vmul.f32 %v4930, %v4930
    %v5023 = vsub.f32 %v5015, %v5019
    %v5024 = vsub.f32 %v5016, %v5020
    %v5025 = vsub.f32 %v5017, %v5021
    %v5026 = vsub.f32 %v5018, %v5022
    %v5027 = vmax.f32 %v5023, 0.0
    %v5028 = vmax.f32 %v5024, 0.0
    %v5029 = vmax.f32 %v5025, 0.0
    %v5030 = vmax.f32 %v5026, 0.0
    %v5031 = vsub.f32 %v4843, %v4927
    %v5032 = vsub.f32 %v4844, %v4928
    %v5033 = vsub.f32 %v4845, %v4927
    %v5034 = vsub.f32 %v4846, %v4928
    %v5035 = vsub.f32 %v4847, %v4927
    %v5036 = vsub.f32 %v4848, %v4928
    %v5037 = vsub.f32 %v4849, %v4927
    %v5038 = vsub.f32 %v4850, %v4928
    %v5039 = vsub.f32 %v4851, %v4927
    %v5040 = vsub.f32 %v4852, %v4928
    %v5041 = vsub.f32 %v4853, %v4927
    %v5042 = vsub.f32 %v4854, %v4928
    %v5043 = vsub.f32 %v4855, %v4927
    %v5044 = vsub.f32 %v4856, %v4928
    %v5045 = vsub.f32 %v4857, %v4927
    %v5046 = vsub.f32 %v4858, %v4928
    %v5047 = vsub.f32 %v4859, %v4929
    %v5048 = vsub.f32 %v4860, %v4930
    %v5049 = vsub.f32 %v4861, %v4929
    %v5050 = vsub.f32 %v4862, %v4930
    %v5051 = vsub.f32 %v4863, %v4929
    %v5052 = vsub.f32 %v4864, %v4930
    %v5053 = vsub.f32 %v4865, %v4929
    %v5054 = vsub.f32 %v4866, %v4930
    %v5055 = vsub.f32 %v4867, %v4929
    %v5056 = vsub.f32 %v4868, %v4930
    %v5057 = vsub.f32 %v4869, %v4929
    %v5058 = vsub.f32 %v4870, %v4930
    %v5059 = vsub.f32 %v4871, %v4929
    %v5060 = vsub.f32 %v4872, %v4930
    %v5061 = vsub.f32 %v4873, %v4929
    %v5062 = vsub.f32 %v4874, %v4930
    %v5063 = vadd.f32 %v5027, 1e-05
    %v5064 = vadd.f32 %v5028, 1e-05
    %v5065 = vadd.f32 %v5029, 1e-05
    %v5066 = vadd.f32 %v5030, 1e-05
    %v5067 = vrsqrt.pop %v5063
    %v5068 = vrsqrt.pop %v5064
    %v5069 = vrsqrt.pop %v5065
    %v5070 = vrsqrt.pop %v5066
    %v5071 = vmul.f32 %v5031, %v5067
    %v5072 = vmul.f32 %v5032, %v5068
    %v5073 = vmul.f32 %v5033, %v5067
    %v5074 = vmul.f32 %v5034, %v5068
    %v5075 = vmul.f32 %v5035, %v5067
    %v5076 = vmul.f32 %v5036, %v5068
    %v5077 = vmul.f32 %v5037, %v5067
    %v5078 = vmul.f32 %v5038, %v5068
    %v5079 = vmul.f32 %v5039, %v5067
    %v5080 = vmul.f32 %v5040, %v5068
    %v5081 = vmul.f32 %v5041, %v5067
    %v5082 = vmul.f32 %v5042, %v5068
    %v5083 = vmul.f32 %v5043, %v5067
    %v5084 = vmul.f32 %v5044, %v5068
    %v5085 = vmul.f32 %v5045, %v5067
    %v5086 = vmul.f32 %v5046, %v5068
    %v5087 = vmul.f32 %v5047, %v5069
    %v5088 = vmul.f32 %v5048, %v5070
    %v5089 = vmul.f32 %v5049, %v5069
    %v5090 = vmul.f32 %v5050, %v5070
    %v5091 = vmul.f32 %v5051, %v5069
    %v5092 = vmul.f32 %v5052, %v5070
    %v5093 = vmul.f32 %v5053, %v5069
    %v5094 = vmul.f32 %v5054, %v5070
    %v5095 = vmul.f32 %v5055, %v5069
    %v5096 = vmul.f32 %v5056, %v5070
    %v5097 = vmul.f32 %v5057, %v5069
    %v5098 = vmul.f32 %v5058, %v5070
    %v5099 = vmul.f32 %v5059, %v5069
    %v5100 = vmul.f32 %v5060, %v5070
    %v5101 = vmul.f32 %v5061, %v5069
    %v5102 = vmul.f32 %v5062, %v5070
    %v5103 = vadd.f32 %v5071, %v15
    %v5104 = vadd.f32 %v5072, %v16
    %v5105 = vadd.f32 %v5073, %v17
    %v5106 = vadd.f32 %v5074, %v18
    %v5107 = vadd.f32 %v5075, %v19
    %v5108 = vadd.f32 %v5076, %v20
    %v5109 = vadd.f32 %v5077, %v21
    %v5110 = vadd.f32 %v5078, %v22
    %v5111 = vadd.f32 %v5079, %v23
    %v5112 = vadd.f32 %v5080, %v24
    %v5113 = vadd.f32 %v5081, %v25
    %v5114 = vadd.f32 %v5082, %v26
    %v5115 = vadd.f32 %v5083, %v27
    %v5116 = vadd.f32 %v5084, %v28
    %v5117 = vadd.f32 %v5085, %v29
    %v5118 = vadd.f32 %v5086, %v30
    %v5119 = vadd.f32 %v5087, %v31
    %v5120 = vadd.f32 %v5088, %v32
    %v5121 = vadd.f32 %v5089, %v33
    %v5122 = vadd.f32 %v5090, %v34
    %v5123 = vadd.f32 %v5091, %v35
    %v5124 = vadd.f32 %v5092, %v36
    %v5125 = vadd.f32 %v5093, %v37
    %v5126 = vadd.f32 %v5094, %v38
    %v5127 = vadd.f32 %v5095, %v39
    %v5128 = vadd.f32 %v5096, %v40
    %v5129 = vadd.f32 %v5097, %v41
    %v5130 = vadd.f32 %v5098, %v42
    %v5131 = vadd.f32 %v5099, %v43
    %v5132 = vadd.f32 %v5100, %v44
    %v5133 = vadd.f32 %v5101, %v45
    %v5134 = vadd.f32 %v5102, %v46
    %5135 = vst [vmem:[#allocation3] sm:$0xff] %v5103
    %5136 = vst [vmem:[#allocation3 + $0x8] sm:$0xff] %v5104
    %5137 = vst [vmem:[#allocation3 + $0x10] sm:$0xff] %v5105
    %5138 = vst [vmem:[#allocation3 + $0x18] sm:$0xff] %v5106
    %5139 = vst [vmem:[#allocation3 + $0x20] sm:$0xff] %v5107
    %5140 = vst [vmem:[#allocation3 + $0x28] sm:$0xff] %v5108
    %5141 = vst [vmem:[#allocation3 + $0x30] sm:$0xff] %v5109
    %5142 = vst [vmem:[#allocation3 + $0x38] sm:$0xff] %v5110
    %5143 = vst [vmem:[#allocation3 + $0x40] sm:$0xff] %v5111
    %5144 = vst [vmem:[#allocation3 + $0x48] sm:$0xff] %v5112
    %5145 = vst [vmem:[#allocation3 + $0x50] sm:$0xff] %v5113
    %5146 = vst [vmem:[#allocation3 + $0x58] sm:$0xff] %v5114
    %5147 = vst [vmem:[#allocation3 + $0x60] sm:$0xff] %v5115
    %5148 = vst [vmem:[#allocation3 + $0x68] sm:$0xff] %v5116
    %5149 = vst [vmem:[#allocation3 + $0x70] sm:$0xff] %v5117
    %5150 = vst [vmem:[#allocation3 + $0x78] sm:$0xff] %v5118
    %5151 = vst [vmem:[#allocation3 + $0x80] sm:$0xff] %v5119
    %5152 = vst [vmem:[#allocation3 + $0x88] sm:$0xff] %v5120
    %5153 = vst [vmem:[#allocation3 + $0x90] sm:$0xff] %v5121
    %5154 = vst [vmem:[#allocation3 + $0x98] sm:$0xff] %v5122
    %5155 = vst [vmem:[#allocation3 + $0xa0] sm:$0xff] %v5123
    %5156 = vst [vmem:[#allocation3 + $0xa8] sm:$0xff] %v5124
    %5157 = vst [vmem:[#allocation3 + $0xb0] sm:$0xff] %v5125
    %5158 = vst [vmem:[#allocation3 + $0xb8] sm:$0xff] %v5126
    %5159 = vst [vmem:[#allocation3 + $0xc0] sm:$0xff] %v5127
    %5160 = vst [vmem:[#allocation3 + $0xc8] sm:$0xff] %v5128
    %5161 = vst [vmem:[#allocation3 + $0xd0] sm:$0xff] %v5129
    %5162 = vst [vmem:[#allocation3 + $0xd8] sm:$0xff] %v5130
    %5163 = vst [vmem:[#allocation3 + $0xe0] sm:$0xff] %v5131
    %5164 = vst [vmem:[#allocation3 + $0xe8] sm:$0xff] %v5132
    %5165 = vst [vmem:[#allocation3 + $0xf0] sm:$0xff] %v5133
    %5166 = vst [vmem:[#allocation3 + $0xf8] sm:$0xff] %v5134
    // Predicated region
    $region14: #{residual_block.1} parent=1 // pred_check
      _
    $region15: #{residual_block.1} parent=1 // pred_check_branch
      %5168 = sbr.rel (0) target = $region17
    $region16: #{residual_block.1} parent=1 // pred_region
      %s5170 = ssub.s32 4096, 4096
      %5171 = vsyncadd [#allocation4], %s5170
      %s5172 = sshll.u32 [#allocation3], 4
      %s5173 = int_to_ptr.vmem [resolvable:$true] %s5172
      %5178 = dma.vmem_to_hbm [thread:$0]  %s5173, 4096, %s3, [#allocation4], 256, 256, 16
    $region17: #{residual_block.1} parent=1 // pred_fallthru
      _
    // Predicated region
    $region18: #{residual_block.1} parent=1 // pred_check
      _
    $region19: #{residual_block.1} parent=1 // pred_check_branch
      %5180 = sbr.rel (0) target = $region21
    $region20: #{residual_block.1} parent=1 // pred_region
      %5181 = dma.done [#allocation4], 4096
    $region21: #{residual_block.1} parent=1 // pred_fallthru
      _
    %5182 = vsyncpa [#allocation4], 1

</llo_original>
